<compile_context>
chip_gen: v7x
topology: tpu7x:2x2x1
jax: 0.10.0
libtpu: 0.0.40
codegen_flags: <defaults>
</compile_context>

<pallas_src>
import jax
import jax.numpy as jnp
import numpy as np
from jax.experimental import pallas as pl
from jax.experimental.pallas import tpu as pltpu


def tsa_kernel(wk_ref, bk_ref, wq_ref, bq_ref, wv_ref, bv_ref, x_ref, o_ref):
    # x_ref block (batch dim squeezed): (T, C, Nt) f32 in VMEM
    # w*_ref: (C*C,) f32 in SMEM (row-major (out, in));  b*_ref: (C,) f32 in SMEM
    T, C, Nt = x_ref.shape

    # Per-channel (T, Nt) slices of the input -> full (8,128) vregs.
    x_c = [x_ref[:, c, :] for c in range(C)]

    def conv1x1(w_ref, b_ref):
        # y_d = sum_c w[d, c] * x_c + b[d]   (SMEM scalar * vector, unrolled)
        ys = []
        for d in range(C):
            acc = x_c[0] * w_ref[d * C]
            for c in range(1, C):
                acc = acc + x_c[c] * w_ref[d * C + c]
            ys.append(acc + b_ref[d])
        return ys                                          # C x (T, Nt)

    k_c = conv1x1(wk_ref, bk_ref)
    q_c = conv1x1(wq_ref, bq_ref)
    v_c = conv1x1(wv_ref, bv_ref)

    # scores[i, j, n] = sum_c k[i, c, n] * q[j, c, n]       -> (T_i, T_j, Nt)
    scores = k_c[0][:, None, :] * q_c[0][None, :, :]
    for c in range(1, C):
        scores = scores + k_c[c][:, None, :] * q_c[c][None, :, :]

    # Numerically stable softmax over j; normalization deferred to the end.
    m = jnp.max(scores, axis=1, keepdims=True)             # (T, 1, Nt)
    e = jnp.exp(scores - m)                                # (T, T, Nt)
    denom = jnp.sum(e, axis=1)                             # (T, Nt)
    inv = 1.0 / denom                                      # T*Nt divides (not T*T*Nt)

    # out[i, d, n] = (sum_j e[i, j, n] * v[j, d, n]) * inv[i, n] + x[i, d, n]
    for d in range(C):
        acc = jnp.sum(e * v_c[d][None, :, :], axis=1)      # (T, Nt)
        o_ref[:, d, :] = (acc * inv + x_c[d]).astype(o_ref.dtype)


def _pick_tile_hw(hw, max_tile=8192):
    """Largest lane tile that divides hw and is a multiple of 128 (or the full dim)."""
    if hw <= max_tile:
        return hw
    for t in range(max_tile - (max_tile % 128), 127, -128):
        if hw % t == 0:
            return t
    return hw


def temporal_self_attention(x, wk, bk, wq, bq, wv, bv, *, tile_hw=None,
                            vmem_limit_bytes=40 * 1024 * 1024):
    """x: (B, T, C, H, W) f32; wk/wq/wv: (C, C); bk/bq/bv: (C,)."""
    B, T, C, H, W = x.shape
    HW = H * W
    if tile_hw is None:
        tile_hw = _pick_tile_hw(HW)
    assert HW % tile_hw == 0, "H*W must be divisible by tile_hw"

    xr = x.reshape(B, T, C, HW)                     # contiguous -> free reshape
    wk_f, wq_f, wv_f = (w.reshape(C * C) for w in (wk, wq, wv))

    smem = pl.BlockSpec(memory_space=pltpu.MemorySpace.SMEM)
    xspec = pl.BlockSpec((None, T, C, tile_hw), lambda b, i: (b, 0, 0, i))

    N = B * HW
    cost = pl.CostEstimate(
        flops=int(N * (6 * T * C * C + 4 * T * T * C)),
        transcendentals=int(N * T * T),
        bytes_accessed=int(2 * B * T * C * HW * 4 + 6 * (C * C + C) * 4),
    )

    out = pl.pallas_call(
        tsa_kernel,
        out_shape=jax.ShapeDtypeStruct((B, T, C, HW), x.dtype),
        grid_spec=pltpu.PrefetchScalarGridSpec(
            num_scalar_prefetch=0,
            grid=(B, HW // tile_hw),
            in_specs=[smem, smem, smem, smem, smem, smem, xspec],
            out_specs=xspec,
        ),
        compiler_params=pltpu.CompilerParams(
            dimension_semantics=("parallel", "parallel"),
            vmem_limit_bytes=vmem_limit_bytes),
        cost_estimate=cost,
    )(wk_f, bk, wq_f, bq, wv_f, bv, xr)

    return out.reshape(B, T, C, H, W)


def reference(x, wk, bk, wq, bq, wv, bv):
    """Pure-JAX reference matching the PyTorch forward exactly."""
    k = jnp.einsum('btchw,dc->btdhw', x, wk) + bk[None, None, :, None, None]
    q = jnp.einsum('btchw,dc->btdhw', x, wq) + bq[None, None, :, None, None]
    v = jnp.einsum('btchw,dc->btdhw', x, wv) + bv[None, None, :, None, None]
    scores = jnp.einsum('bichw,bjchw->bijhw', k, q)
    attn = jax.nn.softmax(scores, axis=2)
    out = jnp.einsum('bijhw,bjchw->bichw', attn, v)
    return out + x


if __name__ == "__main__":
    B, T, C, H, W = 2, 8, 4, 16, 16

    key = jax.random.PRNGKey(0)
    kx, kwk, kbk, kwq, kbq, kwv, kbv = jax.random.split(key, 7)

    x = jax.random.normal(kx, (B, T, C, H, W), dtype=jnp.float32)

    # Conv2d(C, C, kernel_size=1) parameters: weight (C, C), bias (C,)
    bound = 1.0 / np.sqrt(C)
    wk = jax.random.uniform(kwk, (C, C), jnp.float32, -bound, bound)
    bk = jax.random.uniform(kbk, (C,), jnp.float32, -bound, bound)
    wq = jax.random.uniform(kwq, (C, C), jnp.float32, -bound, bound)
    bq = jax.random.uniform(kbq, (C,), jnp.float32, -bound, bound)
    wv = jax.random.uniform(kwv, (C, C), jnp.float32, -bound, bound)
    bv = jax.random.uniform(kbv, (C,), jnp.float32, -bound, bound)

    out = temporal_self_attention(x, wk, bk, wq, bq, wv, bv)
    out = jax.block_until_ready(out)

    ref = jax.block_until_ready(reference(x, wk, bk, wq, bq, wv, bv))
    np.testing.assert_allclose(np.asarray(out), np.asarray(ref),
                               rtol=1e-5, atol=1e-5)

    print("KERNEL_OK")
</pallas_src>

<mosaic_0001>
module attributes {stable_mosaic.version = 11 : i64} {
  func.func @tsa_kernel(%arg0: i32, %arg1: i32, %arg2: memref<16xf32, #tpu.memory_space<smem>>, %arg3: memref<4xf32, #tpu.memory_space<smem>>, %arg4: memref<16xf32, #tpu.memory_space<smem>>, %arg5: memref<4xf32, #tpu.memory_space<smem>>, %arg6: memref<16xf32, #tpu.memory_space<smem>>, %arg7: memref<4xf32, #tpu.memory_space<smem>>, %arg8: memref<1x8x4x256xf32, #tpu.memory_space<vmem>>, %arg9: memref<1x8x4x256xf32, #tpu.memory_space<vmem>>) attributes {dimension_semantics = [#tpu.dimension_semantics<parallel>, #tpu.dimension_semantics<parallel>], iteration_bounds = array<i64: 2, 1>, scalar_prefetch = 0 : i64, scratch_operands = 0 : i64, tpu.core_type = #tpu.core_type<tc>, window_params = [{transform_indices = @transform_0, window_bounds = array<i64: 16>}, {transform_indices = @transform_1, window_bounds = array<i64: 4>}, {transform_indices = @transform_2, window_bounds = array<i64: 16>}, {transform_indices = @transform_3, window_bounds = array<i64: 4>}, {transform_indices = @transform_4, window_bounds = array<i64: 16>}, {transform_indices = @transform_5, window_bounds = array<i64: 4>}, {transform_indices = @transform_6, window_bounds = array<i64: 1, 8, 4, 256>}, {transform_indices = @transform_7, window_bounds = array<i64: 1, 8, 4, 256>}]} {
    %c0 = arith.constant 0 : index
    %c0_0 = arith.constant 0 : index
    %c0_1 = arith.constant 0 : index
    %c0_2 = arith.constant 0 : index
    %0 = vector.load %arg8[%c0, %c0_0, %c0_1, %c0_2] : memref<1x8x4x256xf32, #tpu.memory_space<vmem>>, vector<1x8x1x256xf32>
    %1 = vector.shape_cast %0 : vector<1x8x1x256xf32> to vector<8x256xf32>
    %c0_3 = arith.constant 0 : index
    %c0_4 = arith.constant 0 : index
    %c1 = arith.constant 1 : index
    %c0_5 = arith.constant 0 : index
    %2 = vector.load %arg8[%c0_3, %c0_4, %c1, %c0_5] : memref<1x8x4x256xf32, #tpu.memory_space<vmem>>, vector<1x8x1x256xf32>
    %3 = vector.shape_cast %2 : vector<1x8x1x256xf32> to vector<8x256xf32>
    %c0_6 = arith.constant 0 : index
    %c0_7 = arith.constant 0 : index
    %c2 = arith.constant 2 : index
    %c0_8 = arith.constant 0 : index
    %4 = vector.load %arg8[%c0_6, %c0_7, %c2, %c0_8] : memref<1x8x4x256xf32, #tpu.memory_space<vmem>>, vector<1x8x1x256xf32>
    %5 = vector.shape_cast %4 : vector<1x8x1x256xf32> to vector<8x256xf32>
    %c0_9 = arith.constant 0 : index
    %c0_10 = arith.constant 0 : index
    %c3 = arith.constant 3 : index
    %c0_11 = arith.constant 0 : index
    %6 = vector.load %arg8[%c0_9, %c0_10, %c3, %c0_11] : memref<1x8x4x256xf32, #tpu.memory_space<vmem>>, vector<1x8x1x256xf32>
    %7 = vector.shape_cast %6 : vector<1x8x1x256xf32> to vector<8x256xf32>
    %c0_12 = arith.constant 0 : index
    %8 = memref.load %arg2[%c0_12] : memref<16xf32, #tpu.memory_space<smem>>
    %9 = vector.broadcast %8 : f32 to vector<8x256xf32>
    %10 = arith.mulf %1, %9 : vector<8x256xf32>
    %c1_13 = arith.constant 1 : index
    %11 = memref.load %arg2[%c1_13] : memref<16xf32, #tpu.memory_space<smem>>
    %12 = vector.broadcast %11 : f32 to vector<8x256xf32>
    %13 = arith.mulf %3, %12 : vector<8x256xf32>
    %14 = arith.addf %10, %13 : vector<8x256xf32>
    %c2_14 = arith.constant 2 : index
    %15 = memref.load %arg2[%c2_14] : memref<16xf32, #tpu.memory_space<smem>>
    %16 = vector.broadcast %15 : f32 to vector<8x256xf32>
    %17 = arith.mulf %5, %16 : vector<8x256xf32>
    %18 = arith.addf %14, %17 : vector<8x256xf32>
    %c3_15 = arith.constant 3 : index
    %19 = memref.load %arg2[%c3_15] : memref<16xf32, #tpu.memory_space<smem>>
    %20 = vector.broadcast %19 : f32 to vector<8x256xf32>
    %21 = arith.mulf %7, %20 : vector<8x256xf32>
    %22 = arith.addf %18, %21 : vector<8x256xf32>
    %c0_16 = arith.constant 0 : index
    %23 = memref.load %arg3[%c0_16] : memref<4xf32, #tpu.memory_space<smem>>
    %24 = vector.broadcast %23 : f32 to vector<8x256xf32>
    %25 = arith.addf %22, %24 : vector<8x256xf32>
    %c4 = arith.constant 4 : index
    %26 = memref.load %arg2[%c4] : memref<16xf32, #tpu.memory_space<smem>>
    %27 = vector.broadcast %26 : f32 to vector<8x256xf32>
    %28 = arith.mulf %1, %27 : vector<8x256xf32>
    %c5 = arith.constant 5 : index
    %29 = memref.load %arg2[%c5] : memref<16xf32, #tpu.memory_space<smem>>
    %30 = vector.broadcast %29 : f32 to vector<8x256xf32>
    %31 = arith.mulf %3, %30 : vector<8x256xf32>
    %32 = arith.addf %28, %31 : vector<8x256xf32>
    %c6 = arith.constant 6 : index
    %33 = memref.load %arg2[%c6] : memref<16xf32, #tpu.memory_space<smem>>
    %34 = vector.broadcast %33 : f32 to vector<8x256xf32>
    %35 = arith.mulf %5, %34 : vector<8x256xf32>
    %36 = arith.addf %32, %35 : vector<8x256xf32>
    %c7 = arith.constant 7 : index
    %37 = memref.load %arg2[%c7] : memref<16xf32, #tpu.memory_space<smem>>
    %38 = vector.broadcast %37 : f32 to vector<8x256xf32>
    %39 = arith.mulf %7, %38 : vector<8x256xf32>
    %40 = arith.addf %36, %39 : vector<8x256xf32>
    %c1_17 = arith.constant 1 : index
    %41 = memref.load %arg3[%c1_17] : memref<4xf32, #tpu.memory_space<smem>>
    %42 = vector.broadcast %41 : f32 to vector<8x256xf32>
    %43 = arith.addf %40, %42 : vector<8x256xf32>
    %c8 = arith.constant 8 : index
    %44 = memref.load %arg2[%c8] : memref<16xf32, #tpu.memory_space<smem>>
    %45 = vector.broadcast %44 : f32 to vector<8x256xf32>
    %46 = arith.mulf %1, %45 : vector<8x256xf32>
    %c9 = arith.constant 9 : index
    %47 = memref.load %arg2[%c9] : memref<16xf32, #tpu.memory_space<smem>>
    %48 = vector.broadcast %47 : f32 to vector<8x256xf32>
    %49 = arith.mulf %3, %48 : vector<8x256xf32>
    %50 = arith.addf %46, %49 : vector<8x256xf32>
    %c10 = arith.constant 10 : index
    %51 = memref.load %arg2[%c10] : memref<16xf32, #tpu.memory_space<smem>>
    %52 = vector.broadcast %51 : f32 to vector<8x256xf32>
    %53 = arith.mulf %5, %52 : vector<8x256xf32>
    %54 = arith.addf %50, %53 : vector<8x256xf32>
    %c11 = arith.constant 11 : index
    %55 = memref.load %arg2[%c11] : memref<16xf32, #tpu.memory_space<smem>>
    %56 = vector.broadcast %55 : f32 to vector<8x256xf32>
    %57 = arith.mulf %7, %56 : vector<8x256xf32>
    %58 = arith.addf %54, %57 : vector<8x256xf32>
    %c2_18 = arith.constant 2 : index
    %59 = memref.load %arg3[%c2_18] : memref<4xf32, #tpu.memory_space<smem>>
    %60 = vector.broadcast %59 : f32 to vector<8x256xf32>
    %61 = arith.addf %58, %60 : vector<8x256xf32>
    %c12 = arith.constant 12 : index
    %62 = memref.load %arg2[%c12] : memref<16xf32, #tpu.memory_space<smem>>
    %63 = vector.broadcast %62 : f32 to vector<8x256xf32>
    %64 = arith.mulf %1, %63 : vector<8x256xf32>
    %c13 = arith.constant 13 : index
    %65 = memref.load %arg2[%c13] : memref<16xf32, #tpu.memory_space<smem>>
    %66 = vector.broadcast %65 : f32 to vector<8x256xf32>
    %67 = arith.mulf %3, %66 : vector<8x256xf32>
    %68 = arith.addf %64, %67 : vector<8x256xf32>
    %c14 = arith.constant 14 : index
    %69 = memref.load %arg2[%c14] : memref<16xf32, #tpu.memory_space<smem>>
    %70 = vector.broadcast %69 : f32 to vector<8x256xf32>
    %71 = arith.mulf %5, %70 : vector<8x256xf32>
    %72 = arith.addf %68, %71 : vector<8x256xf32>
    %c15 = arith.constant 15 : index
    %73 = memref.load %arg2[%c15] : memref<16xf32, #tpu.memory_space<smem>>
    %74 = vector.broadcast %73 : f32 to vector<8x256xf32>
    %75 = arith.mulf %7, %74 : vector<8x256xf32>
    %76 = arith.addf %72, %75 : vector<8x256xf32>
    %c3_19 = arith.constant 3 : index
    %77 = memref.load %arg3[%c3_19] : memref<4xf32, #tpu.memory_space<smem>>
    %78 = vector.broadcast %77 : f32 to vector<8x256xf32>
    %79 = arith.addf %76, %78 : vector<8x256xf32>
    %c0_20 = arith.constant 0 : index
    %80 = memref.load %arg4[%c0_20] : memref<16xf32, #tpu.memory_space<smem>>
    %81 = vector.broadcast %80 : f32 to vector<8x256xf32>
    %82 = arith.mulf %1, %81 : vector<8x256xf32>
    %c1_21 = arith.constant 1 : index
    %83 = memref.load %arg4[%c1_21] : memref<16xf32, #tpu.memory_space<smem>>
    %84 = vector.broadcast %83 : f32 to vector<8x256xf32>
    %85 = arith.mulf %3, %84 : vector<8x256xf32>
    %86 = arith.addf %82, %85 : vector<8x256xf32>
    %c2_22 = arith.constant 2 : index
    %87 = memref.load %arg4[%c2_22] : memref<16xf32, #tpu.memory_space<smem>>
    %88 = vector.broadcast %87 : f32 to vector<8x256xf32>
    %89 = arith.mulf %5, %88 : vector<8x256xf32>
    %90 = arith.addf %86, %89 : vector<8x256xf32>
    %c3_23 = arith.constant 3 : index
    %91 = memref.load %arg4[%c3_23] : memref<16xf32, #tpu.memory_space<smem>>
    %92 = vector.broadcast %91 : f32 to vector<8x256xf32>
    %93 = arith.mulf %7, %92 : vector<8x256xf32>
    %94 = arith.addf %90, %93 : vector<8x256xf32>
    %c0_24 = arith.constant 0 : index
    %95 = memref.load %arg5[%c0_24] : memref<4xf32, #tpu.memory_space<smem>>
    %96 = vector.broadcast %95 : f32 to vector<8x256xf32>
    %97 = arith.addf %94, %96 : vector<8x256xf32>
    %c4_25 = arith.constant 4 : index
    %98 = memref.load %arg4[%c4_25] : memref<16xf32, #tpu.memory_space<smem>>
    %99 = vector.broadcast %98 : f32 to vector<8x256xf32>
    %100 = arith.mulf %1, %99 : vector<8x256xf32>
    %c5_26 = arith.constant 5 : index
    %101 = memref.load %arg4[%c5_26] : memref<16xf32, #tpu.memory_space<smem>>
    %102 = vector.broadcast %101 : f32 to vector<8x256xf32>
    %103 = arith.mulf %3, %102 : vector<8x256xf32>
    %104 = arith.addf %100, %103 : vector<8x256xf32>
    %c6_27 = arith.constant 6 : index
    %105 = memref.load %arg4[%c6_27] : memref<16xf32, #tpu.memory_space<smem>>
    %106 = vector.broadcast %105 : f32 to vector<8x256xf32>
    %107 = arith.mulf %5, %106 : vector<8x256xf32>
    %108 = arith.addf %104, %107 : vector<8x256xf32>
    %c7_28 = arith.constant 7 : index
    %109 = memref.load %arg4[%c7_28] : memref<16xf32, #tpu.memory_space<smem>>
    %110 = vector.broadcast %109 : f32 to vector<8x256xf32>
    %111 = arith.mulf %7, %110 : vector<8x256xf32>
    %112 = arith.addf %108, %111 : vector<8x256xf32>
    %c1_29 = arith.constant 1 : index
    %113 = memref.load %arg5[%c1_29] : memref<4xf32, #tpu.memory_space<smem>>
    %114 = vector.broadcast %113 : f32 to vector<8x256xf32>
    %115 = arith.addf %112, %114 : vector<8x256xf32>
    %c8_30 = arith.constant 8 : index
    %116 = memref.load %arg4[%c8_30] : memref<16xf32, #tpu.memory_space<smem>>
    %117 = vector.broadcast %116 : f32 to vector<8x256xf32>
    %118 = arith.mulf %1, %117 : vector<8x256xf32>
    %c9_31 = arith.constant 9 : index
    %119 = memref.load %arg4[%c9_31] : memref<16xf32, #tpu.memory_space<smem>>
    %120 = vector.broadcast %119 : f32 to vector<8x256xf32>
    %121 = arith.mulf %3, %120 : vector<8x256xf32>
    %122 = arith.addf %118, %121 : vector<8x256xf32>
    %c10_32 = arith.constant 10 : index
    %123 = memref.load %arg4[%c10_32] : memref<16xf32, #tpu.memory_space<smem>>
    %124 = vector.broadcast %123 : f32 to vector<8x256xf32>
    %125 = arith.mulf %5, %124 : vector<8x256xf32>
    %126 = arith.addf %122, %125 : vector<8x256xf32>
    %c11_33 = arith.constant 11 : index
    %127 = memref.load %arg4[%c11_33] : memref<16xf32, #tpu.memory_space<smem>>
    %128 = vector.broadcast %127 : f32 to vector<8x256xf32>
    %129 = arith.mulf %7, %128 : vector<8x256xf32>
    %130 = arith.addf %126, %129 : vector<8x256xf32>
    %c2_34 = arith.constant 2 : index
    %131 = memref.load %arg5[%c2_34] : memref<4xf32, #tpu.memory_space<smem>>
    %132 = vector.broadcast %131 : f32 to vector<8x256xf32>
    %133 = arith.addf %130, %132 : vector<8x256xf32>
    %c12_35 = arith.constant 12 : index
    %134 = memref.load %arg4[%c12_35] : memref<16xf32, #tpu.memory_space<smem>>
    %135 = vector.broadcast %134 : f32 to vector<8x256xf32>
    %136 = arith.mulf %1, %135 : vector<8x256xf32>
    %c13_36 = arith.constant 13 : index
    %137 = memref.load %arg4[%c13_36] : memref<16xf32, #tpu.memory_space<smem>>
    %138 = vector.broadcast %137 : f32 to vector<8x256xf32>
    %139 = arith.mulf %3, %138 : vector<8x256xf32>
    %140 = arith.addf %136, %139 : vector<8x256xf32>
    %c14_37 = arith.constant 14 : index
    %141 = memref.load %arg4[%c14_37] : memref<16xf32, #tpu.memory_space<smem>>
    %142 = vector.broadcast %141 : f32 to vector<8x256xf32>
    %143 = arith.mulf %5, %142 : vector<8x256xf32>
    %144 = arith.addf %140, %143 : vector<8x256xf32>
    %c15_38 = arith.constant 15 : index
    %145 = memref.load %arg4[%c15_38] : memref<16xf32, #tpu.memory_space<smem>>
    %146 = vector.broadcast %145 : f32 to vector<8x256xf32>
    %147 = arith.mulf %7, %146 : vector<8x256xf32>
    %148 = arith.addf %144, %147 : vector<8x256xf32>
    %c3_39 = arith.constant 3 : index
    %149 = memref.load %arg5[%c3_39] : memref<4xf32, #tpu.memory_space<smem>>
    %150 = vector.broadcast %149 : f32 to vector<8x256xf32>
    %151 = arith.addf %148, %150 : vector<8x256xf32>
    %c0_40 = arith.constant 0 : index
    %152 = memref.load %arg6[%c0_40] : memref<16xf32, #tpu.memory_space<smem>>
    %153 = vector.broadcast %152 : f32 to vector<8x256xf32>
    %154 = arith.mulf %1, %153 : vector<8x256xf32>
    %c1_41 = arith.constant 1 : index
    %155 = memref.load %arg6[%c1_41] : memref<16xf32, #tpu.memory_space<smem>>
    %156 = vector.broadcast %155 : f32 to vector<8x256xf32>
    %157 = arith.mulf %3, %156 : vector<8x256xf32>
    %158 = arith.addf %154, %157 : vector<8x256xf32>
    %c2_42 = arith.constant 2 : index
    %159 = memref.load %arg6[%c2_42] : memref<16xf32, #tpu.memory_space<smem>>
    %160 = vector.broadcast %159 : f32 to vector<8x256xf32>
    %161 = arith.mulf %5, %160 : vector<8x256xf32>
    %162 = arith.addf %158, %161 : vector<8x256xf32>
    %c3_43 = arith.constant 3 : index
    %163 = memref.load %arg6[%c3_43] : memref<16xf32, #tpu.memory_space<smem>>
    %164 = vector.broadcast %163 : f32 to vector<8x256xf32>
    %165 = arith.mulf %7, %164 : vector<8x256xf32>
    %166 = arith.addf %162, %165 : vector<8x256xf32>
    %c0_44 = arith.constant 0 : index
    %167 = memref.load %arg7[%c0_44] : memref<4xf32, #tpu.memory_space<smem>>
    %168 = vector.broadcast %167 : f32 to vector<8x256xf32>
    %169 = arith.addf %166, %168 : vector<8x256xf32>
    %c4_45 = arith.constant 4 : index
    %170 = memref.load %arg6[%c4_45] : memref<16xf32, #tpu.memory_space<smem>>
    %171 = vector.broadcast %170 : f32 to vector<8x256xf32>
    %172 = arith.mulf %1, %171 : vector<8x256xf32>
    %c5_46 = arith.constant 5 : index
    %173 = memref.load %arg6[%c5_46] : memref<16xf32, #tpu.memory_space<smem>>
    %174 = vector.broadcast %173 : f32 to vector<8x256xf32>
    %175 = arith.mulf %3, %174 : vector<8x256xf32>
    %176 = arith.addf %172, %175 : vector<8x256xf32>
    %c6_47 = arith.constant 6 : index
    %177 = memref.load %arg6[%c6_47] : memref<16xf32, #tpu.memory_space<smem>>
    %178 = vector.broadcast %177 : f32 to vector<8x256xf32>
    %179 = arith.mulf %5, %178 : vector<8x256xf32>
    %180 = arith.addf %176, %179 : vector<8x256xf32>
    %c7_48 = arith.constant 7 : index
    %181 = memref.load %arg6[%c7_48] : memref<16xf32, #tpu.memory_space<smem>>
    %182 = vector.broadcast %181 : f32 to vector<8x256xf32>
    %183 = arith.mulf %7, %182 : vector<8x256xf32>
    %184 = arith.addf %180, %183 : vector<8x256xf32>
    %c1_49 = arith.constant 1 : index
    %185 = memref.load %arg7[%c1_49] : memref<4xf32, #tpu.memory_space<smem>>
    %186 = vector.broadcast %185 : f32 to vector<8x256xf32>
    %187 = arith.addf %184, %186 : vector<8x256xf32>
    %c8_50 = arith.constant 8 : index
    %188 = memref.load %arg6[%c8_50] : memref<16xf32, #tpu.memory_space<smem>>
    %189 = vector.broadcast %188 : f32 to vector<8x256xf32>
    %190 = arith.mulf %1, %189 : vector<8x256xf32>
    %c9_51 = arith.constant 9 : index
    %191 = memref.load %arg6[%c9_51] : memref<16xf32, #tpu.memory_space<smem>>
    %192 = vector.broadcast %191 : f32 to vector<8x256xf32>
    %193 = arith.mulf %3, %192 : vector<8x256xf32>
    %194 = arith.addf %190, %193 : vector<8x256xf32>
    %c10_52 = arith.constant 10 : index
    %195 = memref.load %arg6[%c10_52] : memref<16xf32, #tpu.memory_space<smem>>
    %196 = vector.broadcast %195 : f32 to vector<8x256xf32>
    %197 = arith.mulf %5, %196 : vector<8x256xf32>
    %198 = arith.addf %194, %197 : vector<8x256xf32>
    %c11_53 = arith.constant 11 : index
    %199 = memref.load %arg6[%c11_53] : memref<16xf32, #tpu.memory_space<smem>>
    %200 = vector.broadcast %199 : f32 to vector<8x256xf32>
    %201 = arith.mulf %7, %200 : vector<8x256xf32>
    %202 = arith.addf %198, %201 : vector<8x256xf32>
    %c2_54 = arith.constant 2 : index
    %203 = memref.load %arg7[%c2_54] : memref<4xf32, #tpu.memory_space<smem>>
    %204 = vector.broadcast %203 : f32 to vector<8x256xf32>
    %205 = arith.addf %202, %204 : vector<8x256xf32>
    %c12_55 = arith.constant 12 : index
    %206 = memref.load %arg6[%c12_55] : memref<16xf32, #tpu.memory_space<smem>>
    %207 = vector.broadcast %206 : f32 to vector<8x256xf32>
    %208 = arith.mulf %1, %207 : vector<8x256xf32>
    %c13_56 = arith.constant 13 : index
    %209 = memref.load %arg6[%c13_56] : memref<16xf32, #tpu.memory_space<smem>>
    %210 = vector.broadcast %209 : f32 to vector<8x256xf32>
    %211 = arith.mulf %3, %210 : vector<8x256xf32>
    %212 = arith.addf %208, %211 : vector<8x256xf32>
    %c14_57 = arith.constant 14 : index
    %213 = memref.load %arg6[%c14_57] : memref<16xf32, #tpu.memory_space<smem>>
    %214 = vector.broadcast %213 : f32 to vector<8x256xf32>
    %215 = arith.mulf %5, %214 : vector<8x256xf32>
    %216 = arith.addf %212, %215 : vector<8x256xf32>
    %c15_58 = arith.constant 15 : index
    %217 = memref.load %arg6[%c15_58] : memref<16xf32, #tpu.memory_space<smem>>
    %218 = vector.broadcast %217 : f32 to vector<8x256xf32>
    %219 = arith.mulf %7, %218 : vector<8x256xf32>
    %220 = arith.addf %216, %219 : vector<8x256xf32>
    %c3_59 = arith.constant 3 : index
    %221 = memref.load %arg7[%c3_59] : memref<4xf32, #tpu.memory_space<smem>>
    %222 = vector.broadcast %221 : f32 to vector<8x256xf32>
    %223 = arith.addf %220, %222 : vector<8x256xf32>
    %224 = vector.shape_cast %25 : vector<8x256xf32> to vector<8x1x256xf32>
    %225 = vector.shape_cast %97 : vector<8x256xf32> to vector<1x8x256xf32>
    %226 = vector.broadcast %224 : vector<8x1x256xf32> to vector<8x8x256xf32>
    %227 = vector.broadcast %225 : vector<1x8x256xf32> to vector<8x8x256xf32>
    %228 = arith.mulf %226, %227 : vector<8x8x256xf32>
    %229 = vector.shape_cast %43 : vector<8x256xf32> to vector<8x1x256xf32>
    %230 = vector.shape_cast %115 : vector<8x256xf32> to vector<1x8x256xf32>
    %231 = vector.broadcast %229 : vector<8x1x256xf32> to vector<8x8x256xf32>
    %232 = vector.broadcast %230 : vector<1x8x256xf32> to vector<8x8x256xf32>
    %233 = arith.mulf %231, %232 : vector<8x8x256xf32>
    %234 = arith.addf %228, %233 : vector<8x8x256xf32>
    %235 = vector.shape_cast %61 : vector<8x256xf32> to vector<8x1x256xf32>
    %236 = vector.shape_cast %133 : vector<8x256xf32> to vector<1x8x256xf32>
    %237 = vector.broadcast %235 : vector<8x1x256xf32> to vector<8x8x256xf32>
    %238 = vector.broadcast %236 : vector<1x8x256xf32> to vector<8x8x256xf32>
    %239 = arith.mulf %237, %238 : vector<8x8x256xf32>
    %240 = arith.addf %234, %239 : vector<8x8x256xf32>
    %241 = vector.shape_cast %79 : vector<8x256xf32> to vector<8x1x256xf32>
    %242 = vector.shape_cast %151 : vector<8x256xf32> to vector<1x8x256xf32>
    %243 = vector.broadcast %241 : vector<8x1x256xf32> to vector<8x8x256xf32>
    %244 = vector.broadcast %242 : vector<1x8x256xf32> to vector<8x8x256xf32>
    %245 = arith.mulf %243, %244 : vector<8x8x256xf32>
    %246 = arith.addf %240, %245 : vector<8x8x256xf32>
    %cst = arith.constant dense<0xFF800000> : vector<8x256xf32>
    %247 = vector.multi_reduction <maximumf>, %246, %cst [1] : vector<8x8x256xf32> to vector<8x256xf32>
    %248 = vector.shape_cast %247 : vector<8x256xf32> to vector<8x1x256xf32>
    %249 = vector.broadcast %248 : vector<8x1x256xf32> to vector<8x8x256xf32>
    %250 = arith.subf %246, %249 : vector<8x8x256xf32>
    %251 = math.exp %250 : vector<8x8x256xf32>
    %cst_60 = arith.constant dense<0.000000e+00> : vector<8x256xf32>
    %252 = vector.multi_reduction <add>, %251, %cst_60 [1] : vector<8x8x256xf32> to vector<8x256xf32>
    %cst_61 = arith.constant 1.000000e+00 : f32
    %253 = vector.broadcast %cst_61 : f32 to vector<8x256xf32>
    %254 = arith.divf %253, %252 : vector<8x256xf32>
    %255 = vector.shape_cast %169 : vector<8x256xf32> to vector<1x8x256xf32>
    %256 = vector.broadcast %255 : vector<1x8x256xf32> to vector<8x8x256xf32>
    %257 = arith.mulf %251, %256 : vector<8x8x256xf32>
    %cst_62 = arith.constant dense<0.000000e+00> : vector<8x256xf32>
    %258 = vector.multi_reduction <add>, %257, %cst_62 [1] : vector<8x8x256xf32> to vector<8x256xf32>
    %259 = arith.mulf %258, %254 : vector<8x256xf32>
    %260 = arith.addf %259, %1 : vector<8x256xf32>
    %c0_63 = arith.constant 0 : index
    %c0_64 = arith.constant 0 : index
    %c0_65 = arith.constant 0 : index
    %c0_66 = arith.constant 0 : index
    %261 = vector.load %arg9[%c0_63, %c0_64, %c0_65, %c0_66] : memref<1x8x4x256xf32, #tpu.memory_space<vmem>>, vector<1x8x1x256xf32>
    %262 = vector.shape_cast %261 : vector<1x8x1x256xf32> to vector<8x256xf32>
    %263 = vector.shape_cast %260 : vector<8x256xf32> to vector<1x8x1x256xf32>
    tpu.vector_store %arg9[%c0_63, %c0_64, %c0_65, %c0_66], %263 {strides = array<i32>} : memref<1x8x4x256xf32, #tpu.memory_space<vmem>>, vector<1x8x1x256xf32>,
    %264 = vector.shape_cast %187 : vector<8x256xf32> to vector<1x8x256xf32>
    %265 = vector.broadcast %264 : vector<1x8x256xf32> to vector<8x8x256xf32>
    %266 = arith.mulf %251, %265 : vector<8x8x256xf32>
    %cst_67 = arith.constant dense<0.000000e+00> : vector<8x256xf32>
    %267 = vector.multi_reduction <add>, %266, %cst_67 [1] : vector<8x8x256xf32> to vector<8x256xf32>
    %268 = arith.mulf %267, %254 : vector<8x256xf32>
    %269 = arith.addf %268, %3 : vector<8x256xf32>
    %c0_68 = arith.constant 0 : index
    %c0_69 = arith.constant 0 : index
    %c1_70 = arith.constant 1 : index
    %c0_71 = arith.constant 0 : index
    %270 = vector.load %arg9[%c0_68, %c0_69, %c1_70, %c0_71] : memref<1x8x4x256xf32, #tpu.memory_space<vmem>>, vector<1x8x1x256xf32>
    %271 = vector.shape_cast %270 : vector<1x8x1x256xf32> to vector<8x256xf32>
    %272 = vector.shape_cast %269 : vector<8x256xf32> to vector<1x8x1x256xf32>
    tpu.vector_store %arg9[%c0_68, %c0_69, %c1_70, %c0_71], %272 {strides = array<i32>} : memref<1x8x4x256xf32, #tpu.memory_space<vmem>>, vector<1x8x1x256xf32>,
    %273 = vector.shape_cast %205 : vector<8x256xf32> to vector<1x8x256xf32>
    %274 = vector.broadcast %273 : vector<1x8x256xf32> to vector<8x8x256xf32>
    %275 = arith.mulf %251, %274 : vector<8x8x256xf32>
    %cst_72 = arith.constant dense<0.000000e+00> : vector<8x256xf32>
    %276 = vector.multi_reduction <add>, %275, %cst_72 [1] : vector<8x8x256xf32> to vector<8x256xf32>
    %277 = arith.mulf %276, %254 : vector<8x256xf32>
    %278 = arith.addf %277, %5 : vector<8x256xf32>
    %c0_73 = arith.constant 0 : index
    %c0_74 = arith.constant 0 : index
    %c2_75 = arith.constant 2 : index
    %c0_76 = arith.constant 0 : index
    %279 = vector.load %arg9[%c0_73, %c0_74, %c2_75, %c0_76] : memref<1x8x4x256xf32, #tpu.memory_space<vmem>>, vector<1x8x1x256xf32>
    %280 = vector.shape_cast %279 : vector<1x8x1x256xf32> to vector<8x256xf32>
    %281 = vector.shape_cast %278 : vector<8x256xf32> to vector<1x8x1x256xf32>
    tpu.vector_store %arg9[%c0_73, %c0_74, %c2_75, %c0_76], %281 {strides = array<i32>} : memref<1x8x4x256xf32, #tpu.memory_space<vmem>>, vector<1x8x1x256xf32>,
    %282 = vector.shape_cast %223 : vector<8x256xf32> to vector<1x8x256xf32>
    %283 = vector.broadcast %282 : vector<1x8x256xf32> to vector<8x8x256xf32>
    %284 = arith.mulf %251, %283 : vector<8x8x256xf32>
    %cst_77 = arith.constant dense<0.000000e+00> : vector<8x256xf32>
    %285 = vector.multi_reduction <add>, %284, %cst_77 [1] : vector<8x8x256xf32> to vector<8x256xf32>
    %286 = arith.mulf %285, %254 : vector<8x256xf32>
    %287 = arith.addf %286, %7 : vector<8x256xf32>
    %c0_78 = arith.constant 0 : index
    %c0_79 = arith.constant 0 : index
    %c3_80 = arith.constant 3 : index
    %c0_81 = arith.constant 0 : index
    %288 = vector.load %arg9[%c0_78, %c0_79, %c3_80, %c0_81] : memref<1x8x4x256xf32, #tpu.memory_space<vmem>>, vector<1x8x1x256xf32>
    %289 = vector.shape_cast %288 : vector<1x8x1x256xf32> to vector<8x256xf32>
    %290 = vector.shape_cast %287 : vector<8x256xf32> to vector<1x8x1x256xf32>
    tpu.vector_store %arg9[%c0_78, %c0_79, %c3_80, %c0_81], %290 {strides = array<i32>} : memref<1x8x4x256xf32, #tpu.memory_space<vmem>>, vector<1x8x1x256xf32>,
    return
  }
  func.func @transform_0(%arg0: i32, %arg1: i32) -> i32 {
    %c0_i32 = arith.constant 0 : i32
    %c0_i32_0 = arith.constant 0 : i32
    return %c0_i32 : i32
  }
  func.func @transform_1(%arg0: i32, %arg1: i32) -> i32 {
    %c0_i32 = arith.constant 0 : i32
    %c0_i32_0 = arith.constant 0 : i32
    return %c0_i32 : i32
  }
  func.func @transform_2(%arg0: i32, %arg1: i32) -> i32 {
    %c0_i32 = arith.constant 0 : i32
    %c0_i32_0 = arith.constant 0 : i32
    return %c0_i32 : i32
  }
  func.func @transform_3(%arg0: i32, %arg1: i32) -> i32 {
    %c0_i32 = arith.constant 0 : i32
    %c0_i32_0 = arith.constant 0 : i32
    return %c0_i32 : i32
  }
  func.func @transform_4(%arg0: i32, %arg1: i32) -> i32 {
    %c0_i32 = arith.constant 0 : i32
    %c0_i32_0 = arith.constant 0 : i32
    return %c0_i32 : i32
  }
  func.func @transform_5(%arg0: i32, %arg1: i32) -> i32 {
    %c0_i32 = arith.constant 0 : i32
    %c0_i32_0 = arith.constant 0 : i32
    return %c0_i32 : i32
  }
  func.func @transform_6(%arg0: i32, %arg1: i32) -> (i32, i32, i32, i32) {
    %c0_i32 = arith.constant 0 : i32
    %c0_i32_0 = arith.constant 0 : i32
    %c0_i32_1 = arith.constant 0 : i32
    return %arg0, %c0_i32, %c0_i32_0, %arg1 : i32, i32, i32, i32
  }
  func.func @transform_7(%arg0: i32, %arg1: i32) -> (i32, i32, i32, i32) {
    %c0_i32 = arith.constant 0 : i32
    %c0_i32_0 = arith.constant 0 : i32
    %c0_i32_1 = arith.constant 0 : i32
    return %arg0, %c0_i32, %c0_i32_0, %arg1 : i32, i32, i32, i32
  }
}

</mosaic_0001>

<llo_original>
// kernel: tpu_custom_call.1
$region0: #{tpu_custom_call.1}
  #allocation0 [shape = 'u32[]', space=smem, size = 0x4, offset = 0x4, fixed_abs, tag = 'smem constant byte address 0x4 - core index']
  #allocation1 [shape = 'u32[144,128]{1,0:T(1,128)}', space=vmem, size = 0x12000, scoped, tag = 'internal scratch']
  %s0 = inlined_call_operand.hbm [shape: f32[16], index: 0, kind: input, shape index: {}]
  %s1 = inlined_call_operand.vmem [shape: f32[4], index: 1, kind: input, shape index: {}]
  %s2 = inlined_call_operand.vmem [shape: f32[16], index: 2, kind: input, shape index: {}]
  %s3 = inlined_call_operand.vmem [shape: f32[4], index: 3, kind: input, shape index: {}]
  %s4 = inlined_call_operand.vmem [shape: f32[16], index: 4, kind: input, shape index: {}]
  %s5 = inlined_call_operand.vmem [shape: f32[4], index: 5, kind: input, shape index: {}]
  %s6 = inlined_call_operand.hbm [shape: f32[2,8,4,256], index: 6, kind: input, shape index: {}]
  %s7 = inlined_call_operand.hbm [shape: f32[2,8,4,256], index: 7, kind: output, shape index: {}]
  %s8 = sld [smem:[#allocation0]]
  $region89: #{tpu_custom_call.1} parent=0
    _
  %s10 = ssub.s32 1, %s8
  %s11 = scalar_select 0, %s10, %s8
  $region1: #{tpu_custom_call.1} parent=0
    #allocation2 [shape = 'u8[512]{0}', space=smem, size = 0x200, scoped, tag = 'input window, operand 0, single buffered']
    #allocation3 [shape = 's32[2]{0}', space=sflag, size = 0x8, scoped, tag = 'scoped memory for tpu_custom_call.1']
    #allocation4 [shape = 's32[2]{0}', space=sflag, size = 0x8, scoped, tag = 'scoped memory for tpu_custom_call.1']
    #allocation5 [shape = 's32[2]{0}', space=sflag, size = 0x8, scoped, tag = 'scoped memory for tpu_custom_call.1']
    #allocation6 [shape = 's32[2]{0}', space=sflag, size = 0x8, scoped, tag = 'scoped memory for tpu_custom_call.1']
    #allocation7 [shape = 'u8[512]{0}', space=smem, size = 0x200, scoped, tag = 'input window, operand 1, single buffered']
    #allocation8 [shape = 'u8[512]{0}', space=smem, size = 0x200, scoped, tag = 'input window, operand 2, single buffered']
    #allocation9 [shape = 's32[1]{0}', space=sflag, size = 0x4, scoped, tag = 'scoped memory for tpu_custom_call.1']
    #allocation10 [shape = 'u8[512]{0}', space=smem, size = 0x200, scoped, tag = 'input window, operand 3, single buffered']
    #allocation11 [shape = 'u8[512]{0}', space=smem, size = 0x200, scoped, tag = 'input window, operand 4, single buffered']
    #allocation12 [shape = 's32[1]{0}', space=sflag, size = 0x4, scoped, tag = 'scoped memory for tpu_custom_call.1']
    #allocation13 [shape = 'u8[512]{0}', space=smem, size = 0x200, scoped, tag = 'input window, operand 5, single buffered']
    #allocation14 [shape = 'u8[65536]{0}', space=vmem, size = 0x10000, scoped, tag = 'input window, operand 6']
    #allocation15 [shape = 'u8[65536]{0}', space=vmem, size = 0x10000, scoped, tag = 'output window, operand 0']
    %12 = vsyncpa [#allocation5], 0
    %13 = vsyncpa [#allocation6], 0
    %14 = vsyncpa [#allocation9], 0
    %15 = vsyncpa [#allocation12], 0
    %16 = vsyncpa [#allocation3], 0
    %s17 = scalar_lea.sflag [#allocation3], 1
    %18 = vsyncpa %s17, 0
    %19 = vsyncpa [#allocation4], 0
    %s20 = scalar_lea.sflag [#allocation4], 1
    %21 = vsyncpa %s20, 0
    loop: start=0, step=1, limit=4
    $region2: #{tpu_custom_call.1} parent=1 // loop_pre_header
      _
    $region3: #{tpu_custom_call.1} parent=1 // loop_header
      %s23 = sphi 0, %s27
      %p24 = scmp.ge.s32.totalorder %s23, 4
      %s30 = sphi 0, %s42
      %s31 = sphi 0, %s38
      %s32 = sphi 0, %s30
      %s33 = sphi 0, %s31
      %s34 = sphi 0, %s32
      %s35 = sphi 0, %s33
      %s43 = sphi 0, %s43
      %s45 = sphi 0, %s43
      %s46 = sphi 0, %s45
      %s60 = sphi 0, %s46
      %s64 = sphi 0, %s64
      %s66 = sphi 0, %s64
      %s67 = sphi 0, %s66
      %s81 = sphi 0, %s67
      %s85 = sphi 0, %s85
      %s87 = sphi 0, %s85
      %s88 = sphi 0, %s87
      %s102 = sphi 0, %s88
      %s106 = sphi 0, %s106
      %s108 = sphi 0, %s106
      %s109 = sphi 0, %s108
      %s123 = sphi 0, %s109
      %s127 = sphi 0, %s127
      %s129 = sphi 0, %s127
      %s130 = sphi 0, %s129
      %s144 = sphi 0, %s130
      %s148 = sphi 0, %s148
      %s150 = sphi 0, %s148
      %s151 = sphi 0, %s150
      %s165 = sphi 0, %s151
      %s173 = sphi 0, %s175
      %s176 = sphi 0, %s173
      %s177 = sphi 0, %s176
      %s193 = sphi 0, %s177
      %s201 = sphi 0, %s203
      %s204 = sphi 0, %s201
      %s205 = sphi 0, %s204
      %s221 = sphi 0, %s205
    $region4: #{tpu_custom_call.1} parent=1 // loop_header_branch
      %26 = sbr.rel (%p24) target = $region8
    $region5: #{tpu_custom_call.1} parent=1 // loop_body
      %s28 = ssub.s32 %s23, 1
      %s29 = ssub.s32 %s23, 2
      %s36 = sadd.s32 1, %s31
      %p37 = scmp.ge.s32.totalorder %s36, 1
      %s38 = scalar_select %p37, 0, %s36
      %s39 = sadd.s32 1, %s30
      %s40 = scalar_select %p37, %s39, %s30
      %p41 = scmp.ge.s32.totalorder %s40, 2
      %s42 = scalar_select %p41, 0, %s40
      %s44 = sadd.s32 %s43, 1
      %p47 = scmp.eq.s32.totalorder %s23, 1
      %p48 = scmp.ne.s32.totalorder %s43, %s45
      %p49 = scmp.eq.s32.totalorder %s23, 0
      %p50 = por %p48, %p49
      %p51 = scmp.ne.s32.totalorder %s43, %s45
      %p52 = scmp.eq.s32.totalorder %s28, 1
      %p53 = por %p51, %p52
      %p54 = scmp.ne.s32.totalorder %s45, %s46
      %p55 = scmp.eq.s32.totalorder %s28, 0
      %p56 = por %p54, %p55
      %p57 = scmp.ne.s32.totalorder %s45, %s46
      %p58 = scmp.eq.s32.totalorder %s29, 1
      %p59 = por %p57, %p58
      %p61 = scmp.ne.s32.totalorder %s46, %s60
      %p62 = scmp.eq.s32.totalorder %s29, 0
      %p63 = por %p61, %p62
      %s65 = sadd.s32 %s64, 1
      %p68 = scmp.eq.s32.totalorder %s23, 1
      %p69 = scmp.ne.s32.totalorder %s64, %s66
      %p70 = scmp.eq.s32.totalorder %s23, 0
      %p71 = por %p69, %p70
      %p72 = scmp.ne.s32.totalorder %s64, %s66
      %p73 = scmp.eq.s32.totalorder %s28, 1
      %p74 = por %p72, %p73
      %p75 = scmp.ne.s32.totalorder %s66, %s67
      %p76 = scmp.eq.s32.totalorder %s28, 0
      %p77 = por %p75, %p76
      %p78 = scmp.ne.s32.totalorder %s66, %s67
      %p79 = scmp.eq.s32.totalorder %s29, 1
      %p80 = por %p78, %p79
      %p82 = scmp.ne.s32.totalorder %s67, %s81
      %p83 = scmp.eq.s32.totalorder %s29, 0
      %p84 = por %p82, %p83
      %s86 = sadd.s32 %s85, 1
      %p89 = scmp.eq.s32.totalorder %s23, 1
      %p90 = scmp.ne.s32.totalorder %s85, %s87
      %p91 = scmp.eq.s32.totalorder %s23, 0
      %p92 = por %p90, %p91
      %p93 = scmp.ne.s32.totalorder %s85, %s87
      %p94 = scmp.eq.s32.totalorder %s28, 1
      %p95 = por %p93, %p94
      %p96 = scmp.ne.s32.totalorder %s87, %s88
      %p97 = scmp.eq.s32.totalorder %s28, 0
      %p98 = por %p96, %p97
      %p99 = scmp.ne.s32.totalorder %s87, %s88
      %p100 = scmp.eq.s32.totalorder %s29, 1
      %p101 = por %p99, %p100
      %p103 = scmp.ne.s32.totalorder %s88, %s102
      %p104 = scmp.eq.s32.totalorder %s29, 0
      %p105 = por %p103, %p104
      %s107 = sadd.s32 %s106, 1
      %p110 = scmp.eq.s32.totalorder %s23, 1
      %p111 = scmp.ne.s32.totalorder %s106, %s108
      %p112 = scmp.eq.s32.totalorder %s23, 0
      %p113 = por %p111, %p112
      %p114 = scmp.ne.s32.totalorder %s106, %s108
      %p115 = scmp.eq.s32.totalorder %s28, 1
      %p116 = por %p114, %p115
      %p117 = scmp.ne.s32.totalorder %s108, %s109
      %p118 = scmp.eq.s32.totalorder %s28, 0
      %p119 = por %p117, %p118
      %p120 = scmp.ne.s32.totalorder %s108, %s109
      %p121 = scmp.eq.s32.totalorder %s29, 1
      %p122 = por %p120, %p121
      %p124 = scmp.ne.s32.totalorder %s109, %s123
      %p125 = scmp.eq.s32.totalorder %s29, 0
      %p126 = por %p124, %p125
      %s128 = sadd.s32 %s127, 1
      %p131 = scmp.eq.s32.totalorder %s23, 1
      %p132 = scmp.ne.s32.totalorder %s127, %s129
      %p133 = scmp.eq.s32.totalorder %s23, 0
      %p134 = por %p132, %p133
      %p135 = scmp.ne.s32.totalorder %s127, %s129
      %p136 = scmp.eq.s32.totalorder %s28, 1
      %p137 = por %p135, %p136
      %p138 = scmp.ne.s32.totalorder %s129, %s130
      %p139 = scmp.eq.s32.totalorder %s28, 0
      %p140 = por %p138, %p139
      %p141 = scmp.ne.s32.totalorder %s129, %s130
      %p142 = scmp.eq.s32.totalorder %s29, 1
      %p143 = por %p141, %p142
      %p145 = scmp.ne.s32.totalorder %s130, %s144
      %p146 = scmp.eq.s32.totalorder %s29, 0
      %p147 = por %p145, %p146
      %s149 = sadd.s32 %s148, 1
      %p152 = scmp.eq.s32.totalorder %s23, 1
      %p153 = scmp.ne.s32.totalorder %s148, %s150
      %p154 = scmp.eq.s32.totalorder %s23, 0
      %p155 = por %p153, %p154
      %p156 = scmp.ne.s32.totalorder %s148, %s150
      %p157 = scmp.eq.s32.totalorder %s28, 1
      %p158 = por %p156, %p157
      %p159 = scmp.ne.s32.totalorder %s150, %s151
      %p160 = scmp.eq.s32.totalorder %s28, 0
      %p161 = por %p159, %p160
      %p162 = scmp.ne.s32.totalorder %s150, %s151
      %p163 = scmp.eq.s32.totalorder %s29, 1
      %p164 = por %p162, %p163
      %p166 = scmp.ne.s32.totalorder %s151, %s165
      %p167 = scmp.eq.s32.totalorder %s29, 0
      %p168 = por %p166, %p167
      %s169 = ssub.s32 %s30, %s42
      %s170 = ssub.s32 %s31, %s38
      %s171 = sor.u32 %s169, %s170
      %p172 = scmp.eq.s32.totalorder %s171, 0
      %s174 = sadd.s32 %s173, 1
      %s175 = scalar_select %p172, %s173, %s174
      %p178 = pneg %p172
      %p179 = scmp.eq.s32.totalorder %s23, 1
      %p180 = por %p178, %p179
      %p181 = scmp.ne.s32.totalorder %s173, %s176
      %p182 = scmp.eq.s32.totalorder %s23, 0
      %p183 = por %p181, %p182
      %p184 = scmp.ne.s32.totalorder %s173, %s176
      %p185 = scmp.eq.s32.totalorder %s28, 1
      %p186 = por %p184, %p185
      %p187 = scmp.ne.s32.totalorder %s176, %s177
      %p188 = scmp.eq.s32.totalorder %s28, 0
      %p189 = por %p187, %p188
      %p190 = scmp.ne.s32.totalorder %s176, %s177
      %p191 = scmp.eq.s32.totalorder %s29, 1
      %p192 = por %p190, %p191
      %p194 = scmp.ne.s32.totalorder %s177, %s193
      %p195 = scmp.eq.s32.totalorder %s29, 0
      %p196 = por %p194, %p195
      %s197 = ssub.s32 %s30, %s42
      %s198 = ssub.s32 %s31, %s38
      %s199 = sor.u32 %s197, %s198
      %p200 = scmp.eq.s32.totalorder %s199, 0
      %s202 = sadd.s32 %s201, 1
      %s203 = scalar_select %p200, %s201, %s202
      %p206 = pneg %p200
      %p207 = scmp.eq.s32.totalorder %s23, 1
      %p208 = por %p206, %p207
      %p209 = scmp.ne.s32.totalorder %s201, %s204
      %p210 = scmp.eq.s32.totalorder %s23, 0
      %p211 = por %p209, %p210
      %p212 = scmp.ne.s32.totalorder %s201, %s204
      %p213 = scmp.eq.s32.totalorder %s28, 1
      %p214 = por %p212, %p213
      %p215 = scmp.ne.s32.totalorder %s204, %s205
      %p216 = scmp.eq.s32.totalorder %s28, 0
      %p217 = por %p215, %p216
      %p218 = scmp.ne.s32.totalorder %s204, %s205
      %p219 = scmp.eq.s32.totalorder %s29, 1
      %p220 = por %p218, %p219
      %p222 = scmp.ne.s32.totalorder %s205, %s221
      %p223 = scmp.eq.s32.totalorder %s29, 0
      %p224 = por %p222, %p223
      %p225 = scmp.le.s32.totalorder 1, %s23
      %p226 = scmp.lt.s32.totalorder %s23, 3
      %p227 = pnand %p225, %p226
      %p228 = pneg %p227
      // Predicated region
      $region9: #{tpu_custom_call.1} parent=5 // pred_check
        _
      $region10: #{tpu_custom_call.1} parent=5 // pred_check_branch
        %230 = sbr.rel (%p227) target = $region12
      $region11: #{tpu_custom_call.1} parent=5 // pred_region
        %s231 = ssub.s32 %s23, 1
        // Predicated region
        $region13: #{tpu_custom_call.1} parent=11 // pred_check
          %p232 = pneg %p56
        $region14: #{tpu_custom_call.1} parent=11 // pred_check_branch
          %234 = sbr.rel (%p232) target = $region16
        $region15: #{tpu_custom_call.1} parent=11 // pred_region
          %s236 = ssub.s32 16, 16
          %237 = vsyncadd [#allocation5], %s236
          %240 = dma.hbm_to_smem %s0, 16, [#allocation2], [#allocation5]
        $region16: #{tpu_custom_call.1} parent=11 // pred_fallthru
          _
        // Predicated region
        $region17: #{tpu_custom_call.1} parent=11 // pred_check
          %p241 = pneg %p77
        $region18: #{tpu_custom_call.1} parent=11 // pred_check_branch
          %243 = sbr.rel (%p241) target = $region20
        $region19: #{tpu_custom_call.1} parent=11 // pred_region
          %s245 = ssub.s32 16, 16
          %246 = vsyncadd [#allocation6], %s245
          %s248 = sshll.u32 %s1, 4
          %s249 = int_to_ptr.vmem [resolvable:$true] %s248
          %251 = dma.vmem_to_smem %s249, 16, [#allocation7], [#allocation6]
        $region20: #{tpu_custom_call.1} parent=11 // pred_fallthru
          _
        // Predicated region
        $region21: #{tpu_custom_call.1} parent=11 // pred_check
          %p252 = pneg %p98
        $region22: #{tpu_custom_call.1} parent=11 // pred_check_branch
          %254 = sbr.rel (%p252) target = $region24
        $region23: #{tpu_custom_call.1} parent=11 // pred_region
          %s256 = ssub.s32 16, 16
          %257 = vsyncadd [#allocation9], %s256
          %s259 = sshll.u32 %s2, 4
          %s260 = int_to_ptr.vmem [resolvable:$true] %s259
          %262 = dma.vmem_to_smem %s260, 16, [#allocation8], [#allocation9]
        $region24: #{tpu_custom_call.1} parent=11 // pred_fallthru
          _
        // Predicated region
        $region25: #{tpu_custom_call.1} parent=11 // pred_check
          %p263 = pneg %p119
        $region26: #{tpu_custom_call.1} parent=11 // pred_check_branch
          %265 = sbr.rel (%p263) target = $region28
        $region27: #{tpu_custom_call.1} parent=11 // pred_region
          %s267 = ssub.s32 16, 16
          %268 = vsyncadd [#allocation9], %s267
          %s270 = sshll.u32 %s3, 4
          %s271 = int_to_ptr.vmem [resolvable:$true] %s270
          %273 = dma.vmem_to_smem %s271, 16, [#allocation10], [#allocation9]
        $region28: #{tpu_custom_call.1} parent=11 // pred_fallthru
          _
        // Predicated region
        $region29: #{tpu_custom_call.1} parent=11 // pred_check
          %p274 = pneg %p140
        $region30: #{tpu_custom_call.1} parent=11 // pred_check_branch
          %276 = sbr.rel (%p274) target = $region32
        $region31: #{tpu_custom_call.1} parent=11 // pred_region
          %s278 = ssub.s32 16, 16
          %279 = vsyncadd [#allocation12], %s278
          %s281 = sshll.u32 %s4, 4
          %s282 = int_to_ptr.vmem [resolvable:$true] %s281
          %284 = dma.vmem_to_smem %s282, 16, [#allocation11], [#allocation12]
        $region32: #{tpu_custom_call.1} parent=11 // pred_fallthru
          _
        // Predicated region
        $region33: #{tpu_custom_call.1} parent=11 // pred_check
          %p285 = pneg %p161
        $region34: #{tpu_custom_call.1} parent=11 // pred_check_branch
          %287 = sbr.rel (%p285) target = $region36
        $region35: #{tpu_custom_call.1} parent=11 // pred_region
          %s289 = ssub.s32 16, 16
          %290 = vsyncadd [#allocation12], %s289
          %s292 = sshll.u32 %s5, 4
          %s293 = int_to_ptr.vmem [resolvable:$true] %s292
          %295 = dma.vmem_to_smem %s293, 16, [#allocation13], [#allocation12]
        $region36: #{tpu_custom_call.1} parent=11 // pred_fallthru
          _
      $region12: #{tpu_custom_call.1} parent=5 // pred_fallthru
        _
      %p296 = scmp.lt.s32.totalorder %s23, 2
      // Predicated region
      $region37: #{tpu_custom_call.1} parent=5 // pred_check
        %p297 = pneg %p296
      $region38: #{tpu_custom_call.1} parent=5 // pred_check_branch
        %299 = sbr.rel (%p297) target = $region40
      $region39: #{tpu_custom_call.1} parent=5 // pred_region
        // Predicated region
        $region41: #{tpu_custom_call.1} parent=39 // pred_check
          %p300 = pneg %p183
        $region42: #{tpu_custom_call.1} parent=39 // pred_check_branch
          %302 = sbr.rel (%p300) target = $region44
        $region43: #{tpu_custom_call.1} parent=39 // pred_region
          %s303 = sand.u32 %s173, 1
          %s304 = scalar_lea.sflag [#allocation3], %s303
          %s305 = sand.u32 %s173, 1
          %s306 = smul.addr %s305, 64
          %s307 = scalar_lea.vmem [#allocation14], %s306
          %s308 = smul.u32 2, %s31
          %s310 = ssub.s32 1024, 1024
          %311 = vsyncadd %s304, %s310
          %s312 = smul.addr %s30, 16
          %s313 = sadd.s32 %s308, %s312
          %s314 = smul.addr %s313, 64
          %s315 = scalar_lea.hbm %s6, %s314
          %s316 = sshll.u32 %s307, 4
          %s317 = int_to_ptr.vmem [resolvable:$true] %s316
          %322 = dma.hbm_to_vmem [thread:$0]  %s315, 1024, %s317, %s304, 128, 128, 8
        $region44: #{tpu_custom_call.1} parent=39 // pred_fallthru
          _
      $region40: #{tpu_custom_call.1} parent=5 // pred_fallthru
        _
      %p323 = scmp.le.s32.totalorder 1, %s23
      %p324 = scmp.lt.s32.totalorder %s23, 3
      %p325 = pnand %p323, %p324
      %p326 = pneg %p325
      // Predicated region
      $region45: #{tpu_custom_call.1} parent=5 // pred_check
        _
      $region46: #{tpu_custom_call.1} parent=5 // pred_check_branch
        %328 = sbr.rel (%p325) target = $region48
      $region47: #{tpu_custom_call.1} parent=5 // pred_region
        %s329 = ssub.s32 %s23, 1
        // Predicated region
        $region49: #{tpu_custom_call.1} parent=47 // pred_check
          %p330 = pneg %p56
        $region50: #{tpu_custom_call.1} parent=47 // pred_check_branch
          %332 = sbr.rel (%p330) target = $region52
        $region51: #{tpu_custom_call.1} parent=47 // pred_region
          %333 = dma.done [#allocation5], 16
        $region52: #{tpu_custom_call.1} parent=47 // pred_fallthru
          _
        // Predicated region
        $region53: #{tpu_custom_call.1} parent=47 // pred_check
          %p334 = pneg %p77
        $region54: #{tpu_custom_call.1} parent=47 // pred_check_branch
          %336 = sbr.rel (%p334) target = $region56
        $region55: #{tpu_custom_call.1} parent=47 // pred_region
          %337 = dma.done [#allocation6], 16
        $region56: #{tpu_custom_call.1} parent=47 // pred_fallthru
          _
        // Predicated region
        $region57: #{tpu_custom_call.1} parent=47 // pred_check
          %p338 = pneg %p98
        $region58: #{tpu_custom_call.1} parent=47 // pred_check_branch
          %340 = sbr.rel (%p338) target = $region60
        $region59: #{tpu_custom_call.1} parent=47 // pred_region
          %341 = dma.done [#allocation9], 16
        $region60: #{tpu_custom_call.1} parent=47 // pred_fallthru
          _
        // Predicated region
        $region61: #{tpu_custom_call.1} parent=47 // pred_check
          %p342 = pneg %p119
        $region62: #{tpu_custom_call.1} parent=47 // pred_check_branch
          %344 = sbr.rel (%p342) target = $region64
        $region63: #{tpu_custom_call.1} parent=47 // pred_region
          %345 = dma.done [#allocation9], 16
        $region64: #{tpu_custom_call.1} parent=47 // pred_fallthru
          _
        // Predicated region
        $region65: #{tpu_custom_call.1} parent=47 // pred_check
          %p346 = pneg %p140
        $region66: #{tpu_custom_call.1} parent=47 // pred_check_branch
          %348 = sbr.rel (%p346) target = $region68
        $region67: #{tpu_custom_call.1} parent=47 // pred_region
          %349 = dma.done [#allocation12], 16
        $region68: #{tpu_custom_call.1} parent=47 // pred_fallthru
          _
        // Predicated region
        $region69: #{tpu_custom_call.1} parent=47 // pred_check
          %p350 = pneg %p161
        $region70: #{tpu_custom_call.1} parent=47 // pred_check_branch
          %352 = sbr.rel (%p350) target = $region72
        $region71: #{tpu_custom_call.1} parent=47 // pred_region
          %353 = dma.done [#allocation12], 16
        $region72: #{tpu_custom_call.1} parent=47 // pred_fallthru
          _
        %s354 = sand.u32 %s176, 1
        %s355 = scalar_lea.sflag [#allocation3], %s354
        %s356 = sand.u32 %s176, 1
        %s357 = smul.addr %s356, 64
        %s358 = scalar_lea.vmem [#allocation14], %s357
        // Predicated region
        $region73: #{tpu_custom_call.1} parent=47 // pred_check
          %p359 = pneg %p189
        $region74: #{tpu_custom_call.1} parent=47 // pred_check_branch
          %361 = sbr.rel (%p359) target = $region76
        $region75: #{tpu_custom_call.1} parent=47 // pred_region
          %362 = dma.done %s355, 1024
        $region76: #{tpu_custom_call.1} parent=47 // pred_fallthru
          _
        %363 = sfence
        %p364 = pneg %p56
        %p365 = pneg %p53
        %p366 = pneg %p77
        %p367 = pneg %p74
        %p368 = pneg %p98
        %p369 = pneg %p95
        %p370 = pneg %p119
        %p371 = pneg %p116
        %p372 = pneg %p140
        %p373 = pneg %p137
        %p374 = pneg %p161
        %p375 = pneg %p158
        %s376 = sand.u32 %s176, 1
        %s377 = scalar_lea.sflag [#allocation3], %s376
        %s378 = sand.u32 %s176, 1
        %s379 = smul.addr %s378, 64
        %s380 = scalar_lea.vmem [#allocation14], %s379
        %p381 = pneg %p189
        %p382 = pneg %p186
        %p383 = pneg %p217
        %p384 = pneg %p214
        %s385 = sand.u32 %s204, 1
        %s386 = scalar_lea.sflag [#allocation4], %s385
        %s387 = sand.u32 %s204, 1
        %s388 = smul.addr %s387, 64
        %s389 = scalar_lea.vmem [#allocation15], %s388
        %s390 = smul.u32 2, %s33
        %s391 = smul.u32 2, %s33
        %v392 = vld [vmem:[%s358] ss:$4 sm:$0x3]
        %s393 = scalar_lea.vmem %s358, 8 [#allocation14]
        %v394 = vld [vmem:[%s393] ss:$4 sm:$0x3]
        %s395 = scalar_lea.vmem %s358, 16 [#allocation14]
        %v396 = vld [vmem:[%s395] ss:$4 sm:$0x3]
        %s397 = scalar_lea.vmem %s358, 24 [#allocation14]
        %v398 = vld [vmem:[%s397] ss:$4 sm:$0x3]
        %s399 = scalar_lea.vmem %s358, 32 [#allocation14]
        %v400 = vld [vmem:[%s399] ss:$4 sm:$0x3]
        %s401 = scalar_lea.vmem %s358, 40 [#allocation14]
        %v402 = vld [vmem:[%s401] ss:$4 sm:$0x3]
        %s403 = scalar_lea.vmem %s358, 48 [#allocation14]
        %v404 = vld [vmem:[%s403] ss:$4 sm:$0x3]
        %s405 = scalar_lea.vmem %s358, 56 [#allocation14]
        %v406 = vld [vmem:[%s405] ss:$4 sm:$0x3]
        %s407 = scalar_lea.vmem %s358, 1 [#allocation14]
        %v408 = vld [vmem:[%s407] ss:$4 sm:$0x3]
        %s409 = scalar_lea.vmem %s358, 9 [#allocation14]
        %v410 = vld [vmem:[%s409] ss:$4 sm:$0x3]
        %s411 = scalar_lea.vmem %s358, 17 [#allocation14]
        %v412 = vld [vmem:[%s411] ss:$4 sm:$0x3]
        %s413 = scalar_lea.vmem %s358, 25 [#allocation14]
        %v414 = vld [vmem:[%s413] ss:$4 sm:$0x3]
        %s415 = scalar_lea.vmem %s358, 33 [#allocation14]
        %v416 = vld [vmem:[%s415] ss:$4 sm:$0x3]
        %s417 = scalar_lea.vmem %s358, 41 [#allocation14]
        %v418 = vld [vmem:[%s417] ss:$4 sm:$0x3]
        %s419 = scalar_lea.vmem %s358, 49 [#allocation14]
        %v420 = vld [vmem:[%s419] ss:$4 sm:$0x3]
        %s421 = scalar_lea.vmem %s358, 57 [#allocation14]
        %v422 = vld [vmem:[%s421] ss:$4 sm:$0x3]
        %s423 = scalar_lea.vmem %s358, 2 [#allocation14]
        %v424 = vld [vmem:[%s423] ss:$4 sm:$0x3]
        %s425 = scalar_lea.vmem %s358, 10 [#allocation14]
        %v426 = vld [vmem:[%s425] ss:$4 sm:$0x3]
        %s427 = scalar_lea.vmem %s358, 18 [#allocation14]
        %v428 = vld [vmem:[%s427] ss:$4 sm:$0x3]
        %s429 = scalar_lea.vmem %s358, 26 [#allocation14]
        %v430 = vld [vmem:[%s429] ss:$4 sm:$0x3]
        %s431 = scalar_lea.vmem %s358, 34 [#allocation14]
        %v432 = vld [vmem:[%s431] ss:$4 sm:$0x3]
        %s433 = scalar_lea.vmem %s358, 42 [#allocation14]
        %v434 = vld [vmem:[%s433] ss:$4 sm:$0x3]
        %s435 = scalar_lea.vmem %s358, 50 [#allocation14]
        %v436 = vld [vmem:[%s435] ss:$4 sm:$0x3]
        %s437 = scalar_lea.vmem %s358, 58 [#allocation14]
        %v438 = vld [vmem:[%s437] ss:$4 sm:$0x3]
        %s439 = scalar_lea.vmem %s358, 3 [#allocation14]
        %v440 = vld [vmem:[%s439] ss:$4 sm:$0x3]
        %s441 = scalar_lea.vmem %s358, 11 [#allocation14]
        %v442 = vld [vmem:[%s441] ss:$4 sm:$0x3]
        %s443 = scalar_lea.vmem %s358, 19 [#allocation14]
        %v444 = vld [vmem:[%s443] ss:$4 sm:$0x3]
        %s445 = scalar_lea.vmem %s358, 27 [#allocation14]
        %v446 = vld [vmem:[%s445] ss:$4 sm:$0x3]
        %s447 = scalar_lea.vmem %s358, 35 [#allocation14]
        %v448 = vld [vmem:[%s447] ss:$4 sm:$0x3]
        %s449 = scalar_lea.vmem %s358, 43 [#allocation14]
        %v450 = vld [vmem:[%s449] ss:$4 sm:$0x3]
        %s451 = scalar_lea.vmem %s358, 51 [#allocation14]
        %v452 = vld [vmem:[%s451] ss:$4 sm:$0x3]
        %s453 = scalar_lea.vmem %s358, 59 [#allocation14]
        %v454 = vld [vmem:[%s453] ss:$4 sm:$0x3]
        %s455 = sld [smem:[#allocation2]]
        %v456 = vstv %s455
        %v457 = vmul.f32 %v392, %v456
        %v458 = vmul.f32 %v394, %v456
        %v459 = vmul.f32 %v396, %v456
        %v460 = vmul.f32 %v398, %v456
        %v461 = vmul.f32 %v400, %v456
        %v462 = vmul.f32 %v402, %v456
        %v463 = vmul.f32 %v404, %v456
        %v464 = vmul.f32 %v406, %v456
        %s465 = sld [smem:[#allocation2 + $0x1]]
        %v466 = vstv %s465
        %v467 = vmul.f32 %v408, %v466
        %v468 = vmul.f32 %v410, %v466
        %v469 = vmul.f32 %v412, %v466
        %v470 = vmul.f32 %v414, %v466
        %v471 = vmul.f32 %v416, %v466
        %v472 = vmul.f32 %v418, %v466
        %v473 = vmul.f32 %v420, %v466
        %v474 = vmul.f32 %v422, %v466
        %v475 = vadd.f32 %v457, %v467
        %v476 = vadd.f32 %v458, %v468
        %v477 = vadd.f32 %v459, %v469
        %v478 = vadd.f32 %v460, %v470
        %v479 = vadd.f32 %v461, %v471
        %v480 = vadd.f32 %v462, %v472
        %v481 = vadd.f32 %v463, %v473
        %v482 = vadd.f32 %v464, %v474
        %s483 = sld [smem:[#allocation2 + $0x2]]
        %v484 = vstv %s483
        %v485 = vmul.f32 %v424, %v484
        %v486 = vmul.f32 %v426, %v484
        %v487 = vmul.f32 %v428, %v484
        %v488 = vmul.f32 %v430, %v484
        %v489 = vmul.f32 %v432, %v484
        %v490 = vmul.f32 %v434, %v484
        %v491 = vmul.f32 %v436, %v484
        %v492 = vmul.f32 %v438, %v484
        %v493 = vadd.f32 %v475, %v485
        %v494 = vadd.f32 %v476, %v486
        %v495 = vadd.f32 %v477, %v487
        %v496 = vadd.f32 %v478, %v488
        %v497 = vadd.f32 %v479, %v489
        %v498 = vadd.f32 %v480, %v490
        %v499 = vadd.f32 %v481, %v491
        %v500 = vadd.f32 %v482, %v492
        %s501 = sld [smem:[#allocation2 + $0x3]]
        %v502 = vstv %s501
        %v503 = vmul.f32 %v440, %v502
        %v504 = vmul.f32 %v442, %v502
        %v505 = vmul.f32 %v444, %v502
        %v506 = vmul.f32 %v446, %v502
        %v507 = vmul.f32 %v448, %v502
        %v508 = vmul.f32 %v450, %v502
        %v509 = vmul.f32 %v452, %v502
        %v510 = vmul.f32 %v454, %v502
        %v511 = vadd.f32 %v493, %v503
        %v512 = vadd.f32 %v494, %v504
        %v513 = vadd.f32 %v495, %v505
        %v514 = vadd.f32 %v496, %v506
        %v515 = vadd.f32 %v497, %v507
        %v516 = vadd.f32 %v498, %v508
        %v517 = vadd.f32 %v499, %v509
        %v518 = vadd.f32 %v500, %v510
        %s519 = sld [smem:[#allocation7]]
        %v520 = vstv %s519
        %v521 = vadd.f32 %v511, %v520
        %v522 = vadd.f32 %v512, %v520
        %v523 = vadd.f32 %v513, %v520
        %v524 = vadd.f32 %v514, %v520
        %v525 = vadd.f32 %v515, %v520
        %v526 = vadd.f32 %v516, %v520
        %v527 = vadd.f32 %v517, %v520
        %v528 = vadd.f32 %v518, %v520
        %s529 = sld [smem:[#allocation2 + $0x4]]
        %v530 = vstv %s529
        %v531 = vmul.f32 %v392, %v530
        %v532 = vmul.f32 %v394, %v530
        %v533 = vmul.f32 %v396, %v530
        %v534 = vmul.f32 %v398, %v530
        %v535 = vmul.f32 %v400, %v530
        %v536 = vmul.f32 %v402, %v530
        %v537 = vmul.f32 %v404, %v530
        %v538 = vmul.f32 %v406, %v530
        %s539 = sld [smem:[#allocation2 + $0x5]]
        %v540 = vstv %s539
        %v541 = vmul.f32 %v408, %v540
        %v542 = vmul.f32 %v410, %v540
        %v543 = vmul.f32 %v412, %v540
        %v544 = vmul.f32 %v414, %v540
        %v545 = vmul.f32 %v416, %v540
        %v546 = vmul.f32 %v418, %v540
        %v547 = vmul.f32 %v420, %v540
        %v548 = vmul.f32 %v422, %v540
        %v549 = vadd.f32 %v531, %v541
        %v550 = vadd.f32 %v532, %v542
        %v551 = vadd.f32 %v533, %v543
        %v552 = vadd.f32 %v534, %v544
        %v553 = vadd.f32 %v535, %v545
        %v554 = vadd.f32 %v536, %v546
        %v555 = vadd.f32 %v537, %v547
        %v556 = vadd.f32 %v538, %v548
        %s557 = sld [smem:[#allocation2 + $0x6]]
        %v558 = vstv %s557
        %v559 = vmul.f32 %v424, %v558
        %v560 = vmul.f32 %v426, %v558
        %v561 = vmul.f32 %v428, %v558
        %v562 = vmul.f32 %v430, %v558
        %v563 = vmul.f32 %v432, %v558
        %v564 = vmul.f32 %v434, %v558
        %v565 = vmul.f32 %v436, %v558
        %v566 = vmul.f32 %v438, %v558
        %v567 = vadd.f32 %v549, %v559
        %v568 = vadd.f32 %v550, %v560
        %v569 = vadd.f32 %v551, %v561
        %v570 = vadd.f32 %v552, %v562
        %v571 = vadd.f32 %v553, %v563
        %v572 = vadd.f32 %v554, %v564
        %v573 = vadd.f32 %v555, %v565
        %v574 = vadd.f32 %v556, %v566
        %s575 = sld [smem:[#allocation2 + $0x7]]
        %v576 = vstv %s575
        %v577 = vmul.f32 %v440, %v576
        %v578 = vmul.f32 %v442, %v576
        %v579 = vmul.f32 %v444, %v576
        %v580 = vmul.f32 %v446, %v576
        %v581 = vmul.f32 %v448, %v576
        %v582 = vmul.f32 %v450, %v576
        %v583 = vmul.f32 %v452, %v576
        %v584 = vmul.f32 %v454, %v576
        %v585 = vadd.f32 %v567, %v577
        %v586 = vadd.f32 %v568, %v578
        %v587 = vadd.f32 %v569, %v579
        %v588 = vadd.f32 %v570, %v580
        %v589 = vadd.f32 %v571, %v581
        %v590 = vadd.f32 %v572, %v582
        %v591 = vadd.f32 %v573, %v583
        %v592 = vadd.f32 %v574, %v584
        %s593 = sld [smem:[#allocation7 + $0x1]]
        %v594 = vstv %s593
        %v595 = vadd.f32 %v585, %v594
        %v596 = vadd.f32 %v586, %v594
        %v597 = vadd.f32 %v587, %v594
        %v598 = vadd.f32 %v588, %v594
        %v599 = vadd.f32 %v589, %v594
        %v600 = vadd.f32 %v590, %v594
        %v601 = vadd.f32 %v591, %v594
        %v602 = vadd.f32 %v592, %v594
        %s603 = sld [smem:[#allocation2 + $0x8]]
        %v604 = vstv %s603
        %v605 = vmul.f32 %v392, %v604
        %v606 = vmul.f32 %v394, %v604
        %v607 = vmul.f32 %v396, %v604
        %v608 = vmul.f32 %v398, %v604
        %v609 = vmul.f32 %v400, %v604
        %v610 = vmul.f32 %v402, %v604
        %v611 = vmul.f32 %v404, %v604
        %v612 = vmul.f32 %v406, %v604
        %s613 = sld [smem:[#allocation2 + $0x9]]
        %v614 = vstv %s613
        %v615 = vmul.f32 %v408, %v614
        %v616 = vmul.f32 %v410, %v614
        %v617 = vmul.f32 %v412, %v614
        %v618 = vmul.f32 %v414, %v614
        %v619 = vmul.f32 %v416, %v614
        %v620 = vmul.f32 %v418, %v614
        %v621 = vmul.f32 %v420, %v614
        %v622 = vmul.f32 %v422, %v614
        %v623 = vadd.f32 %v605, %v615
        %v624 = vadd.f32 %v606, %v616
        %v625 = vadd.f32 %v607, %v617
        %v626 = vadd.f32 %v608, %v618
        %v627 = vadd.f32 %v609, %v619
        %v628 = vadd.f32 %v610, %v620
        %v629 = vadd.f32 %v611, %v621
        %v630 = vadd.f32 %v612, %v622
        %s631 = sld [smem:[#allocation2 + $0xa]]
        %v632 = vstv %s631
        %v633 = vmul.f32 %v424, %v632
        %v634 = vmul.f32 %v426, %v632
        %v635 = vmul.f32 %v428, %v632
        %v636 = vmul.f32 %v430, %v632
        %v637 = vmul.f32 %v432, %v632
        %v638 = vmul.f32 %v434, %v632
        %v639 = vmul.f32 %v436, %v632
        %v640 = vmul.f32 %v438, %v632
        %v641 = vadd.f32 %v623, %v633
        %v642 = vadd.f32 %v624, %v634
        %v643 = vadd.f32 %v625, %v635
        %v644 = vadd.f32 %v626, %v636
        %v645 = vadd.f32 %v627, %v637
        %v646 = vadd.f32 %v628, %v638
        %v647 = vadd.f32 %v629, %v639
        %v648 = vadd.f32 %v630, %v640
        %s649 = sld [smem:[#allocation2 + $0xb]]
        %v650 = vstv %s649
        %v651 = vmul.f32 %v440, %v650
        %v652 = vmul.f32 %v442, %v650
        %v653 = vmul.f32 %v444, %v650
        %v654 = vmul.f32 %v446, %v650
        %v655 = vmul.f32 %v448, %v650
        %v656 = vmul.f32 %v450, %v650
        %v657 = vmul.f32 %v452, %v650
        %v658 = vmul.f32 %v454, %v650
        %v659 = vadd.f32 %v641, %v651
        %v660 = vadd.f32 %v642, %v652
        %v661 = vadd.f32 %v643, %v653
        %v662 = vadd.f32 %v644, %v654
        %v663 = vadd.f32 %v645, %v655
        %v664 = vadd.f32 %v646, %v656
        %v665 = vadd.f32 %v647, %v657
        %v666 = vadd.f32 %v648, %v658
        %s667 = sld [smem:[#allocation7 + $0x2]]
        %v668 = vstv %s667
        %v669 = vadd.f32 %v659, %v668
        %v670 = vadd.f32 %v660, %v668
        %v671 = vadd.f32 %v661, %v668
        %v672 = vadd.f32 %v662, %v668
        %v673 = vadd.f32 %v663, %v668
        %v674 = vadd.f32 %v664, %v668
        %v675 = vadd.f32 %v665, %v668
        %v676 = vadd.f32 %v666, %v668
        %s677 = sld [smem:[#allocation2 + $0xc]]
        %v678 = vstv %s677
        %v679 = vmul.f32 %v392, %v678
        %v680 = vmul.f32 %v394, %v678
        %v681 = vmul.f32 %v396, %v678
        %v682 = vmul.f32 %v398, %v678
        %v683 = vmul.f32 %v400, %v678
        %v684 = vmul.f32 %v402, %v678
        %v685 = vmul.f32 %v404, %v678
        %v686 = vmul.f32 %v406, %v678
        %s687 = sld [smem:[#allocation2 + $0xd]]
        %v688 = vstv %s687
        %v689 = vmul.f32 %v408, %v688
        %v690 = vmul.f32 %v410, %v688
        %v691 = vmul.f32 %v412, %v688
        %v692 = vmul.f32 %v414, %v688
        %v693 = vmul.f32 %v416, %v688
        %v694 = vmul.f32 %v418, %v688
        %v695 = vmul.f32 %v420, %v688
        %v696 = vmul.f32 %v422, %v688
        %v697 = vadd.f32 %v679, %v689
        %v698 = vadd.f32 %v680, %v690
        %v699 = vadd.f32 %v681, %v691
        %v700 = vadd.f32 %v682, %v692
        %v701 = vadd.f32 %v683, %v693
        %v702 = vadd.f32 %v684, %v694
        %v703 = vadd.f32 %v685, %v695
        %v704 = vadd.f32 %v686, %v696
        %s705 = sld [smem:[#allocation2 + $0xe]]
        %v706 = vstv %s705
        %v707 = vmul.f32 %v424, %v706
        %v708 = vmul.f32 %v426, %v706
        %v709 = vmul.f32 %v428, %v706
        %v710 = vmul.f32 %v430, %v706
        %v711 = vmul.f32 %v432, %v706
        %v712 = vmul.f32 %v434, %v706
        %v713 = vmul.f32 %v436, %v706
        %v714 = vmul.f32 %v438, %v706
        %v715 = vadd.f32 %v697, %v707
        %v716 = vadd.f32 %v698, %v708
        %v717 = vadd.f32 %v699, %v709
        %v718 = vadd.f32 %v700, %v710
        %v719 = vadd.f32 %v701, %v711
        %v720 = vadd.f32 %v702, %v712
        %v721 = vadd.f32 %v703, %v713
        %v722 = vadd.f32 %v704, %v714
        %s723 = sld [smem:[#allocation2 + $0xf]]
        %v724 = vstv %s723
        %v725 = vmul.f32 %v440, %v724
        %v726 = vmul.f32 %v442, %v724
        %v727 = vmul.f32 %v444, %v724
        %v728 = vmul.f32 %v446, %v724
        %v729 = vmul.f32 %v448, %v724
        %v730 = vmul.f32 %v450, %v724
        %v731 = vmul.f32 %v452, %v724
        %v732 = vmul.f32 %v454, %v724
        %v733 = vadd.f32 %v715, %v725
        %v734 = vadd.f32 %v716, %v726
        %v735 = vadd.f32 %v717, %v727
        %v736 = vadd.f32 %v718, %v728
        %v737 = vadd.f32 %v719, %v729
        %v738 = vadd.f32 %v720, %v730
        %v739 = vadd.f32 %v721, %v731
        %v740 = vadd.f32 %v722, %v732
        %s741 = sld [smem:[#allocation7 + $0x3]]
        %v742 = vstv %s741
        %v743 = vadd.f32 %v733, %v742
        %v744 = vadd.f32 %v734, %v742
        %v745 = vadd.f32 %v735, %v742
        %v746 = vadd.f32 %v736, %v742
        %v747 = vadd.f32 %v737, %v742
        %v748 = vadd.f32 %v738, %v742
        %v749 = vadd.f32 %v739, %v742
        %v750 = vadd.f32 %v740, %v742
        %s751 = sld [smem:[#allocation8]]
        %v752 = vstv %s751
        %v753 = vmul.f32 %v392, %v752
        %v754 = vmul.f32 %v394, %v752
        %v755 = vmul.f32 %v396, %v752
        %v756 = vmul.f32 %v398, %v752
        %v757 = vmul.f32 %v400, %v752
        %v758 = vmul.f32 %v402, %v752
        %v759 = vmul.f32 %v404, %v752
        %v760 = vmul.f32 %v406, %v752
        %s761 = sld [smem:[#allocation8 + $0x1]]
        %v762 = vstv %s761
        %v763 = vmul.f32 %v408, %v762
        %v764 = vmul.f32 %v410, %v762
        %v765 = vmul.f32 %v412, %v762
        %v766 = vmul.f32 %v414, %v762
        %v767 = vmul.f32 %v416, %v762
        %v768 = vmul.f32 %v418, %v762
        %v769 = vmul.f32 %v420, %v762
        %v770 = vmul.f32 %v422, %v762
        %v771 = vadd.f32 %v753, %v763
        %v772 = vadd.f32 %v754, %v764
        %v773 = vadd.f32 %v755, %v765
        %v774 = vadd.f32 %v756, %v766
        %v775 = vadd.f32 %v757, %v767
        %v776 = vadd.f32 %v758, %v768
        %v777 = vadd.f32 %v759, %v769
        %v778 = vadd.f32 %v760, %v770
        %s779 = sld [smem:[#allocation8 + $0x2]]
        %v780 = vstv %s779
        %v781 = vmul.f32 %v424, %v780
        %v782 = vmul.f32 %v426, %v780
        %v783 = vmul.f32 %v428, %v780
        %v784 = vmul.f32 %v430, %v780
        %v785 = vmul.f32 %v432, %v780
        %v786 = vmul.f32 %v434, %v780
        %v787 = vmul.f32 %v436, %v780
        %v788 = vmul.f32 %v438, %v780
        %v789 = vadd.f32 %v771, %v781
        %v790 = vadd.f32 %v772, %v782
        %v791 = vadd.f32 %v773, %v783
        %v792 = vadd.f32 %v774, %v784
        %v793 = vadd.f32 %v775, %v785
        %v794 = vadd.f32 %v776, %v786
        %v795 = vadd.f32 %v777, %v787
        %v796 = vadd.f32 %v778, %v788
        %s797 = sld [smem:[#allocation8 + $0x3]]
        %v798 = vstv %s797
        %v799 = vmul.f32 %v440, %v798
        %v800 = vmul.f32 %v442, %v798
        %v801 = vmul.f32 %v444, %v798
        %v802 = vmul.f32 %v446, %v798
        %v803 = vmul.f32 %v448, %v798
        %v804 = vmul.f32 %v450, %v798
        %v805 = vmul.f32 %v452, %v798
        %v806 = vmul.f32 %v454, %v798
        %v807 = vadd.f32 %v789, %v799
        %v808 = vadd.f32 %v790, %v800
        %v809 = vadd.f32 %v791, %v801
        %v810 = vadd.f32 %v792, %v802
        %v811 = vadd.f32 %v793, %v803
        %v812 = vadd.f32 %v794, %v804
        %v813 = vadd.f32 %v795, %v805
        %v814 = vadd.f32 %v796, %v806
        %s815 = sld [smem:[#allocation10]]
        %v816 = vstv %s815
        %v817 = vadd.f32 %v807, %v816
        %v818 = vadd.f32 %v808, %v816
        %v819 = vadd.f32 %v809, %v816
        %v820 = vadd.f32 %v810, %v816
        %v821 = vadd.f32 %v811, %v816
        %v822 = vadd.f32 %v812, %v816
        %v823 = vadd.f32 %v813, %v816
        %v824 = vadd.f32 %v814, %v816
        %s825 = sld [smem:[#allocation8 + $0x4]]
        %v826 = vstv %s825
        %v827 = vmul.f32 %v392, %v826
        %v828 = vmul.f32 %v394, %v826
        %v829 = vmul.f32 %v396, %v826
        %v830 = vmul.f32 %v398, %v826
        %v831 = vmul.f32 %v400, %v826
        %v832 = vmul.f32 %v402, %v826
        %v833 = vmul.f32 %v404, %v826
        %v834 = vmul.f32 %v406, %v826
        %s835 = sld [smem:[#allocation8 + $0x5]]
        %v836 = vstv %s835
        %v837 = vmul.f32 %v408, %v836
        %v838 = vmul.f32 %v410, %v836
        %v839 = vmul.f32 %v412, %v836
        %v840 = vmul.f32 %v414, %v836
        %v841 = vmul.f32 %v416, %v836
        %v842 = vmul.f32 %v418, %v836
        %v843 = vmul.f32 %v420, %v836
        %v844 = vmul.f32 %v422, %v836
        %v845 = vadd.f32 %v827, %v837
        %v846 = vadd.f32 %v828, %v838
        %v847 = vadd.f32 %v829, %v839
        %v848 = vadd.f32 %v830, %v840
        %v849 = vadd.f32 %v831, %v841
        %v850 = vadd.f32 %v832, %v842
        %v851 = vadd.f32 %v833, %v843
        %v852 = vadd.f32 %v834, %v844
        %s853 = sld [smem:[#allocation8 + $0x6]]
        %v854 = vstv %s853
        %v855 = vmul.f32 %v424, %v854
        %v856 = vmul.f32 %v426, %v854
        %v857 = vmul.f32 %v428, %v854
        %v858 = vmul.f32 %v430, %v854
        %v859 = vmul.f32 %v432, %v854
        %v860 = vmul.f32 %v434, %v854
        %v861 = vmul.f32 %v436, %v854
        %v862 = vmul.f32 %v438, %v854
        %v863 = vadd.f32 %v845, %v855
        %v864 = vadd.f32 %v846, %v856
        %v865 = vadd.f32 %v847, %v857
        %v866 = vadd.f32 %v848, %v858
        %v867 = vadd.f32 %v849, %v859
        %v868 = vadd.f32 %v850, %v860
        %v869 = vadd.f32 %v851, %v861
        %v870 = vadd.f32 %v852, %v862
        %s871 = sld [smem:[#allocation8 + $0x7]]
        %v872 = vstv %s871
        %v873 = vmul.f32 %v440, %v872
        %v874 = vmul.f32 %v442, %v872
        %v875 = vmul.f32 %v444, %v872
        %v876 = vmul.f32 %v446, %v872
        %v877 = vmul.f32 %v448, %v872
        %v878 = vmul.f32 %v450, %v872
        %v879 = vmul.f32 %v452, %v872
        %v880 = vmul.f32 %v454, %v872
        %v881 = vadd.f32 %v863, %v873
        %v882 = vadd.f32 %v864, %v874
        %v883 = vadd.f32 %v865, %v875
        %v884 = vadd.f32 %v866, %v876
        %v885 = vadd.f32 %v867, %v877
        %v886 = vadd.f32 %v868, %v878
        %v887 = vadd.f32 %v869, %v879
        %v888 = vadd.f32 %v870, %v880
        %s889 = sld [smem:[#allocation10 + $0x1]]
        %v890 = vstv %s889
        %v891 = vadd.f32 %v881, %v890
        %v892 = vadd.f32 %v882, %v890
        %v893 = vadd.f32 %v883, %v890
        %v894 = vadd.f32 %v884, %v890
        %v895 = vadd.f32 %v885, %v890
        %v896 = vadd.f32 %v886, %v890
        %v897 = vadd.f32 %v887, %v890
        %v898 = vadd.f32 %v888, %v890
        %s899 = sld [smem:[#allocation8 + $0x8]]
        %v900 = vstv %s899
        %v901 = vmul.f32 %v392, %v900
        %v902 = vmul.f32 %v394, %v900
        %v903 = vmul.f32 %v396, %v900
        %v904 = vmul.f32 %v398, %v900
        %v905 = vmul.f32 %v400, %v900
        %v906 = vmul.f32 %v402, %v900
        %v907 = vmul.f32 %v404, %v900
        %v908 = vmul.f32 %v406, %v900
        %s909 = sld [smem:[#allocation8 + $0x9]]
        %v910 = vstv %s909
        %v911 = vmul.f32 %v408, %v910
        %v912 = vmul.f32 %v410, %v910
        %v913 = vmul.f32 %v412, %v910
        %v914 = vmul.f32 %v414, %v910
        %v915 = vmul.f32 %v416, %v910
        %v916 = vmul.f32 %v418, %v910
        %v917 = vmul.f32 %v420, %v910
        %v918 = vmul.f32 %v422, %v910
        %v919 = vadd.f32 %v901, %v911
        %v920 = vadd.f32 %v902, %v912
        %v921 = vadd.f32 %v903, %v913
        %v922 = vadd.f32 %v904, %v914
        %v923 = vadd.f32 %v905, %v915
        %v924 = vadd.f32 %v906, %v916
        %v925 = vadd.f32 %v907, %v917
        %v926 = vadd.f32 %v908, %v918
        %s927 = sld [smem:[#allocation8 + $0xa]]
        %v928 = vstv %s927
        %v929 = vmul.f32 %v424, %v928
        %v930 = vmul.f32 %v426, %v928
        %v931 = vmul.f32 %v428, %v928
        %v932 = vmul.f32 %v430, %v928
        %v933 = vmul.f32 %v432, %v928
        %v934 = vmul.f32 %v434, %v928
        %v935 = vmul.f32 %v436, %v928
        %v936 = vmul.f32 %v438, %v928
        %v937 = vadd.f32 %v919, %v929
        %v938 = vadd.f32 %v920, %v930
        %v939 = vadd.f32 %v921, %v931
        %v940 = vadd.f32 %v922, %v932
        %v941 = vadd.f32 %v923, %v933
        %v942 = vadd.f32 %v924, %v934
        %v943 = vadd.f32 %v925, %v935
        %v944 = vadd.f32 %v926, %v936
        %s945 = sld [smem:[#allocation8 + $0xb]]
        %v946 = vstv %s945
        %v947 = vmul.f32 %v440, %v946
        %v948 = vmul.f32 %v442, %v946
        %v949 = vmul.f32 %v444, %v946
        %v950 = vmul.f32 %v446, %v946
        %v951 = vmul.f32 %v448, %v946
        %v952 = vmul.f32 %v450, %v946
        %v953 = vmul.f32 %v452, %v946
        %v954 = vmul.f32 %v454, %v946
        %v955 = vadd.f32 %v937, %v947
        %v956 = vadd.f32 %v938, %v948
        %v957 = vadd.f32 %v939, %v949
        %v958 = vadd.f32 %v940, %v950
        %v959 = vadd.f32 %v941, %v951
        %v960 = vadd.f32 %v942, %v952
        %v961 = vadd.f32 %v943, %v953
        %v962 = vadd.f32 %v944, %v954
        %s963 = sld [smem:[#allocation10 + $0x2]]
        %v964 = vstv %s963
        %v965 = vadd.f32 %v955, %v964
        %v966 = vadd.f32 %v956, %v964
        %v967 = vadd.f32 %v957, %v964
        %v968 = vadd.f32 %v958, %v964
        %v969 = vadd.f32 %v959, %v964
        %v970 = vadd.f32 %v960, %v964
        %v971 = vadd.f32 %v961, %v964
        %v972 = vadd.f32 %v962, %v964
        %s973 = sld [smem:[#allocation8 + $0xc]]
        %v974 = vstv %s973
        %v975 = vmul.f32 %v392, %v974
        %v976 = vmul.f32 %v394, %v974
        %v977 = vmul.f32 %v396, %v974
        %v978 = vmul.f32 %v398, %v974
        %v979 = vmul.f32 %v400, %v974
        %v980 = vmul.f32 %v402, %v974
        %v981 = vmul.f32 %v404, %v974
        %v982 = vmul.f32 %v406, %v974
        %s983 = sld [smem:[#allocation8 + $0xd]]
        %v984 = vstv %s983
        %v985 = vmul.f32 %v408, %v984
        %v986 = vmul.f32 %v410, %v984
        %v987 = vmul.f32 %v412, %v984
        %v988 = vmul.f32 %v414, %v984
        %v989 = vmul.f32 %v416, %v984
        %v990 = vmul.f32 %v418, %v984
        %v991 = vmul.f32 %v420, %v984
        %v992 = vmul.f32 %v422, %v984
        %v993 = vadd.f32 %v975, %v985
        %v994 = vadd.f32 %v976, %v986
        %v995 = vadd.f32 %v977, %v987
        %v996 = vadd.f32 %v978, %v988
        %v997 = vadd.f32 %v979, %v989
        %v998 = vadd.f32 %v980, %v990
        %v999 = vadd.f32 %v981, %v991
        %v1000 = vadd.f32 %v982, %v992
        %s1001 = sld [smem:[#allocation8 + $0xe]]
        %v1002 = vstv %s1001
        %v1003 = vmul.f32 %v424, %v1002
        %v1004 = vmul.f32 %v426, %v1002
        %v1005 = vmul.f32 %v428, %v1002
        %v1006 = vmul.f32 %v430, %v1002
        %v1007 = vmul.f32 %v432, %v1002
        %v1008 = vmul.f32 %v434, %v1002
        %v1009 = vmul.f32 %v436, %v1002
        %v1010 = vmul.f32 %v438, %v1002
        %v1011 = vadd.f32 %v993, %v1003
        %v1012 = vadd.f32 %v994, %v1004
        %v1013 = vadd.f32 %v995, %v1005
        %v1014 = vadd.f32 %v996, %v1006
        %v1015 = vadd.f32 %v997, %v1007
        %v1016 = vadd.f32 %v998, %v1008
        %v1017 = vadd.f32 %v999, %v1009
        %v1018 = vadd.f32 %v1000, %v1010
        %s1019 = sld [smem:[#allocation8 + $0xf]]
        %v1020 = vstv %s1019
        %v1021 = vmul.f32 %v440, %v1020
        %v1022 = vmul.f32 %v442, %v1020
        %v1023 = vmul.f32 %v444, %v1020
        %v1024 = vmul.f32 %v446, %v1020
        %v1025 = vmul.f32 %v448, %v1020
        %v1026 = vmul.f32 %v450, %v1020
        %v1027 = vmul.f32 %v452, %v1020
        %v1028 = vmul.f32 %v454, %v1020
        %v1029 = vadd.f32 %v1011, %v1021
        %v1030 = vadd.f32 %v1012, %v1022
        %v1031 = vadd.f32 %v1013, %v1023
        %v1032 = vadd.f32 %v1014, %v1024
        %v1033 = vadd.f32 %v1015, %v1025
        %v1034 = vadd.f32 %v1016, %v1026
        %v1035 = vadd.f32 %v1017, %v1027
        %v1036 = vadd.f32 %v1018, %v1028
        %s1037 = sld [smem:[#allocation10 + $0x3]]
        %v1038 = vstv %s1037
        %v1039 = vadd.f32 %v1029, %v1038
        %v1040 = vadd.f32 %v1030, %v1038
        %v1041 = vadd.f32 %v1031, %v1038
        %v1042 = vadd.f32 %v1032, %v1038
        %v1043 = vadd.f32 %v1033, %v1038
        %v1044 = vadd.f32 %v1034, %v1038
        %v1045 = vadd.f32 %v1035, %v1038
        %v1046 = vadd.f32 %v1036, %v1038
        %s1047 = sld [smem:[#allocation11]]
        %v1048 = vstv %s1047
        %v1049 = vmul.f32 %v392, %v1048
        %v1050 = vmul.f32 %v394, %v1048
        %v1051 = vmul.f32 %v396, %v1048
        %v1052 = vmul.f32 %v398, %v1048
        %v1053 = vmul.f32 %v400, %v1048
        %v1054 = vmul.f32 %v402, %v1048
        %v1055 = vmul.f32 %v404, %v1048
        %v1056 = vmul.f32 %v406, %v1048
        %s1057 = sld [smem:[#allocation11 + $0x1]]
        %v1058 = vstv %s1057
        %v1059 = vmul.f32 %v408, %v1058
        %v1060 = vmul.f32 %v410, %v1058
        %v1061 = vmul.f32 %v412, %v1058
        %v1062 = vmul.f32 %v414, %v1058
        %v1063 = vmul.f32 %v416, %v1058
        %v1064 = vmul.f32 %v418, %v1058
        %v1065 = vmul.f32 %v420, %v1058
        %v1066 = vmul.f32 %v422, %v1058
        %v1067 = vadd.f32 %v1049, %v1059
        %v1068 = vadd.f32 %v1050, %v1060
        %v1069 = vadd.f32 %v1051, %v1061
        %v1070 = vadd.f32 %v1052, %v1062
        %v1071 = vadd.f32 %v1053, %v1063
        %v1072 = vadd.f32 %v1054, %v1064
        %v1073 = vadd.f32 %v1055, %v1065
        %v1074 = vadd.f32 %v1056, %v1066
        %s1075 = sld [smem:[#allocation11 + $0x2]]
        %v1076 = vstv %s1075
        %v1077 = vmul.f32 %v424, %v1076
        %v1078 = vmul.f32 %v426, %v1076
        %v1079 = vmul.f32 %v428, %v1076
        %v1080 = vmul.f32 %v430, %v1076
        %v1081 = vmul.f32 %v432, %v1076
        %v1082 = vmul.f32 %v434, %v1076
        %v1083 = vmul.f32 %v436, %v1076
        %v1084 = vmul.f32 %v438, %v1076
        %v1085 = vadd.f32 %v1067, %v1077
        %v1086 = vadd.f32 %v1068, %v1078
        %v1087 = vadd.f32 %v1069, %v1079
        %v1088 = vadd.f32 %v1070, %v1080
        %v1089 = vadd.f32 %v1071, %v1081
        %v1090 = vadd.f32 %v1072, %v1082
        %v1091 = vadd.f32 %v1073, %v1083
        %v1092 = vadd.f32 %v1074, %v1084
        %s1093 = sld [smem:[#allocation11 + $0x3]]
        %v1094 = vstv %s1093
        %v1095 = vmul.f32 %v440, %v1094
        %v1096 = vmul.f32 %v442, %v1094
        %v1097 = vmul.f32 %v444, %v1094
        %v1098 = vmul.f32 %v446, %v1094
        %v1099 = vmul.f32 %v448, %v1094
        %v1100 = vmul.f32 %v450, %v1094
        %v1101 = vmul.f32 %v452, %v1094
        %v1102 = vmul.f32 %v454, %v1094
        %v1103 = vadd.f32 %v1085, %v1095
        %v1104 = vadd.f32 %v1086, %v1096
        %v1105 = vadd.f32 %v1087, %v1097
        %v1106 = vadd.f32 %v1088, %v1098
        %v1107 = vadd.f32 %v1089, %v1099
        %v1108 = vadd.f32 %v1090, %v1100
        %v1109 = vadd.f32 %v1091, %v1101
        %v1110 = vadd.f32 %v1092, %v1102
        %s1111 = sld [smem:[#allocation13]]
        %v1112 = vstv %s1111
        %v1113 = vadd.f32 %v1103, %v1112
        %v1114 = vadd.f32 %v1104, %v1112
        %v1115 = vadd.f32 %v1105, %v1112
        %v1116 = vadd.f32 %v1106, %v1112
        %v1117 = vadd.f32 %v1107, %v1112
        %v1118 = vadd.f32 %v1108, %v1112
        %v1119 = vadd.f32 %v1109, %v1112
        %v1120 = vadd.f32 %v1110, %v1112
        %s1121 = sld [smem:[#allocation11 + $0x4]]
        %v1122 = vstv %s1121
        %v1123 = vmul.f32 %v392, %v1122
        %v1124 = vmul.f32 %v394, %v1122
        %v1125 = vmul.f32 %v396, %v1122
        %v1126 = vmul.f32 %v398, %v1122
        %v1127 = vmul.f32 %v400, %v1122
        %v1128 = vmul.f32 %v402, %v1122
        %v1129 = vmul.f32 %v404, %v1122
        %v1130 = vmul.f32 %v406, %v1122
        %s1131 = sld [smem:[#allocation11 + $0x5]]
        %v1132 = vstv %s1131
        %v1133 = vmul.f32 %v408, %v1132
        %v1134 = vmul.f32 %v410, %v1132
        %v1135 = vmul.f32 %v412, %v1132
        %v1136 = vmul.f32 %v414, %v1132
        %v1137 = vmul.f32 %v416, %v1132
        %v1138 = vmul.f32 %v418, %v1132
        %v1139 = vmul.f32 %v420, %v1132
        %v1140 = vmul.f32 %v422, %v1132
        %v1141 = vadd.f32 %v1123, %v1133
        %v1142 = vadd.f32 %v1124, %v1134
        %v1143 = vadd.f32 %v1125, %v1135
        %v1144 = vadd.f32 %v1126, %v1136
        %v1145 = vadd.f32 %v1127, %v1137
        %v1146 = vadd.f32 %v1128, %v1138
        %v1147 = vadd.f32 %v1129, %v1139
        %v1148 = vadd.f32 %v1130, %v1140
        %s1149 = sld [smem:[#allocation11 + $0x6]]
        %v1150 = vstv %s1149
        %v1151 = vmul.f32 %v424, %v1150
        %v1152 = vmul.f32 %v426, %v1150
        %v1153 = vmul.f32 %v428, %v1150
        %v1154 = vmul.f32 %v430, %v1150
        %v1155 = vmul.f32 %v432, %v1150
        %v1156 = vmul.f32 %v434, %v1150
        %v1157 = vmul.f32 %v436, %v1150
        %v1158 = vmul.f32 %v438, %v1150
        %v1159 = vadd.f32 %v1141, %v1151
        %v1160 = vadd.f32 %v1142, %v1152
        %v1161 = vadd.f32 %v1143, %v1153
        %v1162 = vadd.f32 %v1144, %v1154
        %v1163 = vadd.f32 %v1145, %v1155
        %v1164 = vadd.f32 %v1146, %v1156
        %v1165 = vadd.f32 %v1147, %v1157
        %v1166 = vadd.f32 %v1148, %v1158
        %s1167 = sld [smem:[#allocation11 + $0x7]]
        %v1168 = vstv %s1167
        %v1169 = vmul.f32 %v440, %v1168
        %v1170 = vmul.f32 %v442, %v1168
        %v1171 = vmul.f32 %v444, %v1168
        %v1172 = vmul.f32 %v446, %v1168
        %v1173 = vmul.f32 %v448, %v1168
        %v1174 = vmul.f32 %v450, %v1168
        %v1175 = vmul.f32 %v452, %v1168
        %v1176 = vmul.f32 %v454, %v1168
        %v1177 = vadd.f32 %v1159, %v1169
        %v1178 = vadd.f32 %v1160, %v1170
        %v1179 = vadd.f32 %v1161, %v1171
        %v1180 = vadd.f32 %v1162, %v1172
        %v1181 = vadd.f32 %v1163, %v1173
        %v1182 = vadd.f32 %v1164, %v1174
        %v1183 = vadd.f32 %v1165, %v1175
        %v1184 = vadd.f32 %v1166, %v1176
        %s1185 = sld [smem:[#allocation13 + $0x1]]
        %v1186 = vstv %s1185
        %v1187 = vadd.f32 %v1177, %v1186
        %v1188 = vadd.f32 %v1178, %v1186
        %v1189 = vadd.f32 %v1179, %v1186
        %v1190 = vadd.f32 %v1180, %v1186
        %v1191 = vadd.f32 %v1181, %v1186
        %v1192 = vadd.f32 %v1182, %v1186
        %v1193 = vadd.f32 %v1183, %v1186
        %v1194 = vadd.f32 %v1184, %v1186
        %s1195 = sld [smem:[#allocation11 + $0x8]]
        %v1196 = vstv %s1195
        %v1197 = vmul.f32 %v392, %v1196
        %v1198 = vmul.f32 %v394, %v1196
        %v1199 = vmul.f32 %v396, %v1196
        %v1200 = vmul.f32 %v398, %v1196
        %v1201 = vmul.f32 %v400, %v1196
        %v1202 = vmul.f32 %v402, %v1196
        %v1203 = vmul.f32 %v404, %v1196
        %v1204 = vmul.f32 %v406, %v1196
        %s1205 = sld [smem:[#allocation11 + $0x9]]
        %v1206 = vstv %s1205
        %v1207 = vmul.f32 %v408, %v1206
        %v1208 = vmul.f32 %v410, %v1206
        %v1209 = vmul.f32 %v412, %v1206
        %v1210 = vmul.f32 %v414, %v1206
        %v1211 = vmul.f32 %v416, %v1206
        %v1212 = vmul.f32 %v418, %v1206
        %v1213 = vmul.f32 %v420, %v1206
        %v1214 = vmul.f32 %v422, %v1206
        %v1215 = vadd.f32 %v1197, %v1207
        %v1216 = vadd.f32 %v1198, %v1208
        %v1217 = vadd.f32 %v1199, %v1209
        %v1218 = vadd.f32 %v1200, %v1210
        %v1219 = vadd.f32 %v1201, %v1211
        %v1220 = vadd.f32 %v1202, %v1212
        %v1221 = vadd.f32 %v1203, %v1213
        %v1222 = vadd.f32 %v1204, %v1214
        %s1223 = sld [smem:[#allocation11 + $0xa]]
        %v1224 = vstv %s1223
        %v1225 = vmul.f32 %v424, %v1224
        %v1226 = vmul.f32 %v426, %v1224
        %v1227 = vmul.f32 %v428, %v1224
        %v1228 = vmul.f32 %v430, %v1224
        %v1229 = vmul.f32 %v432, %v1224
        %v1230 = vmul.f32 %v434, %v1224
        %v1231 = vmul.f32 %v436, %v1224
        %v1232 = vmul.f32 %v438, %v1224
        %v1233 = vadd.f32 %v1215, %v1225
        %v1234 = vadd.f32 %v1216, %v1226
        %v1235 = vadd.f32 %v1217, %v1227
        %v1236 = vadd.f32 %v1218, %v1228
        %v1237 = vadd.f32 %v1219, %v1229
        %v1238 = vadd.f32 %v1220, %v1230
        %v1239 = vadd.f32 %v1221, %v1231
        %v1240 = vadd.f32 %v1222, %v1232
        %s1241 = sld [smem:[#allocation11 + $0xb]]
        %v1242 = vstv %s1241
        %v1243 = vmul.f32 %v440, %v1242
        %v1244 = vmul.f32 %v442, %v1242
        %v1245 = vmul.f32 %v444, %v1242
        %v1246 = vmul.f32 %v446, %v1242
        %v1247 = vmul.f32 %v448, %v1242
        %v1248 = vmul.f32 %v450, %v1242
        %v1249 = vmul.f32 %v452, %v1242
        %v1250 = vmul.f32 %v454, %v1242
        %v1251 = vadd.f32 %v1233, %v1243
        %v1252 = vadd.f32 %v1234, %v1244
        %v1253 = vadd.f32 %v1235, %v1245
        %v1254 = vadd.f32 %v1236, %v1246
        %v1255 = vadd.f32 %v1237, %v1247
        %v1256 = vadd.f32 %v1238, %v1248
        %v1257 = vadd.f32 %v1239, %v1249
        %v1258 = vadd.f32 %v1240, %v1250
        %s1259 = sld [smem:[#allocation13 + $0x2]]
        %v1260 = vstv %s1259
        %v1261 = vadd.f32 %v1251, %v1260
        %v1262 = vadd.f32 %v1252, %v1260
        %v1263 = vadd.f32 %v1253, %v1260
        %v1264 = vadd.f32 %v1254, %v1260
        %v1265 = vadd.f32 %v1255, %v1260
        %v1266 = vadd.f32 %v1256, %v1260
        %v1267 = vadd.f32 %v1257, %v1260
        %v1268 = vadd.f32 %v1258, %v1260
        %s1269 = sld [smem:[#allocation11 + $0xc]]
        %v1270 = vstv %s1269
        %v1271 = vmul.f32 %v392, %v1270
        %v1272 = vmul.f32 %v394, %v1270
        %v1273 = vmul.f32 %v396, %v1270
        %v1274 = vmul.f32 %v398, %v1270
        %v1275 = vmul.f32 %v400, %v1270
        %v1276 = vmul.f32 %v402, %v1270
        %v1277 = vmul.f32 %v404, %v1270
        %v1278 = vmul.f32 %v406, %v1270
        %s1279 = sld [smem:[#allocation11 + $0xd]]
        %v1280 = vstv %s1279
        %v1281 = vmul.f32 %v408, %v1280
        %v1282 = vmul.f32 %v410, %v1280
        %v1283 = vmul.f32 %v412, %v1280
        %v1284 = vmul.f32 %v414, %v1280
        %v1285 = vmul.f32 %v416, %v1280
        %v1286 = vmul.f32 %v418, %v1280
        %v1287 = vmul.f32 %v420, %v1280
        %v1288 = vmul.f32 %v422, %v1280
        %v1289 = vadd.f32 %v1271, %v1281
        %v1290 = vadd.f32 %v1272, %v1282
        %v1291 = vadd.f32 %v1273, %v1283
        %v1292 = vadd.f32 %v1274, %v1284
        %v1293 = vadd.f32 %v1275, %v1285
        %v1294 = vadd.f32 %v1276, %v1286
        %v1295 = vadd.f32 %v1277, %v1287
        %v1296 = vadd.f32 %v1278, %v1288
        %s1297 = sld [smem:[#allocation11 + $0xe]]
        %v1298 = vstv %s1297
        %v1299 = vmul.f32 %v424, %v1298
        %v1300 = vmul.f32 %v426, %v1298
        %v1301 = vmul.f32 %v428, %v1298
        %v1302 = vmul.f32 %v430, %v1298
        %v1303 = vmul.f32 %v432, %v1298
        %v1304 = vmul.f32 %v434, %v1298
        %v1305 = vmul.f32 %v436, %v1298
        %v1306 = vmul.f32 %v438, %v1298
        %v1307 = vadd.f32 %v1289, %v1299
        %v1308 = vadd.f32 %v1290, %v1300
        %v1309 = vadd.f32 %v1291, %v1301
        %v1310 = vadd.f32 %v1292, %v1302
        %v1311 = vadd.f32 %v1293, %v1303
        %v1312 = vadd.f32 %v1294, %v1304
        %v1313 = vadd.f32 %v1295, %v1305
        %v1314 = vadd.f32 %v1296, %v1306
        %s1315 = sld [smem:[#allocation11 + $0xf]]
        %v1316 = vstv %s1315
        %v1317 = vmul.f32 %v440, %v1316
        %v1318 = vmul.f32 %v442, %v1316
        %v1319 = vmul.f32 %v444, %v1316
        %v1320 = vmul.f32 %v446, %v1316
        %v1321 = vmul.f32 %v448, %v1316
        %v1322 = vmul.f32 %v450, %v1316
        %v1323 = vmul.f32 %v452, %v1316
        %v1324 = vmul.f32 %v454, %v1316
        %v1325 = vadd.f32 %v1307, %v1317
        %v1326 = vadd.f32 %v1308, %v1318
        %v1327 = vadd.f32 %v1309, %v1319
        %v1328 = vadd.f32 %v1310, %v1320
        %v1329 = vadd.f32 %v1311, %v1321
        %v1330 = vadd.f32 %v1312, %v1322
        %v1331 = vadd.f32 %v1313, %v1323
        %v1332 = vadd.f32 %v1314, %v1324
        %s1333 = sld [smem:[#allocation13 + $0x3]]
        %v1334 = vstv %s1333
        %v1335 = vadd.f32 %v1325, %v1334
        %v1336 = vadd.f32 %v1326, %v1334
        %v1337 = vadd.f32 %v1327, %v1334
        %v1338 = vadd.f32 %v1328, %v1334
        %v1339 = vadd.f32 %v1329, %v1334
        %v1340 = vadd.f32 %v1330, %v1334
        %v1341 = vadd.f32 %v1331, %v1334
        %v1342 = vadd.f32 %v1332, %v1334
        %v1351 = vlaneseq
        %v1352 = vshrl.u32 %v1351, 7
        %v1353 = vsub.s32 0, %v1352
        %v1354 = vrot.slane %v521, %v1353
        %v1355 = vlaneseq
        %v1356 = vshrl.u32 %v1355, 7
        %v1357 = vsub.s32 1, %v1356
        %v1358 = vrot.slane %v521, %v1357
        %v1359 = vlaneseq
        %v1360 = vshrl.u32 %v1359, 7
        %v1361 = vsub.s32 0, %v1360
        %v1362 = vrot.slane %v522, %v1361
        %v1363 = vlaneseq
        %v1364 = vshrl.u32 %v1363, 7
        %v1365 = vsub.s32 1, %v1364
        %v1366 = vrot.slane %v522, %v1365
        %v1367 = vlaneseq
        %v1368 = vshrl.u32 %v1367, 7
        %v1369 = vsub.s32 0, %v1368
        %v1370 = vrot.slane %v523, %v1369
        %v1371 = vlaneseq
        %v1372 = vshrl.u32 %v1371, 7
        %v1373 = vsub.s32 1, %v1372
        %v1374 = vrot.slane %v523, %v1373
        %v1375 = vlaneseq
        %v1376 = vshrl.u32 %v1375, 7
        %v1377 = vsub.s32 0, %v1376
        %v1378 = vrot.slane %v524, %v1377
        %v1379 = vlaneseq
        %v1380 = vshrl.u32 %v1379, 7
        %v1381 = vsub.s32 1, %v1380
        %v1382 = vrot.slane %v524, %v1381
        %v1383 = vlaneseq
        %v1384 = vshrl.u32 %v1383, 7
        %v1385 = vsub.s32 0, %v1384
        %v1386 = vrot.slane %v525, %v1385
        %v1387 = vlaneseq
        %v1388 = vshrl.u32 %v1387, 7
        %v1389 = vsub.s32 1, %v1388
        %v1390 = vrot.slane %v525, %v1389
        %v1391 = vlaneseq
        %v1392 = vshrl.u32 %v1391, 7
        %v1393 = vsub.s32 0, %v1392
        %v1394 = vrot.slane %v526, %v1393
        %v1395 = vlaneseq
        %v1396 = vshrl.u32 %v1395, 7
        %v1397 = vsub.s32 1, %v1396
        %v1398 = vrot.slane %v526, %v1397
        %v1399 = vlaneseq
        %v1400 = vshrl.u32 %v1399, 7
        %v1401 = vsub.s32 0, %v1400
        %v1402 = vrot.slane %v527, %v1401
        %v1403 = vlaneseq
        %v1404 = vshrl.u32 %v1403, 7
        %v1405 = vsub.s32 1, %v1404
        %v1406 = vrot.slane %v527, %v1405
        %v1407 = vlaneseq
        %v1408 = vshrl.u32 %v1407, 7
        %v1409 = vsub.s32 0, %v1408
        %v1410 = vrot.slane %v528, %v1409
        %v1411 = vlaneseq
        %v1412 = vshrl.u32 %v1411, 7
        %v1413 = vsub.s32 1, %v1412
        %v1414 = vrot.slane %v528, %v1413
        %v1439 = vcombine.low %v817, %v818
        %v1440 = vcombine.low %v819, %v820
        %v1441 = vcombine.low %v821, %v822
        %v1442 = vcombine.low %v823, %v824
        %v1444 = vunpack.c.l.s4 1966171168
        %v1445 = vunpack.c.0.s8 %v1444
        %v1446 = vlaneseq
        %v1447 = vshrl.u32 %v1446, 7
        %v1448 = vsub.s32 %v1445, %v1447
        %v1449 = vrot.slane %v1439, %v1448
        %v1451 = vunpack.c.l.s4 1966171168
        %v1452 = vunpack.c.0.s8 %v1451
        %v1453 = vlaneseq
        %v1454 = vshrl.u32 %v1453, 7
        %v1455 = vsub.s32 %v1452, %v1454
        %v1456 = vrot.slane %v1440, %v1455
        %v1458 = vunpack.c.l.s4 1966171168
        %v1459 = vunpack.c.0.s8 %v1458
        %v1460 = vlaneseq
        %v1461 = vshrl.u32 %v1460, 7
        %v1462 = vsub.s32 %v1459, %v1461
        %v1463 = vrot.slane %v1441, %v1462
        %v1465 = vunpack.c.l.s4 1966171168
        %v1466 = vunpack.c.0.s8 %v1465
        %v1467 = vlaneseq
        %v1468 = vshrl.u32 %v1467, 7
        %v1469 = vsub.s32 %v1466, %v1468
        %v1470 = vrot.slane %v1442, %v1469
        %v1471 = vcombine.low %v1449, %v1456
        %v1472 = vcombine.high %v1449, %v1456
        %v1473 = vcombine.low %v1463, %v1470
        %v1474 = vcombine.high %v1463, %v1470
        %v1476 = vunpack.c.l.s4 1966171168
        %v1477 = vunpack.c.0.s8 %v1476
        %v1478 = vlaneseq
        %v1479 = vshrl.u32 %v1478, 7
        %v1480 = vsub.s32 %v1477, %v1479
        %v1481 = vrot.slane %v1471, %v1480
        %v1483 = vunpack.c.l.s4 1966171168
        %v1484 = vunpack.c.0.s8 %v1483
        %v1485 = vlaneseq
        %v1486 = vshrl.u32 %v1485, 7
        %v1487 = vsub.s32 %v1484, %v1486
        %v1488 = vrot.slane %v1472, %v1487
        %v1490 = vunpack.c.l.s4 1966171168
        %v1491 = vunpack.c.0.s8 %v1490
        %v1492 = vlaneseq
        %v1493 = vshrl.u32 %v1492, 7
        %v1494 = vsub.s32 %v1491, %v1493
        %v1495 = vrot.slane %v1473, %v1494
        %v1497 = vunpack.c.l.s4 1966171168
        %v1498 = vunpack.c.0.s8 %v1497
        %v1499 = vlaneseq
        %v1500 = vshrl.u32 %v1499, 7
        %v1501 = vsub.s32 %v1498, %v1500
        %v1502 = vrot.slane %v1474, %v1501
        %v1503 = vcombine.low %v1481, %v1495
        %v1504 = vcombine.low %v1488, %v1502
        %v1507 = vmul.f32 %v1354, %v1503
        %v1508 = vmul.f32 %v1358, %v1504
        %v1509 = vmul.f32 %v1362, %v1503
        %v1510 = vmul.f32 %v1366, %v1504
        %v1511 = vmul.f32 %v1370, %v1503
        %v1512 = vmul.f32 %v1374, %v1504
        %v1513 = vmul.f32 %v1378, %v1503
        %v1514 = vmul.f32 %v1382, %v1504
        %v1515 = vmul.f32 %v1386, %v1503
        %v1516 = vmul.f32 %v1390, %v1504
        %v1517 = vmul.f32 %v1394, %v1503
        %v1518 = vmul.f32 %v1398, %v1504
        %v1519 = vmul.f32 %v1402, %v1503
        %v1520 = vmul.f32 %v1406, %v1504
        %v1521 = vmul.f32 %v1410, %v1503
        %v1522 = vmul.f32 %v1414, %v1504
        %v1531 = vlaneseq
        %v1532 = vshrl.u32 %v1531, 7
        %v1533 = vsub.s32 0, %v1532
        %v1534 = vrot.slane %v595, %v1533
        %v1535 = vlaneseq
        %v1536 = vshrl.u32 %v1535, 7
        %v1537 = vsub.s32 1, %v1536
        %v1538 = vrot.slane %v595, %v1537
        %v1539 = vlaneseq
        %v1540 = vshrl.u32 %v1539, 7
        %v1541 = vsub.s32 0, %v1540
        %v1542 = vrot.slane %v596, %v1541
        %v1543 = vlaneseq
        %v1544 = vshrl.u32 %v1543, 7
        %v1545 = vsub.s32 1, %v1544
        %v1546 = vrot.slane %v596, %v1545
        %v1547 = vlaneseq
        %v1548 = vshrl.u32 %v1547, 7
        %v1549 = vsub.s32 0, %v1548
        %v1550 = vrot.slane %v597, %v1549
        %v1551 = vlaneseq
        %v1552 = vshrl.u32 %v1551, 7
        %v1553 = vsub.s32 1, %v1552
        %v1554 = vrot.slane %v597, %v1553
        %v1555 = vlaneseq
        %v1556 = vshrl.u32 %v1555, 7
        %v1557 = vsub.s32 0, %v1556
        %v1558 = vrot.slane %v598, %v1557
        %v1559 = vlaneseq
        %v1560 = vshrl.u32 %v1559, 7
        %v1561 = vsub.s32 1, %v1560
        %v1562 = vrot.slane %v598, %v1561
        %v1563 = vlaneseq
        %v1564 = vshrl.u32 %v1563, 7
        %v1565 = vsub.s32 0, %v1564
        %v1566 = vrot.slane %v599, %v1565
        %v1567 = vlaneseq
        %v1568 = vshrl.u32 %v1567, 7
        %v1569 = vsub.s32 1, %v1568
        %v1570 = vrot.slane %v599, %v1569
        %v1571 = vlaneseq
        %v1572 = vshrl.u32 %v1571, 7
        %v1573 = vsub.s32 0, %v1572
        %v1574 = vrot.slane %v600, %v1573
        %v1575 = vlaneseq
        %v1576 = vshrl.u32 %v1575, 7
        %v1577 = vsub.s32 1, %v1576
        %v1578 = vrot.slane %v600, %v1577
        %v1579 = vlaneseq
        %v1580 = vshrl.u32 %v1579, 7
        %v1581 = vsub.s32 0, %v1580
        %v1582 = vrot.slane %v601, %v1581
        %v1583 = vlaneseq
        %v1584 = vshrl.u32 %v1583, 7
        %v1585 = vsub.s32 1, %v1584
        %v1586 = vrot.slane %v601, %v1585
        %v1587 = vlaneseq
        %v1588 = vshrl.u32 %v1587, 7
        %v1589 = vsub.s32 0, %v1588
        %v1590 = vrot.slane %v602, %v1589
        %v1591 = vlaneseq
        %v1592 = vshrl.u32 %v1591, 7
        %v1593 = vsub.s32 1, %v1592
        %v1594 = vrot.slane %v602, %v1593
        %v1619 = vcombine.low %v891, %v892
        %v1620 = vcombine.low %v893, %v894
        %v1621 = vcombine.low %v895, %v896
        %v1622 = vcombine.low %v897, %v898
        %v1624 = vunpack.c.l.s4 1966171168
        %v1625 = vunpack.c.0.s8 %v1624
        %v1626 = vlaneseq
        %v1627 = vshrl.u32 %v1626, 7
        %v1628 = vsub.s32 %v1625, %v1627
        %v1629 = vrot.slane %v1619, %v1628
        %v1631 = vunpack.c.l.s4 1966171168
        %v1632 = vunpack.c.0.s8 %v1631
        %v1633 = vlaneseq
        %v1634 = vshrl.u32 %v1633, 7
        %v1635 = vsub.s32 %v1632, %v1634
        %v1636 = vrot.slane %v1620, %v1635
        %v1638 = vunpack.c.l.s4 1966171168
        %v1639 = vunpack.c.0.s8 %v1638
        %v1640 = vlaneseq
        %v1641 = vshrl.u32 %v1640, 7
        %v1642 = vsub.s32 %v1639, %v1641
        %v1643 = vrot.slane %v1621, %v1642
        %v1645 = vunpack.c.l.s4 1966171168
        %v1646 = vunpack.c.0.s8 %v1645
        %v1647 = vlaneseq
        %v1648 = vshrl.u32 %v1647, 7
        %v1649 = vsub.s32 %v1646, %v1648
        %v1650 = vrot.slane %v1622, %v1649
        %v1651 = vcombine.low %v1629, %v1636
        %v1652 = vcombine.high %v1629, %v1636
        %v1653 = vcombine.low %v1643, %v1650
        %v1654 = vcombine.high %v1643, %v1650
        %v1656 = vunpack.c.l.s4 1966171168
        %v1657 = vunpack.c.0.s8 %v1656
        %v1658 = vlaneseq
        %v1659 = vshrl.u32 %v1658, 7
        %v1660 = vsub.s32 %v1657, %v1659
        %v1661 = vrot.slane %v1651, %v1660
        %v1663 = vunpack.c.l.s4 1966171168
        %v1664 = vunpack.c.0.s8 %v1663
        %v1665 = vlaneseq
        %v1666 = vshrl.u32 %v1665, 7
        %v1667 = vsub.s32 %v1664, %v1666
        %v1668 = vrot.slane %v1652, %v1667
        %v1670 = vunpack.c.l.s4 1966171168
        %v1671 = vunpack.c.0.s8 %v1670
        %v1672 = vlaneseq
        %v1673 = vshrl.u32 %v1672, 7
        %v1674 = vsub.s32 %v1671, %v1673
        %v1675 = vrot.slane %v1653, %v1674
        %v1677 = vunpack.c.l.s4 1966171168
        %v1678 = vunpack.c.0.s8 %v1677
        %v1679 = vlaneseq
        %v1680 = vshrl.u32 %v1679, 7
        %v1681 = vsub.s32 %v1678, %v1680
        %v1682 = vrot.slane %v1654, %v1681
        %v1683 = vcombine.low %v1661, %v1675
        %v1684 = vcombine.low %v1668, %v1682
        %v1687 = vmul.f32 %v1534, %v1683
        %v1688 = vmul.f32 %v1538, %v1684
        %v1689 = vmul.f32 %v1542, %v1683
        %v1690 = vmul.f32 %v1546, %v1684
        %v1691 = vmul.f32 %v1550, %v1683
        %v1692 = vmul.f32 %v1554, %v1684
        %v1693 = vmul.f32 %v1558, %v1683
        %v1694 = vmul.f32 %v1562, %v1684
        %v1695 = vmul.f32 %v1566, %v1683
        %v1696 = vmul.f32 %v1570, %v1684
        %v1697 = vmul.f32 %v1574, %v1683
        %v1698 = vmul.f32 %v1578, %v1684
        %v1699 = vmul.f32 %v1582, %v1683
        %v1700 = vmul.f32 %v1586, %v1684
        %v1701 = vmul.f32 %v1590, %v1683
        %v1702 = vmul.f32 %v1594, %v1684
        %v1703 = vadd.f32 %v1507, %v1687
        %v1704 = vadd.f32 %v1508, %v1688
        %v1705 = vadd.f32 %v1509, %v1689
        %v1706 = vadd.f32 %v1510, %v1690
        %v1707 = vadd.f32 %v1511, %v1691
        %v1708 = vadd.f32 %v1512, %v1692
        %v1709 = vadd.f32 %v1513, %v1693
        %v1710 = vadd.f32 %v1514, %v1694
        %v1711 = vadd.f32 %v1515, %v1695
        %v1712 = vadd.f32 %v1516, %v1696
        %v1713 = vadd.f32 %v1517, %v1697
        %v1714 = vadd.f32 %v1518, %v1698
        %v1715 = vadd.f32 %v1519, %v1699
        %v1716 = vadd.f32 %v1520, %v1700
        %v1717 = vadd.f32 %v1521, %v1701
        %v1718 = vadd.f32 %v1522, %v1702
        %v1727 = vlaneseq
        %v1728 = vshrl.u32 %v1727, 7
        %v1729 = vsub.s32 0, %v1728
        %v1730 = vrot.slane %v669, %v1729
        %v1731 = vlaneseq
        %v1732 = vshrl.u32 %v1731, 7
        %v1733 = vsub.s32 1, %v1732
        %v1734 = vrot.slane %v669, %v1733
        %v1735 = vlaneseq
        %v1736 = vshrl.u32 %v1735, 7
        %v1737 = vsub.s32 0, %v1736
        %v1738 = vrot.slane %v670, %v1737
        %v1739 = vlaneseq
        %v1740 = vshrl.u32 %v1739, 7
        %v1741 = vsub.s32 1, %v1740
        %v1742 = vrot.slane %v670, %v1741
        %v1743 = vlaneseq
        %v1744 = vshrl.u32 %v1743, 7
        %v1745 = vsub.s32 0, %v1744
        %v1746 = vrot.slane %v671, %v1745
        %v1747 = vlaneseq
        %v1748 = vshrl.u32 %v1747, 7
        %v1749 = vsub.s32 1, %v1748
        %v1750 = vrot.slane %v671, %v1749
        %v1751 = vlaneseq
        %v1752 = vshrl.u32 %v1751, 7
        %v1753 = vsub.s32 0, %v1752
        %v1754 = vrot.slane %v672, %v1753
        %v1755 = vlaneseq
        %v1756 = vshrl.u32 %v1755, 7
        %v1757 = vsub.s32 1, %v1756
        %v1758 = vrot.slane %v672, %v1757
        %v1759 = vlaneseq
        %v1760 = vshrl.u32 %v1759, 7
        %v1761 = vsub.s32 0, %v1760
        %v1762 = vrot.slane %v673, %v1761
        %v1763 = vlaneseq
        %v1764 = vshrl.u32 %v1763, 7
        %v1765 = vsub.s32 1, %v1764
        %v1766 = vrot.slane %v673, %v1765
        %v1767 = vlaneseq
        %v1768 = vshrl.u32 %v1767, 7
        %v1769 = vsub.s32 0, %v1768
        %v1770 = vrot.slane %v674, %v1769
        %v1771 = vlaneseq
        %v1772 = vshrl.u32 %v1771, 7
        %v1773 = vsub.s32 1, %v1772
        %v1774 = vrot.slane %v674, %v1773
        %v1775 = vlaneseq
        %v1776 = vshrl.u32 %v1775, 7
        %v1777 = vsub.s32 0, %v1776
        %v1778 = vrot.slane %v675, %v1777
        %v1779 = vlaneseq
        %v1780 = vshrl.u32 %v1779, 7
        %v1781 = vsub.s32 1, %v1780
        %v1782 = vrot.slane %v675, %v1781
        %v1783 = vlaneseq
        %v1784 = vshrl.u32 %v1783, 7
        %v1785 = vsub.s32 0, %v1784
        %v1786 = vrot.slane %v676, %v1785
        %v1787 = vlaneseq
        %v1788 = vshrl.u32 %v1787, 7
        %v1789 = vsub.s32 1, %v1788
        %v1790 = vrot.slane %v676, %v1789
        %v1815 = vcombine.low %v965, %v966
        %v1816 = vcombine.low %v967, %v968
        %v1817 = vcombine.low %v969, %v970
        %v1818 = vcombine.low %v971, %v972
        %v1820 = vunpack.c.l.s4 1966171168
        %v1821 = vunpack.c.0.s8 %v1820
        %v1822 = vlaneseq
        %v1823 = vshrl.u32 %v1822, 7
        %v1824 = vsub.s32 %v1821, %v1823
        %v1825 = vrot.slane %v1815, %v1824
        %v1827 = vunpack.c.l.s4 1966171168
        %v1828 = vunpack.c.0.s8 %v1827
        %v1829 = vlaneseq
        %v1830 = vshrl.u32 %v1829, 7
        %v1831 = vsub.s32 %v1828, %v1830
        %v1832 = vrot.slane %v1816, %v1831
        %v1834 = vunpack.c.l.s4 1966171168
        %v1835 = vunpack.c.0.s8 %v1834
        %v1836 = vlaneseq
        %v1837 = vshrl.u32 %v1836, 7
        %v1838 = vsub.s32 %v1835, %v1837
        %v1839 = vrot.slane %v1817, %v1838
        %v1841 = vunpack.c.l.s4 1966171168
        %v1842 = vunpack.c.0.s8 %v1841
        %v1843 = vlaneseq
        %v1844 = vshrl.u32 %v1843, 7
        %v1845 = vsub.s32 %v1842, %v1844
        %v1846 = vrot.slane %v1818, %v1845
        %v1847 = vcombine.low %v1825, %v1832
        %v1848 = vcombine.high %v1825, %v1832
        %v1849 = vcombine.low %v1839, %v1846
        %v1850 = vcombine.high %v1839, %v1846
        %v1852 = vunpack.c.l.s4 1966171168
        %v1853 = vunpack.c.0.s8 %v1852
        %v1854 = vlaneseq
        %v1855 = vshrl.u32 %v1854, 7
        %v1856 = vsub.s32 %v1853, %v1855
        %v1857 = vrot.slane %v1847, %v1856
        %v1859 = vunpack.c.l.s4 1966171168
        %v1860 = vunpack.c.0.s8 %v1859
        %v1861 = vlaneseq
        %v1862 = vshrl.u32 %v1861, 7
        %v1863 = vsub.s32 %v1860, %v1862
        %v1864 = vrot.slane %v1848, %v1863
        %v1866 = vunpack.c.l.s4 1966171168
        %v1867 = vunpack.c.0.s8 %v1866
        %v1868 = vlaneseq
        %v1869 = vshrl.u32 %v1868, 7
        %v1870 = vsub.s32 %v1867, %v1869
        %v1871 = vrot.slane %v1849, %v1870
        %v1873 = vunpack.c.l.s4 1966171168
        %v1874 = vunpack.c.0.s8 %v1873
        %v1875 = vlaneseq
        %v1876 = vshrl.u32 %v1875, 7
        %v1877 = vsub.s32 %v1874, %v1876
        %v1878 = vrot.slane %v1850, %v1877
        %v1879 = vcombine.low %v1857, %v1871
        %v1880 = vcombine.low %v1864, %v1878
        %v1883 = vmul.f32 %v1730, %v1879
        %v1884 = vmul.f32 %v1734, %v1880
        %v1885 = vmul.f32 %v1738, %v1879
        %v1886 = vmul.f32 %v1742, %v1880
        %v1887 = vmul.f32 %v1746, %v1879
        %v1888 = vmul.f32 %v1750, %v1880
        %v1889 = vmul.f32 %v1754, %v1879
        %v1890 = vmul.f32 %v1758, %v1880
        %v1891 = vmul.f32 %v1762, %v1879
        %v1892 = vmul.f32 %v1766, %v1880
        %v1893 = vmul.f32 %v1770, %v1879
        %v1894 = vmul.f32 %v1774, %v1880
        %v1895 = vmul.f32 %v1778, %v1879
        %v1896 = vmul.f32 %v1782, %v1880
        %v1897 = vmul.f32 %v1786, %v1879
        %v1898 = vmul.f32 %v1790, %v1880
        %v1899 = vadd.f32 %v1703, %v1883
        %v1900 = vadd.f32 %v1704, %v1884
        %v1901 = vadd.f32 %v1705, %v1885
        %v1902 = vadd.f32 %v1706, %v1886
        %v1903 = vadd.f32 %v1707, %v1887
        %v1904 = vadd.f32 %v1708, %v1888
        %v1905 = vadd.f32 %v1709, %v1889
        %v1906 = vadd.f32 %v1710, %v1890
        %v1907 = vadd.f32 %v1711, %v1891
        %v1908 = vadd.f32 %v1712, %v1892
        %v1909 = vadd.f32 %v1713, %v1893
        %v1910 = vadd.f32 %v1714, %v1894
        %v1911 = vadd.f32 %v1715, %v1895
        %v1912 = vadd.f32 %v1716, %v1896
        %v1913 = vadd.f32 %v1717, %v1897
        %v1914 = vadd.f32 %v1718, %v1898
        %v1923 = vlaneseq
        %v1924 = vshrl.u32 %v1923, 7
        %v1925 = vsub.s32 0, %v1924
        %v1926 = vrot.slane %v743, %v1925
        %v1927 = vlaneseq
        %v1928 = vshrl.u32 %v1927, 7
        %v1929 = vsub.s32 1, %v1928
        %v1930 = vrot.slane %v743, %v1929
        %v1931 = vlaneseq
        %v1932 = vshrl.u32 %v1931, 7
        %v1933 = vsub.s32 0, %v1932
        %v1934 = vrot.slane %v744, %v1933
        %v1935 = vlaneseq
        %v1936 = vshrl.u32 %v1935, 7
        %v1937 = vsub.s32 1, %v1936
        %v1938 = vrot.slane %v744, %v1937
        %v1939 = vlaneseq
        %v1940 = vshrl.u32 %v1939, 7
        %v1941 = vsub.s32 0, %v1940
        %v1942 = vrot.slane %v745, %v1941
        %v1943 = vlaneseq
        %v1944 = vshrl.u32 %v1943, 7
        %v1945 = vsub.s32 1, %v1944
        %v1946 = vrot.slane %v745, %v1945
        %v1947 = vlaneseq
        %v1948 = vshrl.u32 %v1947, 7
        %v1949 = vsub.s32 0, %v1948
        %v1950 = vrot.slane %v746, %v1949
        %v1951 = vlaneseq
        %v1952 = vshrl.u32 %v1951, 7
        %v1953 = vsub.s32 1, %v1952
        %v1954 = vrot.slane %v746, %v1953
        %v1955 = vlaneseq
        %v1956 = vshrl.u32 %v1955, 7
        %v1957 = vsub.s32 0, %v1956
        %v1958 = vrot.slane %v747, %v1957
        %v1959 = vlaneseq
        %v1960 = vshrl.u32 %v1959, 7
        %v1961 = vsub.s32 1, %v1960
        %v1962 = vrot.slane %v747, %v1961
        %v1963 = vlaneseq
        %v1964 = vshrl.u32 %v1963, 7
        %v1965 = vsub.s32 0, %v1964
        %v1966 = vrot.slane %v748, %v1965
        %v1967 = vlaneseq
        %v1968 = vshrl.u32 %v1967, 7
        %v1969 = vsub.s32 1, %v1968
        %v1970 = vrot.slane %v748, %v1969
        %v1971 = vlaneseq
        %v1972 = vshrl.u32 %v1971, 7
        %v1973 = vsub.s32 0, %v1972
        %v1974 = vrot.slane %v749, %v1973
        %v1975 = vlaneseq
        %v1976 = vshrl.u32 %v1975, 7
        %v1977 = vsub.s32 1, %v1976
        %v1978 = vrot.slane %v749, %v1977
        %v1979 = vlaneseq
        %v1980 = vshrl.u32 %v1979, 7
        %v1981 = vsub.s32 0, %v1980
        %v1982 = vrot.slane %v750, %v1981
        %v1983 = vlaneseq
        %v1984 = vshrl.u32 %v1983, 7
        %v1985 = vsub.s32 1, %v1984
        %v1986 = vrot.slane %v750, %v1985
        %v2011 = vcombine.low %v1039, %v1040
        %v2012 = vcombine.low %v1041, %v1042
        %v2013 = vcombine.low %v1043, %v1044
        %v2014 = vcombine.low %v1045, %v1046
        %v2016 = vunpack.c.l.s4 1966171168
        %v2017 = vunpack.c.0.s8 %v2016
        %v2018 = vlaneseq
        %v2019 = vshrl.u32 %v2018, 7
        %v2020 = vsub.s32 %v2017, %v2019
        %v2021 = vrot.slane %v2011, %v2020
        %v2023 = vunpack.c.l.s4 1966171168
        %v2024 = vunpack.c.0.s8 %v2023
        %v2025 = vlaneseq
        %v2026 = vshrl.u32 %v2025, 7
        %v2027 = vsub.s32 %v2024, %v2026
        %v2028 = vrot.slane %v2012, %v2027
        %v2030 = vunpack.c.l.s4 1966171168
        %v2031 = vunpack.c.0.s8 %v2030
        %v2032 = vlaneseq
        %v2033 = vshrl.u32 %v2032, 7
        %v2034 = vsub.s32 %v2031, %v2033
        %v2035 = vrot.slane %v2013, %v2034
        %v2037 = vunpack.c.l.s4 1966171168
        %v2038 = vunpack.c.0.s8 %v2037
        %v2039 = vlaneseq
        %v2040 = vshrl.u32 %v2039, 7
        %v2041 = vsub.s32 %v2038, %v2040
        %v2042 = vrot.slane %v2014, %v2041
        %v2043 = vcombine.low %v2021, %v2028
        %v2044 = vcombine.high %v2021, %v2028
        %v2045 = vcombine.low %v2035, %v2042
        %v2046 = vcombine.high %v2035, %v2042
        %v2048 = vunpack.c.l.s4 1966171168
        %v2049 = vunpack.c.0.s8 %v2048
        %v2050 = vlaneseq
        %v2051 = vshrl.u32 %v2050, 7
        %v2052 = vsub.s32 %v2049, %v2051
        %v2053 = vrot.slane %v2043, %v2052
        %v2055 = vunpack.c.l.s4 1966171168
        %v2056 = vunpack.c.0.s8 %v2055
        %v2057 = vlaneseq
        %v2058 = vshrl.u32 %v2057, 7
        %v2059 = vsub.s32 %v2056, %v2058
        %v2060 = vrot.slane %v2044, %v2059
        %v2062 = vunpack.c.l.s4 1966171168
        %v2063 = vunpack.c.0.s8 %v2062
        %v2064 = vlaneseq
        %v2065 = vshrl.u32 %v2064, 7
        %v2066 = vsub.s32 %v2063, %v2065
        %v2067 = vrot.slane %v2045, %v2066
        %v2069 = vunpack.c.l.s4 1966171168
        %v2070 = vunpack.c.0.s8 %v2069
        %v2071 = vlaneseq
        %v2072 = vshrl.u32 %v2071, 7
        %v2073 = vsub.s32 %v2070, %v2072
        %v2074 = vrot.slane %v2046, %v2073
        %v2075 = vcombine.low %v2053, %v2067
        %v2076 = vcombine.low %v2060, %v2074
        %v2079 = vmul.f32 %v1926, %v2075
        %v2080 = vmul.f32 %v1930, %v2076
        %v2081 = vmul.f32 %v1934, %v2075
        %v2082 = vmul.f32 %v1938, %v2076
        %v2083 = vmul.f32 %v1942, %v2075
        %v2084 = vmul.f32 %v1946, %v2076
        %v2085 = vmul.f32 %v1950, %v2075
        %v2086 = vmul.f32 %v1954, %v2076
        %v2087 = vmul.f32 %v1958, %v2075
        %v2088 = vmul.f32 %v1962, %v2076
        %v2089 = vmul.f32 %v1966, %v2075
        %v2090 = vmul.f32 %v1970, %v2076
        %v2091 = vmul.f32 %v1974, %v2075
        %v2092 = vmul.f32 %v1978, %v2076
        %v2093 = vmul.f32 %v1982, %v2075
        %v2094 = vmul.f32 %v1986, %v2076
        %v2095 = vadd.f32 %v1899, %v2079
        %v2096 = vadd.f32 %v1900, %v2080
        %v2097 = vadd.f32 %v1901, %v2081
        %v2098 = vadd.f32 %v1902, %v2082
        %v2099 = vadd.f32 %v1903, %v2083
        %v2100 = vadd.f32 %v1904, %v2084
        %v2101 = vadd.f32 %v1905, %v2085
        %v2102 = vadd.f32 %v1906, %v2086
        %v2103 = vadd.f32 %v1907, %v2087
        %v2104 = vadd.f32 %v1908, %v2088
        %v2105 = vadd.f32 %v1909, %v2089
        %v2106 = vadd.f32 %v1910, %v2090
        %v2107 = vadd.f32 %v1911, %v2091
        %v2108 = vadd.f32 %v1912, %v2092
        %v2109 = vadd.f32 %v1913, %v2093
        %v2110 = vadd.f32 %v1914, %v2094
        %v2111 = vrot.slane %v2095, 4
        %v2112 = vmax.f32 %v2095, %v2111
        %v2113 = vrot.slane %v2112, 2
        %v2114 = vmax.f32 %v2112, %v2113
        %v2115 = vrot.slane %v2114, 1
        %v2116 = vmax.f32 %v2114, %v2115
        %v2117 = vrot.slane %v2096, 4
        %v2118 = vmax.f32 %v2096, %v2117
        %v2119 = vrot.slane %v2118, 2
        %v2120 = vmax.f32 %v2118, %v2119
        %v2121 = vrot.slane %v2120, 1
        %v2122 = vmax.f32 %v2120, %v2121
        %v2123 = vrot.slane %v2097, 4
        %v2124 = vmax.f32 %v2097, %v2123
        %v2125 = vrot.slane %v2124, 2
        %v2126 = vmax.f32 %v2124, %v2125
        %v2127 = vrot.slane %v2126, 1
        %v2128 = vmax.f32 %v2126, %v2127
        %v2129 = vrot.slane %v2098, 4
        %v2130 = vmax.f32 %v2098, %v2129
        %v2131 = vrot.slane %v2130, 2
        %v2132 = vmax.f32 %v2130, %v2131
        %v2133 = vrot.slane %v2132, 1
        %v2134 = vmax.f32 %v2132, %v2133
        %v2135 = vrot.slane %v2099, 4
        %v2136 = vmax.f32 %v2099, %v2135
        %v2137 = vrot.slane %v2136, 2
        %v2138 = vmax.f32 %v2136, %v2137
        %v2139 = vrot.slane %v2138, 1
        %v2140 = vmax.f32 %v2138, %v2139
        %v2141 = vrot.slane %v2100, 4
        %v2142 = vmax.f32 %v2100, %v2141
        %v2143 = vrot.slane %v2142, 2
        %v2144 = vmax.f32 %v2142, %v2143
        %v2145 = vrot.slane %v2144, 1
        %v2146 = vmax.f32 %v2144, %v2145
        %v2147 = vrot.slane %v2101, 4
        %v2148 = vmax.f32 %v2101, %v2147
        %v2149 = vrot.slane %v2148, 2
        %v2150 = vmax.f32 %v2148, %v2149
        %v2151 = vrot.slane %v2150, 1
        %v2152 = vmax.f32 %v2150, %v2151
        %v2153 = vrot.slane %v2102, 4
        %v2154 = vmax.f32 %v2102, %v2153
        %v2155 = vrot.slane %v2154, 2
        %v2156 = vmax.f32 %v2154, %v2155
        %v2157 = vrot.slane %v2156, 1
        %v2158 = vmax.f32 %v2156, %v2157
        %v2159 = vrot.slane %v2103, 4
        %v2160 = vmax.f32 %v2103, %v2159
        %v2161 = vrot.slane %v2160, 2
        %v2162 = vmax.f32 %v2160, %v2161
        %v2163 = vrot.slane %v2162, 1
        %v2164 = vmax.f32 %v2162, %v2163
        %v2165 = vrot.slane %v2104, 4
        %v2166 = vmax.f32 %v2104, %v2165
        %v2167 = vrot.slane %v2166, 2
        %v2168 = vmax.f32 %v2166, %v2167
        %v2169 = vrot.slane %v2168, 1
        %v2170 = vmax.f32 %v2168, %v2169
        %v2171 = vrot.slane %v2105, 4
        %v2172 = vmax.f32 %v2105, %v2171
        %v2173 = vrot.slane %v2172, 2
        %v2174 = vmax.f32 %v2172, %v2173
        %v2175 = vrot.slane %v2174, 1
        %v2176 = vmax.f32 %v2174, %v2175
        %v2177 = vrot.slane %v2106, 4
        %v2178 = vmax.f32 %v2106, %v2177
        %v2179 = vrot.slane %v2178, 2
        %v2180 = vmax.f32 %v2178, %v2179
        %v2181 = vrot.slane %v2180, 1
        %v2182 = vmax.f32 %v2180, %v2181
        %v2183 = vrot.slane %v2107, 4
        %v2184 = vmax.f32 %v2107, %v2183
        %v2185 = vrot.slane %v2184, 2
        %v2186 = vmax.f32 %v2184, %v2185
        %v2187 = vrot.slane %v2186, 1
        %v2188 = vmax.f32 %v2186, %v2187
        %v2189 = vrot.slane %v2108, 4
        %v2190 = vmax.f32 %v2108, %v2189
        %v2191 = vrot.slane %v2190, 2
        %v2192 = vmax.f32 %v2190, %v2191
        %v2193 = vrot.slane %v2192, 1
        %v2194 = vmax.f32 %v2192, %v2193
        %v2195 = vrot.slane %v2109, 4
        %v2196 = vmax.f32 %v2109, %v2195
        %v2197 = vrot.slane %v2196, 2
        %v2198 = vmax.f32 %v2196, %v2197
        %v2199 = vrot.slane %v2198, 1
        %v2200 = vmax.f32 %v2198, %v2199
        %v2201 = vrot.slane %v2110, 4
        %v2202 = vmax.f32 %v2110, %v2201
        %v2203 = vrot.slane %v2202, 2
        %v2204 = vmax.f32 %v2202, %v2203
        %v2205 = vrot.slane %v2204, 1
        %v2206 = vmax.f32 %v2204, %v2205
        %v2207 = vsub.f32 %v2095, %v2116
        %v2208 = vsub.f32 %v2096, %v2122
        %v2209 = vsub.f32 %v2097, %v2128
        %v2210 = vsub.f32 %v2098, %v2134
        %v2211 = vsub.f32 %v2099, %v2140
        %v2212 = vsub.f32 %v2100, %v2146
        %v2213 = vsub.f32 %v2101, %v2152
        %v2214 = vsub.f32 %v2102, %v2158
        %v2215 = vsub.f32 %v2103, %v2164
        %v2216 = vsub.f32 %v2104, %v2170
        %v2217 = vsub.f32 %v2105, %v2176
        %v2218 = vsub.f32 %v2106, %v2182
        %v2219 = vsub.f32 %v2107, %v2188
        %v2220 = vsub.f32 %v2108, %v2194
        %v2221 = vsub.f32 %v2109, %v2200
        %v2222 = vsub.f32 %v2110, %v2206
        %v2223 = vmul.f32 %v2207, 1.442695
        %v2224 = vpow.pop %v2223
        %v2225 = vmul.f32 %v2208, 1.442695
        %v2226 = vpow.pop %v2225
        %v2227 = vmul.f32 %v2209, 1.442695
        %v2228 = vpow.pop %v2227
        %v2229 = vmul.f32 %v2210, 1.442695
        %v2230 = vpow.pop %v2229
        %v2231 = vmul.f32 %v2211, 1.442695
        %v2232 = vpow.pop %v2231
        %v2233 = vmul.f32 %v2212, 1.442695
        %v2234 = vpow.pop %v2233
        %v2235 = vmul.f32 %v2213, 1.442695
        %v2236 = vpow.pop %v2235
        %v2237 = vmul.f32 %v2214, 1.442695
        %v2238 = vpow.pop %v2237
        %v2239 = vmul.f32 %v2215, 1.442695
        %v2240 = vpow.pop %v2239
        %v2241 = vmul.f32 %v2216, 1.442695
        %v2242 = vpow.pop %v2241
        %v2243 = vmul.f32 %v2217, 1.442695
        %v2244 = vpow.pop %v2243
        %v2245 = vmul.f32 %v2218, 1.442695
        %v2246 = vpow.pop %v2245
        %v2247 = vmul.f32 %v2219, 1.442695
        %v2248 = vpow.pop %v2247
        %v2249 = vmul.f32 %v2220, 1.442695
        %v2250 = vpow.pop %v2249
        %v2251 = vmul.f32 %v2221, 1.442695
        %v2252 = vpow.pop %v2251
        %v2253 = vmul.f32 %v2222, 1.442695
        %v2254 = vpow.pop %v2253
        %v2255 = vrot.slane %v2224, 4
        %v2256 = vadd.f32 %v2224, %v2255
        %v2257 = vrot.slane %v2256, 2
        %v2258 = vadd.f32 %v2256, %v2257
        %v2259 = vrot.slane %v2258, 1
        %v2260 = vadd.f32 %v2258, %v2259
        %v2261 = vrot.slane %v2226, 4
        %v2262 = vadd.f32 %v2226, %v2261
        %v2263 = vrot.slane %v2262, 2
        %v2264 = vadd.f32 %v2262, %v2263
        %v2265 = vrot.slane %v2264, 1
        %v2266 = vadd.f32 %v2264, %v2265
        %v2267 = vrot.slane %v2228, 4
        %v2268 = vadd.f32 %v2228, %v2267
        %v2269 = vrot.slane %v2268, 2
        %v2270 = vadd.f32 %v2268, %v2269
        %v2271 = vrot.slane %v2270, 1
        %v2272 = vadd.f32 %v2270, %v2271
        %v2273 = vrot.slane %v2230, 4
        %v2274 = vadd.f32 %v2230, %v2273
        %v2275 = vrot.slane %v2274, 2
        %v2276 = vadd.f32 %v2274, %v2275
        %v2277 = vrot.slane %v2276, 1
        %v2278 = vadd.f32 %v2276, %v2277
        %v2279 = vrot.slane %v2232, 4
        %v2280 = vadd.f32 %v2232, %v2279
        %v2281 = vrot.slane %v2280, 2
        %v2282 = vadd.f32 %v2280, %v2281
        %v2283 = vrot.slane %v2282, 1
        %v2284 = vadd.f32 %v2282, %v2283
        %v2285 = vrot.slane %v2234, 4
        %v2286 = vadd.f32 %v2234, %v2285
        %v2287 = vrot.slane %v2286, 2
        %v2288 = vadd.f32 %v2286, %v2287
        %v2289 = vrot.slane %v2288, 1
        %v2290 = vadd.f32 %v2288, %v2289
        %v2291 = vrot.slane %v2236, 4
        %v2292 = vadd.f32 %v2236, %v2291
        %v2293 = vrot.slane %v2292, 2
        %v2294 = vadd.f32 %v2292, %v2293
        %v2295 = vrot.slane %v2294, 1
        %v2296 = vadd.f32 %v2294, %v2295
        %v2297 = vrot.slane %v2238, 4
        %v2298 = vadd.f32 %v2238, %v2297
        %v2299 = vrot.slane %v2298, 2
        %v2300 = vadd.f32 %v2298, %v2299
        %v2301 = vrot.slane %v2300, 1
        %v2302 = vadd.f32 %v2300, %v2301
        %v2303 = vrot.slane %v2240, 4
        %v2304 = vadd.f32 %v2240, %v2303
        %v2305 = vrot.slane %v2304, 2
        %v2306 = vadd.f32 %v2304, %v2305
        %v2307 = vrot.slane %v2306, 1
        %v2308 = vadd.f32 %v2306, %v2307
        %v2309 = vrot.slane %v2242, 4
        %v2310 = vadd.f32 %v2242, %v2309
        %v2311 = vrot.slane %v2310, 2
        %v2312 = vadd.f32 %v2310, %v2311
        %v2313 = vrot.slane %v2312, 1
        %v2314 = vadd.f32 %v2312, %v2313
        %v2315 = vrot.slane %v2244, 4
        %v2316 = vadd.f32 %v2244, %v2315
        %v2317 = vrot.slane %v2316, 2
        %v2318 = vadd.f32 %v2316, %v2317
        %v2319 = vrot.slane %v2318, 1
        %v2320 = vadd.f32 %v2318, %v2319
        %v2321 = vrot.slane %v2246, 4
        %v2322 = vadd.f32 %v2246, %v2321
        %v2323 = vrot.slane %v2322, 2
        %v2324 = vadd.f32 %v2322, %v2323
        %v2325 = vrot.slane %v2324, 1
        %v2326 = vadd.f32 %v2324, %v2325
        %v2327 = vrot.slane %v2248, 4
        %v2328 = vadd.f32 %v2248, %v2327
        %v2329 = vrot.slane %v2328, 2
        %v2330 = vadd.f32 %v2328, %v2329
        %v2331 = vrot.slane %v2330, 1
        %v2332 = vadd.f32 %v2330, %v2331
        %v2333 = vrot.slane %v2250, 4
        %v2334 = vadd.f32 %v2250, %v2333
        %v2335 = vrot.slane %v2334, 2
        %v2336 = vadd.f32 %v2334, %v2335
        %v2337 = vrot.slane %v2336, 1
        %v2338 = vadd.f32 %v2336, %v2337
        %v2339 = vrot.slane %v2252, 4
        %v2340 = vadd.f32 %v2252, %v2339
        %v2341 = vrot.slane %v2340, 2
        %v2342 = vadd.f32 %v2340, %v2341
        %v2343 = vrot.slane %v2342, 1
        %v2344 = vadd.f32 %v2342, %v2343
        %v2345 = vrot.slane %v2254, 4
        %v2346 = vadd.f32 %v2254, %v2345
        %v2347 = vrot.slane %v2346, 2
        %v2348 = vadd.f32 %v2346, %v2347
        %v2349 = vrot.slane %v2348, 1
        %v2350 = vadd.f32 %v2348, %v2349
        %v2351 = vrcp.pop %v2260
        %v2352 = vmul.f32 1.0, %v2351
        %v2353 = vrcp.pop %v2266
        %v2354 = vmul.f32 1.0, %v2353
        %v2355 = vrcp.pop %v2272
        %v2356 = vmul.f32 1.0, %v2355
        %v2357 = vrcp.pop %v2278
        %v2358 = vmul.f32 1.0, %v2357
        %v2359 = vrcp.pop %v2284
        %v2360 = vmul.f32 1.0, %v2359
        %v2361 = vrcp.pop %v2290
        %v2362 = vmul.f32 1.0, %v2361
        %v2363 = vrcp.pop %v2296
        %v2364 = vmul.f32 1.0, %v2363
        %v2365 = vrcp.pop %v2302
        %v2366 = vmul.f32 1.0, %v2365
        %v2367 = vrcp.pop %v2308
        %v2368 = vmul.f32 1.0, %v2367
        %v2369 = vrcp.pop %v2314
        %v2370 = vmul.f32 1.0, %v2369
        %v2371 = vrcp.pop %v2320
        %v2372 = vmul.f32 1.0, %v2371
        %v2373 = vrcp.pop %v2326
        %v2374 = vmul.f32 1.0, %v2373
        %v2375 = vrcp.pop %v2332
        %v2376 = vmul.f32 1.0, %v2375
        %v2377 = vrcp.pop %v2338
        %v2378 = vmul.f32 1.0, %v2377
        %v2379 = vrcp.pop %v2344
        %v2380 = vmul.f32 1.0, %v2379
        %v2381 = vrcp.pop %v2350
        %v2382 = vmul.f32 1.0, %v2381
        %v2391 = vcombine.low %v1113, %v1114
        %v2392 = vcombine.low %v1115, %v1116
        %v2393 = vcombine.low %v1117, %v1118
        %v2394 = vcombine.low %v1119, %v1120
        %v2396 = vunpack.c.l.s4 1966171168
        %v2397 = vunpack.c.0.s8 %v2396
        %v2398 = vlaneseq
        %v2399 = vshrl.u32 %v2398, 7
        %v2400 = vsub.s32 %v2397, %v2399
        %v2401 = vrot.slane %v2391, %v2400
        %v2403 = vunpack.c.l.s4 1966171168
        %v2404 = vunpack.c.0.s8 %v2403
        %v2405 = vlaneseq
        %v2406 = vshrl.u32 %v2405, 7
        %v2407 = vsub.s32 %v2404, %v2406
        %v2408 = vrot.slane %v2392, %v2407
        %v2410 = vunpack.c.l.s4 1966171168
        %v2411 = vunpack.c.0.s8 %v2410
        %v2412 = vlaneseq
        %v2413 = vshrl.u32 %v2412, 7
        %v2414 = vsub.s32 %v2411, %v2413
        %v2415 = vrot.slane %v2393, %v2414
        %v2417 = vunpack.c.l.s4 1966171168
        %v2418 = vunpack.c.0.s8 %v2417
        %v2419 = vlaneseq
        %v2420 = vshrl.u32 %v2419, 7
        %v2421 = vsub.s32 %v2418, %v2420
        %v2422 = vrot.slane %v2394, %v2421
        %v2423 = vcombine.low %v2401, %v2408
        %v2424 = vcombine.high %v2401, %v2408
        %v2425 = vcombine.low %v2415, %v2422
        %v2426 = vcombine.high %v2415, %v2422
        %v2428 = vunpack.c.l.s4 1966171168
        %v2429 = vunpack.c.0.s8 %v2428
        %v2430 = vlaneseq
        %v2431 = vshrl.u32 %v2430, 7
        %v2432 = vsub.s32 %v2429, %v2431
        %v2433 = vrot.slane %v2423, %v2432
        %v2435 = vunpack.c.l.s4 1966171168
        %v2436 = vunpack.c.0.s8 %v2435
        %v2437 = vlaneseq
        %v2438 = vshrl.u32 %v2437, 7
        %v2439 = vsub.s32 %v2436, %v2438
        %v2440 = vrot.slane %v2424, %v2439
        %v2442 = vunpack.c.l.s4 1966171168
        %v2443 = vunpack.c.0.s8 %v2442
        %v2444 = vlaneseq
        %v2445 = vshrl.u32 %v2444, 7
        %v2446 = vsub.s32 %v2443, %v2445
        %v2447 = vrot.slane %v2425, %v2446
        %v2449 = vunpack.c.l.s4 1966171168
        %v2450 = vunpack.c.0.s8 %v2449
        %v2451 = vlaneseq
        %v2452 = vshrl.u32 %v2451, 7
        %v2453 = vsub.s32 %v2450, %v2452
        %v2454 = vrot.slane %v2426, %v2453
        %v2455 = vcombine.low %v2433, %v2447
        %v2456 = vcombine.low %v2440, %v2454
        %v2459 = vmul.f32 %v2224, %v2455
        %v2460 = vmul.f32 %v2226, %v2456
        %v2461 = vmul.f32 %v2228, %v2455
        %v2462 = vmul.f32 %v2230, %v2456
        %v2463 = vmul.f32 %v2232, %v2455
        %v2464 = vmul.f32 %v2234, %v2456
        %v2465 = vmul.f32 %v2236, %v2455
        %v2466 = vmul.f32 %v2238, %v2456
        %v2467 = vmul.f32 %v2240, %v2455
        %v2468 = vmul.f32 %v2242, %v2456
        %v2469 = vmul.f32 %v2244, %v2455
        %v2470 = vmul.f32 %v2246, %v2456
        %v2471 = vmul.f32 %v2248, %v2455
        %v2472 = vmul.f32 %v2250, %v2456
        %v2473 = vmul.f32 %v2252, %v2455
        %v2474 = vmul.f32 %v2254, %v2456
        %v2475 = vrot.slane %v2459, 4
        %v2476 = vadd.f32 %v2459, %v2475
        %v2477 = vrot.slane %v2476, 2
        %v2478 = vadd.f32 %v2476, %v2477
        %v2479 = vrot.slane %v2478, 1
        %v2480 = vadd.f32 %v2478, %v2479
        %v2481 = vrot.slane %v2460, 4
        %v2482 = vadd.f32 %v2460, %v2481
        %v2483 = vrot.slane %v2482, 2
        %v2484 = vadd.f32 %v2482, %v2483
        %v2485 = vrot.slane %v2484, 1
        %v2486 = vadd.f32 %v2484, %v2485
        %v2487 = vrot.slane %v2461, 4
        %v2488 = vadd.f32 %v2461, %v2487
        %v2489 = vrot.slane %v2488, 2
        %v2490 = vadd.f32 %v2488, %v2489
        %v2491 = vrot.slane %v2490, 1
        %v2492 = vadd.f32 %v2490, %v2491
        %v2493 = vrot.slane %v2462, 4
        %v2494 = vadd.f32 %v2462, %v2493
        %v2495 = vrot.slane %v2494, 2
        %v2496 = vadd.f32 %v2494, %v2495
        %v2497 = vrot.slane %v2496, 1
        %v2498 = vadd.f32 %v2496, %v2497
        %v2499 = vrot.slane %v2463, 4
        %v2500 = vadd.f32 %v2463, %v2499
        %v2501 = vrot.slane %v2500, 2
        %v2502 = vadd.f32 %v2500, %v2501
        %v2503 = vrot.slane %v2502, 1
        %v2504 = vadd.f32 %v2502, %v2503
        %v2505 = vrot.slane %v2464, 4
        %v2506 = vadd.f32 %v2464, %v2505
        %v2507 = vrot.slane %v2506, 2
        %v2508 = vadd.f32 %v2506, %v2507
        %v2509 = vrot.slane %v2508, 1
        %v2510 = vadd.f32 %v2508, %v2509
        %v2511 = vrot.slane %v2465, 4
        %v2512 = vadd.f32 %v2465, %v2511
        %v2513 = vrot.slane %v2512, 2
        %v2514 = vadd.f32 %v2512, %v2513
        %v2515 = vrot.slane %v2514, 1
        %v2516 = vadd.f32 %v2514, %v2515
        %v2517 = vrot.slane %v2466, 4
        %v2518 = vadd.f32 %v2466, %v2517
        %v2519 = vrot.slane %v2518, 2
        %v2520 = vadd.f32 %v2518, %v2519
        %v2521 = vrot.slane %v2520, 1
        %v2522 = vadd.f32 %v2520, %v2521
        %v2523 = vrot.slane %v2467, 4
        %v2524 = vadd.f32 %v2467, %v2523
        %v2525 = vrot.slane %v2524, 2
        %v2526 = vadd.f32 %v2524, %v2525
        %v2527 = vrot.slane %v2526, 1
        %v2528 = vadd.f32 %v2526, %v2527
        %v2529 = vrot.slane %v2468, 4
        %v2530 = vadd.f32 %v2468, %v2529
        %v2531 = vrot.slane %v2530, 2
        %v2532 = vadd.f32 %v2530, %v2531
        %v2533 = vrot.slane %v2532, 1
        %v2534 = vadd.f32 %v2532, %v2533
        %v2535 = vrot.slane %v2469, 4
        %v2536 = vadd.f32 %v2469, %v2535
        %v2537 = vrot.slane %v2536, 2
        %v2538 = vadd.f32 %v2536, %v2537
        %v2539 = vrot.slane %v2538, 1
        %v2540 = vadd.f32 %v2538, %v2539
        %v2541 = vrot.slane %v2470, 4
        %v2542 = vadd.f32 %v2470, %v2541
        %v2543 = vrot.slane %v2542, 2
        %v2544 = vadd.f32 %v2542, %v2543
        %v2545 = vrot.slane %v2544, 1
        %v2546 = vadd.f32 %v2544, %v2545
        %v2547 = vrot.slane %v2471, 4
        %v2548 = vadd.f32 %v2471, %v2547
        %v2549 = vrot.slane %v2548, 2
        %v2550 = vadd.f32 %v2548, %v2549
        %v2551 = vrot.slane %v2550, 1
        %v2552 = vadd.f32 %v2550, %v2551
        %v2553 = vrot.slane %v2472, 4
        %v2554 = vadd.f32 %v2472, %v2553
        %v2555 = vrot.slane %v2554, 2
        %v2556 = vadd.f32 %v2554, %v2555
        %v2557 = vrot.slane %v2556, 1
        %v2558 = vadd.f32 %v2556, %v2557
        %v2559 = vrot.slane %v2473, 4
        %v2560 = vadd.f32 %v2473, %v2559
        %v2561 = vrot.slane %v2560, 2
        %v2562 = vadd.f32 %v2560, %v2561
        %v2563 = vrot.slane %v2562, 1
        %v2564 = vadd.f32 %v2562, %v2563
        %v2565 = vrot.slane %v2474, 4
        %v2566 = vadd.f32 %v2474, %v2565
        %v2567 = vrot.slane %v2566, 2
        %v2568 = vadd.f32 %v2566, %v2567
        %v2569 = vrot.slane %v2568, 1
        %v2570 = vadd.f32 %v2568, %v2569
        %v2571 = vmul.f32 %v2480, %v2352
        %v2572 = vmul.f32 %v2486, %v2354
        %v2573 = vmul.f32 %v2492, %v2356
        %v2574 = vmul.f32 %v2498, %v2358
        %v2575 = vmul.f32 %v2504, %v2360
        %v2576 = vmul.f32 %v2510, %v2362
        %v2577 = vmul.f32 %v2516, %v2364
        %v2578 = vmul.f32 %v2522, %v2366
        %v2579 = vmul.f32 %v2528, %v2368
        %v2580 = vmul.f32 %v2534, %v2370
        %v2581 = vmul.f32 %v2540, %v2372
        %v2582 = vmul.f32 %v2546, %v2374
        %v2583 = vmul.f32 %v2552, %v2376
        %v2584 = vmul.f32 %v2558, %v2378
        %v2585 = vmul.f32 %v2564, %v2380
        %v2586 = vmul.f32 %v2570, %v2382
        %v2595 = vlaneseq
        %v2596 = vshrl.u32 %v2595, 7
        %v2597 = vsub.s32 0, %v2596
        %v2598 = vrot.slane %v392, %v2597
        %v2599 = vlaneseq
        %v2600 = vshrl.u32 %v2599, 7
        %v2601 = vsub.s32 1, %v2600
        %v2602 = vrot.slane %v392, %v2601
        %v2603 = vlaneseq
        %v2604 = vshrl.u32 %v2603, 7
        %v2605 = vsub.s32 0, %v2604
        %v2606 = vrot.slane %v394, %v2605
        %v2607 = vlaneseq
        %v2608 = vshrl.u32 %v2607, 7
        %v2609 = vsub.s32 1, %v2608
        %v2610 = vrot.slane %v394, %v2609
        %v2611 = vlaneseq
        %v2612 = vshrl.u32 %v2611, 7
        %v2613 = vsub.s32 0, %v2612
        %v2614 = vrot.slane %v396, %v2613
        %v2615 = vlaneseq
        %v2616 = vshrl.u32 %v2615, 7
        %v2617 = vsub.s32 1, %v2616
        %v2618 = vrot.slane %v396, %v2617
        %v2619 = vlaneseq
        %v2620 = vshrl.u32 %v2619, 7
        %v2621 = vsub.s32 0, %v2620
        %v2622 = vrot.slane %v398, %v2621
        %v2623 = vlaneseq
        %v2624 = vshrl.u32 %v2623, 7
        %v2625 = vsub.s32 1, %v2624
        %v2626 = vrot.slane %v398, %v2625
        %v2627 = vlaneseq
        %v2628 = vshrl.u32 %v2627, 7
        %v2629 = vsub.s32 0, %v2628
        %v2630 = vrot.slane %v400, %v2629
        %v2631 = vlaneseq
        %v2632 = vshrl.u32 %v2631, 7
        %v2633 = vsub.s32 1, %v2632
        %v2634 = vrot.slane %v400, %v2633
        %v2635 = vlaneseq
        %v2636 = vshrl.u32 %v2635, 7
        %v2637 = vsub.s32 0, %v2636
        %v2638 = vrot.slane %v402, %v2637
        %v2639 = vlaneseq
        %v2640 = vshrl.u32 %v2639, 7
        %v2641 = vsub.s32 1, %v2640
        %v2642 = vrot.slane %v402, %v2641
        %v2643 = vlaneseq
        %v2644 = vshrl.u32 %v2643, 7
        %v2645 = vsub.s32 0, %v2644
        %v2646 = vrot.slane %v404, %v2645
        %v2647 = vlaneseq
        %v2648 = vshrl.u32 %v2647, 7
        %v2649 = vsub.s32 1, %v2648
        %v2650 = vrot.slane %v404, %v2649
        %v2651 = vlaneseq
        %v2652 = vshrl.u32 %v2651, 7
        %v2653 = vsub.s32 0, %v2652
        %v2654 = vrot.slane %v406, %v2653
        %v2655 = vlaneseq
        %v2656 = vshrl.u32 %v2655, 7
        %v2657 = vsub.s32 1, %v2656
        %v2658 = vrot.slane %v406, %v2657
        %v2675 = vadd.f32 %v2571, %v2598
        %v2676 = vadd.f32 %v2572, %v2602
        %v2677 = vadd.f32 %v2573, %v2606
        %v2678 = vadd.f32 %v2574, %v2610
        %v2679 = vadd.f32 %v2575, %v2614
        %v2680 = vadd.f32 %v2576, %v2618
        %v2681 = vadd.f32 %v2577, %v2622
        %v2682 = vadd.f32 %v2578, %v2626
        %v2683 = vadd.f32 %v2579, %v2630
        %v2684 = vadd.f32 %v2580, %v2634
        %v2685 = vadd.f32 %v2581, %v2638
        %v2686 = vadd.f32 %v2582, %v2642
        %v2687 = vadd.f32 %v2583, %v2646
        %v2688 = vadd.f32 %v2584, %v2650
        %v2689 = vadd.f32 %v2585, %v2654
        %v2690 = vadd.f32 %v2586, %v2658
        %v2707 = vcombine.low %v2675, %v2676
        %v2709 = vunpack.c.l.s4 1966171168
        %v2710 = vunpack.c.0.s8 %v2709
        %v2711 = vlaneseq
        %v2712 = vshrl.u32 %v2711, 7
        %v2713 = vsub.s32 %v2710, %v2712
        %v2714 = vrot.slane %v2707, %v2713
        %v2716 = vunpack.c.l.s4 1966171168
        %v2717 = vunpack.c.0.s8 %v2716
        %v2718 = vlaneseq
        %v2719 = vshrl.u32 %v2718, 7
        %v2720 = vsub.s32 %v2717, %v2719
        %v2721 = vrot.slane %v2714, %v2720
        %v2722 = vcombine.low %v2677, %v2678
        %v2724 = vunpack.c.l.s4 1966171168
        %v2725 = vunpack.c.0.s8 %v2724
        %v2726 = vlaneseq
        %v2727 = vshrl.u32 %v2726, 7
        %v2728 = vsub.s32 %v2725, %v2727
        %v2729 = vrot.slane %v2722, %v2728
        %v2731 = vunpack.c.l.s4 1966171168
        %v2732 = vunpack.c.0.s8 %v2731
        %v2733 = vlaneseq
        %v2734 = vshrl.u32 %v2733, 7
        %v2735 = vsub.s32 %v2732, %v2734
        %v2736 = vrot.slane %v2729, %v2735
        %v2737 = vcombine.low %v2679, %v2680
        %v2739 = vunpack.c.l.s4 1966171168
        %v2740 = vunpack.c.0.s8 %v2739
        %v2741 = vlaneseq
        %v2742 = vshrl.u32 %v2741, 7
        %v2743 = vsub.s32 %v2740, %v2742
        %v2744 = vrot.slane %v2737, %v2743
        %v2746 = vunpack.c.l.s4 1966171168
        %v2747 = vunpack.c.0.s8 %v2746
        %v2748 = vlaneseq
        %v2749 = vshrl.u32 %v2748, 7
        %v2750 = vsub.s32 %v2747, %v2749
        %v2751 = vrot.slane %v2744, %v2750
        %v2752 = vcombine.low %v2681, %v2682
        %v2754 = vunpack.c.l.s4 1966171168
        %v2755 = vunpack.c.0.s8 %v2754
        %v2756 = vlaneseq
        %v2757 = vshrl.u32 %v2756, 7
        %v2758 = vsub.s32 %v2755, %v2757
        %v2759 = vrot.slane %v2752, %v2758
        %v2761 = vunpack.c.l.s4 1966171168
        %v2762 = vunpack.c.0.s8 %v2761
        %v2763 = vlaneseq
        %v2764 = vshrl.u32 %v2763, 7
        %v2765 = vsub.s32 %v2762, %v2764
        %v2766 = vrot.slane %v2759, %v2765
        %v2767 = vcombine.low %v2683, %v2684
        %v2769 = vunpack.c.l.s4 1966171168
        %v2770 = vunpack.c.0.s8 %v2769
        %v2771 = vlaneseq
        %v2772 = vshrl.u32 %v2771, 7
        %v2773 = vsub.s32 %v2770, %v2772
        %v2774 = vrot.slane %v2767, %v2773
        %v2776 = vunpack.c.l.s4 1966171168
        %v2777 = vunpack.c.0.s8 %v2776
        %v2778 = vlaneseq
        %v2779 = vshrl.u32 %v2778, 7
        %v2780 = vsub.s32 %v2777, %v2779
        %v2781 = vrot.slane %v2774, %v2780
        %v2782 = vcombine.low %v2685, %v2686
        %v2784 = vunpack.c.l.s4 1966171168
        %v2785 = vunpack.c.0.s8 %v2784
        %v2786 = vlaneseq
        %v2787 = vshrl.u32 %v2786, 7
        %v2788 = vsub.s32 %v2785, %v2787
        %v2789 = vrot.slane %v2782, %v2788
        %v2791 = vunpack.c.l.s4 1966171168
        %v2792 = vunpack.c.0.s8 %v2791
        %v2793 = vlaneseq
        %v2794 = vshrl.u32 %v2793, 7
        %v2795 = vsub.s32 %v2792, %v2794
        %v2796 = vrot.slane %v2789, %v2795
        %v2797 = vcombine.low %v2687, %v2688
        %v2799 = vunpack.c.l.s4 1966171168
        %v2800 = vunpack.c.0.s8 %v2799
        %v2801 = vlaneseq
        %v2802 = vshrl.u32 %v2801, 7
        %v2803 = vsub.s32 %v2800, %v2802
        %v2804 = vrot.slane %v2797, %v2803
        %v2806 = vunpack.c.l.s4 1966171168
        %v2807 = vunpack.c.0.s8 %v2806
        %v2808 = vlaneseq
        %v2809 = vshrl.u32 %v2808, 7
        %v2810 = vsub.s32 %v2807, %v2809
        %v2811 = vrot.slane %v2804, %v2810
        %v2812 = vcombine.low %v2689, %v2690
        %v2814 = vunpack.c.l.s4 1966171168
        %v2815 = vunpack.c.0.s8 %v2814
        %v2816 = vlaneseq
        %v2817 = vshrl.u32 %v2816, 7
        %v2818 = vsub.s32 %v2815, %v2817
        %v2819 = vrot.slane %v2812, %v2818
        %v2821 = vunpack.c.l.s4 1966171168
        %v2822 = vunpack.c.0.s8 %v2821
        %v2823 = vlaneseq
        %v2824 = vshrl.u32 %v2823, 7
        %v2825 = vsub.s32 %v2822, %v2824
        %v2826 = vrot.slane %v2819, %v2825
        %v2835 = vlaneseq
        %vm2836 = vcmp.ge.s32.totalorder %v2835, 0
        %vm2837 = vcmp.lt.s32.totalorder %v2835, 256
        %vm2838 = vmand %vm2836, %vm2837
        %2839 = vst.msk [vmem:[%s389] ss:$4 sm:$0x3] %vm2838, %v2721
        %s2840 = scalar_lea.vmem %s389, 8 [#allocation15]
        %2841 = vst.msk [vmem:[%s2840] ss:$4 sm:$0x3] %vm2838, %v2736
        %s2842 = scalar_lea.vmem %s389, 16 [#allocation15]
        %2843 = vst.msk [vmem:[%s2842] ss:$4 sm:$0x3] %vm2838, %v2751
        %s2844 = scalar_lea.vmem %s389, 24 [#allocation15]
        %2845 = vst.msk [vmem:[%s2844] ss:$4 sm:$0x3] %vm2838, %v2766
        %s2846 = scalar_lea.vmem %s389, 32 [#allocation15]
        %2847 = vst.msk [vmem:[%s2846] ss:$4 sm:$0x3] %vm2838, %v2781
        %s2848 = scalar_lea.vmem %s389, 40 [#allocation15]
        %2849 = vst.msk [vmem:[%s2848] ss:$4 sm:$0x3] %vm2838, %v2796
        %s2850 = scalar_lea.vmem %s389, 48 [#allocation15]
        %2851 = vst.msk [vmem:[%s2850] ss:$4 sm:$0x3] %vm2838, %v2811
        %s2852 = scalar_lea.vmem %s389, 56 [#allocation15]
        %2853 = vst.msk [vmem:[%s2852] ss:$4 sm:$0x3] %vm2838, %v2826
        %v2862 = vcombine.low %v1187, %v1188
        %v2863 = vcombine.low %v1189, %v1190
        %v2864 = vcombine.low %v1191, %v1192
        %v2865 = vcombine.low %v1193, %v1194
        %v2867 = vunpack.c.l.s4 1966171168
        %v2868 = vunpack.c.0.s8 %v2867
        %v2869 = vlaneseq
        %v2870 = vshrl.u32 %v2869, 7
        %v2871 = vsub.s32 %v2868, %v2870
        %v2872 = vrot.slane %v2862, %v2871
        %v2874 = vunpack.c.l.s4 1966171168
        %v2875 = vunpack.c.0.s8 %v2874
        %v2876 = vlaneseq
        %v2877 = vshrl.u32 %v2876, 7
        %v2878 = vsub.s32 %v2875, %v2877
        %v2879 = vrot.slane %v2863, %v2878
        %v2881 = vunpack.c.l.s4 1966171168
        %v2882 = vunpack.c.0.s8 %v2881
        %v2883 = vlaneseq
        %v2884 = vshrl.u32 %v2883, 7
        %v2885 = vsub.s32 %v2882, %v2884
        %v2886 = vrot.slane %v2864, %v2885
        %v2888 = vunpack.c.l.s4 1966171168
        %v2889 = vunpack.c.0.s8 %v2888
        %v2890 = vlaneseq
        %v2891 = vshrl.u32 %v2890, 7
        %v2892 = vsub.s32 %v2889, %v2891
        %v2893 = vrot.slane %v2865, %v2892
        %v2894 = vcombine.low %v2872, %v2879
        %v2895 = vcombine.high %v2872, %v2879
        %v2896 = vcombine.low %v2886, %v2893
        %v2897 = vcombine.high %v2886, %v2893
        %v2899 = vunpack.c.l.s4 1966171168
        %v2900 = vunpack.c.0.s8 %v2899
        %v2901 = vlaneseq
        %v2902 = vshrl.u32 %v2901, 7
        %v2903 = vsub.s32 %v2900, %v2902
        %v2904 = vrot.slane %v2894, %v2903
        %v2906 = vunpack.c.l.s4 1966171168
        %v2907 = vunpack.c.0.s8 %v2906
        %v2908 = vlaneseq
        %v2909 = vshrl.u32 %v2908, 7
        %v2910 = vsub.s32 %v2907, %v2909
        %v2911 = vrot.slane %v2895, %v2910
        %v2913 = vunpack.c.l.s4 1966171168
        %v2914 = vunpack.c.0.s8 %v2913
        %v2915 = vlaneseq
        %v2916 = vshrl.u32 %v2915, 7
        %v2917 = vsub.s32 %v2914, %v2916
        %v2918 = vrot.slane %v2896, %v2917
        %v2920 = vunpack.c.l.s4 1966171168
        %v2921 = vunpack.c.0.s8 %v2920
        %v2922 = vlaneseq
        %v2923 = vshrl.u32 %v2922, 7
        %v2924 = vsub.s32 %v2921, %v2923
        %v2925 = vrot.slane %v2897, %v2924
        %v2926 = vcombine.low %v2904, %v2918
        %v2927 = vcombine.low %v2911, %v2925
        %v2930 = vmul.f32 %v2224, %v2926
        %v2931 = vmul.f32 %v2226, %v2927
        %v2932 = vmul.f32 %v2228, %v2926
        %v2933 = vmul.f32 %v2230, %v2927
        %v2934 = vmul.f32 %v2232, %v2926
        %v2935 = vmul.f32 %v2234, %v2927
        %v2936 = vmul.f32 %v2236, %v2926
        %v2937 = vmul.f32 %v2238, %v2927
        %v2938 = vmul.f32 %v2240, %v2926
        %v2939 = vmul.f32 %v2242, %v2927
        %v2940 = vmul.f32 %v2244, %v2926
        %v2941 = vmul.f32 %v2246, %v2927
        %v2942 = vmul.f32 %v2248, %v2926
        %v2943 = vmul.f32 %v2250, %v2927
        %v2944 = vmul.f32 %v2252, %v2926
        %v2945 = vmul.f32 %v2254, %v2927
        %v2946 = vrot.slane %v2930, 4
        %v2947 = vadd.f32 %v2930, %v2946
        %v2948 = vrot.slane %v2947, 2
        %v2949 = vadd.f32 %v2947, %v2948
        %v2950 = vrot.slane %v2949, 1
        %v2951 = vadd.f32 %v2949, %v2950
        %v2952 = vrot.slane %v2931, 4
        %v2953 = vadd.f32 %v2931, %v2952
        %v2954 = vrot.slane %v2953, 2
        %v2955 = vadd.f32 %v2953, %v2954
        %v2956 = vrot.slane %v2955, 1
        %v2957 = vadd.f32 %v2955, %v2956
        %v2958 = vrot.slane %v2932, 4
        %v2959 = vadd.f32 %v2932, %v2958
        %v2960 = vrot.slane %v2959, 2
        %v2961 = vadd.f32 %v2959, %v2960
        %v2962 = vrot.slane %v2961, 1
        %v2963 = vadd.f32 %v2961, %v2962
        %v2964 = vrot.slane %v2933, 4
        %v2965 = vadd.f32 %v2933, %v2964
        %v2966 = vrot.slane %v2965, 2
        %v2967 = vadd.f32 %v2965, %v2966
        %v2968 = vrot.slane %v2967, 1
        %v2969 = vadd.f32 %v2967, %v2968
        %v2970 = vrot.slane %v2934, 4
        %v2971 = vadd.f32 %v2934, %v2970
        %v2972 = vrot.slane %v2971, 2
        %v2973 = vadd.f32 %v2971, %v2972
        %v2974 = vrot.slane %v2973, 1
        %v2975 = vadd.f32 %v2973, %v2974
        %v2976 = vrot.slane %v2935, 4
        %v2977 = vadd.f32 %v2935, %v2976
        %v2978 = vrot.slane %v2977, 2
        %v2979 = vadd.f32 %v2977, %v2978
        %v2980 = vrot.slane %v2979, 1
        %v2981 = vadd.f32 %v2979, %v2980
        %v2982 = vrot.slane %v2936, 4
        %v2983 = vadd.f32 %v2936, %v2982
        %v2984 = vrot.slane %v2983, 2
        %v2985 = vadd.f32 %v2983, %v2984
        %v2986 = vrot.slane %v2985, 1
        %v2987 = vadd.f32 %v2985, %v2986
        %v2988 = vrot.slane %v2937, 4
        %v2989 = vadd.f32 %v2937, %v2988
        %v2990 = vrot.slane %v2989, 2
        %v2991 = vadd.f32 %v2989, %v2990
        %v2992 = vrot.slane %v2991, 1
        %v2993 = vadd.f32 %v2991, %v2992
        %v2994 = vrot.slane %v2938, 4
        %v2995 = vadd.f32 %v2938, %v2994
        %v2996 = vrot.slane %v2995, 2
        %v2997 = vadd.f32 %v2995, %v2996
        %v2998 = vrot.slane %v2997, 1
        %v2999 = vadd.f32 %v2997, %v2998
        %v3000 = vrot.slane %v2939, 4
        %v3001 = vadd.f32 %v2939, %v3000
        %v3002 = vrot.slane %v3001, 2
        %v3003 = vadd.f32 %v3001, %v3002
        %v3004 = vrot.slane %v3003, 1
        %v3005 = vadd.f32 %v3003, %v3004
        %v3006 = vrot.slane %v2940, 4
        %v3007 = vadd.f32 %v2940, %v3006
        %v3008 = vrot.slane %v3007, 2
        %v3009 = vadd.f32 %v3007, %v3008
        %v3010 = vrot.slane %v3009, 1
        %v3011 = vadd.f32 %v3009, %v3010
        %v3012 = vrot.slane %v2941, 4
        %v3013 = vadd.f32 %v2941, %v3012
        %v3014 = vrot.slane %v3013, 2
        %v3015 = vadd.f32 %v3013, %v3014
        %v3016 = vrot.slane %v3015, 1
        %v3017 = vadd.f32 %v3015, %v3016
        %v3018 = vrot.slane %v2942, 4
        %v3019 = vadd.f32 %v2942, %v3018
        %v3020 = vrot.slane %v3019, 2
        %v3021 = vadd.f32 %v3019, %v3020
        %v3022 = vrot.slane %v3021, 1
        %v3023 = vadd.f32 %v3021, %v3022
        %v3024 = vrot.slane %v2943, 4
        %v3025 = vadd.f32 %v2943, %v3024
        %v3026 = vrot.slane %v3025, 2
        %v3027 = vadd.f32 %v3025, %v3026
        %v3028 = vrot.slane %v3027, 1
        %v3029 = vadd.f32 %v3027, %v3028
        %v3030 = vrot.slane %v2944, 4
        %v3031 = vadd.f32 %v2944, %v3030
        %v3032 = vrot.slane %v3031, 2
        %v3033 = vadd.f32 %v3031, %v3032
        %v3034 = vrot.slane %v3033, 1
        %v3035 = vadd.f32 %v3033, %v3034
        %v3036 = vrot.slane %v2945, 4
        %v3037 = vadd.f32 %v2945, %v3036
        %v3038 = vrot.slane %v3037, 2
        %v3039 = vadd.f32 %v3037, %v3038
        %v3040 = vrot.slane %v3039, 1
        %v3041 = vadd.f32 %v3039, %v3040
        %v3042 = vmul.f32 %v2951, %v2352
        %v3043 = vmul.f32 %v2957, %v2354
        %v3044 = vmul.f32 %v2963, %v2356
        %v3045 = vmul.f32 %v2969, %v2358
        %v3046 = vmul.f32 %v2975, %v2360
        %v3047 = vmul.f32 %v2981, %v2362
        %v3048 = vmul.f32 %v2987, %v2364
        %v3049 = vmul.f32 %v2993, %v2366
        %v3050 = vmul.f32 %v2999, %v2368
        %v3051 = vmul.f32 %v3005, %v2370
        %v3052 = vmul.f32 %v3011, %v2372
        %v3053 = vmul.f32 %v3017, %v2374
        %v3054 = vmul.f32 %v3023, %v2376
        %v3055 = vmul.f32 %v3029, %v2378
        %v3056 = vmul.f32 %v3035, %v2380
        %v3057 = vmul.f32 %v3041, %v2382
        %v3066 = vlaneseq
        %v3067 = vshrl.u32 %v3066, 7
        %v3068 = vsub.s32 0, %v3067
        %v3069 = vrot.slane %v408, %v3068
        %v3070 = vlaneseq
        %v3071 = vshrl.u32 %v3070, 7
        %v3072 = vsub.s32 1, %v3071
        %v3073 = vrot.slane %v408, %v3072
        %v3074 = vlaneseq
        %v3075 = vshrl.u32 %v3074, 7
        %v3076 = vsub.s32 0, %v3075
        %v3077 = vrot.slane %v410, %v3076
        %v3078 = vlaneseq
        %v3079 = vshrl.u32 %v3078, 7
        %v3080 = vsub.s32 1, %v3079
        %v3081 = vrot.slane %v410, %v3080
        %v3082 = vlaneseq
        %v3083 = vshrl.u32 %v3082, 7
        %v3084 = vsub.s32 0, %v3083
        %v3085 = vrot.slane %v412, %v3084
        %v3086 = vlaneseq
        %v3087 = vshrl.u32 %v3086, 7
        %v3088 = vsub.s32 1, %v3087
        %v3089 = vrot.slane %v412, %v3088
        %v3090 = vlaneseq
        %v3091 = vshrl.u32 %v3090, 7
        %v3092 = vsub.s32 0, %v3091
        %v3093 = vrot.slane %v414, %v3092
        %v3094 = vlaneseq
        %v3095 = vshrl.u32 %v3094, 7
        %v3096 = vsub.s32 1, %v3095
        %v3097 = vrot.slane %v414, %v3096
        %v3098 = vlaneseq
        %v3099 = vshrl.u32 %v3098, 7
        %v3100 = vsub.s32 0, %v3099
        %v3101 = vrot.slane %v416, %v3100
        %v3102 = vlaneseq
        %v3103 = vshrl.u32 %v3102, 7
        %v3104 = vsub.s32 1, %v3103
        %v3105 = vrot.slane %v416, %v3104
        %v3106 = vlaneseq
        %v3107 = vshrl.u32 %v3106, 7
        %v3108 = vsub.s32 0, %v3107
        %v3109 = vrot.slane %v418, %v3108
        %v3110 = vlaneseq
        %v3111 = vshrl.u32 %v3110, 7
        %v3112 = vsub.s32 1, %v3111
        %v3113 = vrot.slane %v418, %v3112
        %v3114 = vlaneseq
        %v3115 = vshrl.u32 %v3114, 7
        %v3116 = vsub.s32 0, %v3115
        %v3117 = vrot.slane %v420, %v3116
        %v3118 = vlaneseq
        %v3119 = vshrl.u32 %v3118, 7
        %v3120 = vsub.s32 1, %v3119
        %v3121 = vrot.slane %v420, %v3120
        %v3122 = vlaneseq
        %v3123 = vshrl.u32 %v3122, 7
        %v3124 = vsub.s32 0, %v3123
        %v3125 = vrot.slane %v422, %v3124
        %v3126 = vlaneseq
        %v3127 = vshrl.u32 %v3126, 7
        %v3128 = vsub.s32 1, %v3127
        %v3129 = vrot.slane %v422, %v3128
        %v3146 = vadd.f32 %v3042, %v3069
        %v3147 = vadd.f32 %v3043, %v3073
        %v3148 = vadd.f32 %v3044, %v3077
        %v3149 = vadd.f32 %v3045, %v3081
        %v3150 = vadd.f32 %v3046, %v3085
        %v3151 = vadd.f32 %v3047, %v3089
        %v3152 = vadd.f32 %v3048, %v3093
        %v3153 = vadd.f32 %v3049, %v3097
        %v3154 = vadd.f32 %v3050, %v3101
        %v3155 = vadd.f32 %v3051, %v3105
        %v3156 = vadd.f32 %v3052, %v3109
        %v3157 = vadd.f32 %v3053, %v3113
        %v3158 = vadd.f32 %v3054, %v3117
        %v3159 = vadd.f32 %v3055, %v3121
        %v3160 = vadd.f32 %v3056, %v3125
        %v3161 = vadd.f32 %v3057, %v3129
        %v3178 = vcombine.low %v3146, %v3147
        %v3180 = vunpack.c.l.s4 1966171168
        %v3181 = vunpack.c.0.s8 %v3180
        %v3182 = vlaneseq
        %v3183 = vshrl.u32 %v3182, 7
        %v3184 = vsub.s32 %v3181, %v3183
        %v3185 = vrot.slane %v3178, %v3184
        %v3187 = vunpack.c.l.s4 1966171168
        %v3188 = vunpack.c.0.s8 %v3187
        %v3189 = vlaneseq
        %v3190 = vshrl.u32 %v3189, 7
        %v3191 = vsub.s32 %v3188, %v3190
        %v3192 = vrot.slane %v3185, %v3191
        %v3193 = vcombine.low %v3148, %v3149
        %v3195 = vunpack.c.l.s4 1966171168
        %v3196 = vunpack.c.0.s8 %v3195
        %v3197 = vlaneseq
        %v3198 = vshrl.u32 %v3197, 7
        %v3199 = vsub.s32 %v3196, %v3198
        %v3200 = vrot.slane %v3193, %v3199
        %v3202 = vunpack.c.l.s4 1966171168
        %v3203 = vunpack.c.0.s8 %v3202
        %v3204 = vlaneseq
        %v3205 = vshrl.u32 %v3204, 7
        %v3206 = vsub.s32 %v3203, %v3205
        %v3207 = vrot.slane %v3200, %v3206
        %v3208 = vcombine.low %v3150, %v3151
        %v3210 = vunpack.c.l.s4 1966171168
        %v3211 = vunpack.c.0.s8 %v3210
        %v3212 = vlaneseq
        %v3213 = vshrl.u32 %v3212, 7
        %v3214 = vsub.s32 %v3211, %v3213
        %v3215 = vrot.slane %v3208, %v3214
        %v3217 = vunpack.c.l.s4 1966171168
        %v3218 = vunpack.c.0.s8 %v3217
        %v3219 = vlaneseq
        %v3220 = vshrl.u32 %v3219, 7
        %v3221 = vsub.s32 %v3218, %v3220
        %v3222 = vrot.slane %v3215, %v3221
        %v3223 = vcombine.low %v3152, %v3153
        %v3225 = vunpack.c.l.s4 1966171168
        %v3226 = vunpack.c.0.s8 %v3225
        %v3227 = vlaneseq
        %v3228 = vshrl.u32 %v3227, 7
        %v3229 = vsub.s32 %v3226, %v3228
        %v3230 = vrot.slane %v3223, %v3229
        %v3232 = vunpack.c.l.s4 1966171168
        %v3233 = vunpack.c.0.s8 %v3232
        %v3234 = vlaneseq
        %v3235 = vshrl.u32 %v3234, 7
        %v3236 = vsub.s32 %v3233, %v3235
        %v3237 = vrot.slane %v3230, %v3236
        %v3238 = vcombine.low %v3154, %v3155
        %v3240 = vunpack.c.l.s4 1966171168
        %v3241 = vunpack.c.0.s8 %v3240
        %v3242 = vlaneseq
        %v3243 = vshrl.u32 %v3242, 7
        %v3244 = vsub.s32 %v3241, %v3243
        %v3245 = vrot.slane %v3238, %v3244
        %v3247 = vunpack.c.l.s4 1966171168
        %v3248 = vunpack.c.0.s8 %v3247
        %v3249 = vlaneseq
        %v3250 = vshrl.u32 %v3249, 7
        %v3251 = vsub.s32 %v3248, %v3250
        %v3252 = vrot.slane %v3245, %v3251
        %v3253 = vcombine.low %v3156, %v3157
        %v3255 = vunpack.c.l.s4 1966171168
        %v3256 = vunpack.c.0.s8 %v3255
        %v3257 = vlaneseq
        %v3258 = vshrl.u32 %v3257, 7
        %v3259 = vsub.s32 %v3256, %v3258
        %v3260 = vrot.slane %v3253, %v3259
        %v3262 = vunpack.c.l.s4 1966171168
        %v3263 = vunpack.c.0.s8 %v3262
        %v3264 = vlaneseq
        %v3265 = vshrl.u32 %v3264, 7
        %v3266 = vsub.s32 %v3263, %v3265
        %v3267 = vrot.slane %v3260, %v3266
        %v3268 = vcombine.low %v3158, %v3159
        %v3270 = vunpack.c.l.s4 1966171168
        %v3271 = vunpack.c.0.s8 %v3270
        %v3272 = vlaneseq
        %v3273 = vshrl.u32 %v3272, 7
        %v3274 = vsub.s32 %v3271, %v3273
        %v3275 = vrot.slane %v3268, %v3274
        %v3277 = vunpack.c.l.s4 1966171168
        %v3278 = vunpack.c.0.s8 %v3277
        %v3279 = vlaneseq
        %v3280 = vshrl.u32 %v3279, 7
        %v3281 = vsub.s32 %v3278, %v3280
        %v3282 = vrot.slane %v3275, %v3281
        %v3283 = vcombine.low %v3160, %v3161
        %v3285 = vunpack.c.l.s4 1966171168
        %v3286 = vunpack.c.0.s8 %v3285
        %v3287 = vlaneseq
        %v3288 = vshrl.u32 %v3287, 7
        %v3289 = vsub.s32 %v3286, %v3288
        %v3290 = vrot.slane %v3283, %v3289
        %v3292 = vunpack.c.l.s4 1966171168
        %v3293 = vunpack.c.0.s8 %v3292
        %v3294 = vlaneseq
        %v3295 = vshrl.u32 %v3294, 7
        %v3296 = vsub.s32 %v3293, %v3295
        %v3297 = vrot.slane %v3290, %v3296
        %s3306 = scalar_lea.vmem %s389, 1 [#allocation15]
        %3307 = vst.msk [vmem:[%s3306] ss:$4 sm:$0x3] %vm2838, %v3192
        %s3308 = scalar_lea.vmem %s389, 9 [#allocation15]
        %3309 = vst.msk [vmem:[%s3308] ss:$4 sm:$0x3] %vm2838, %v3207
        %s3310 = scalar_lea.vmem %s389, 17 [#allocation15]
        %3311 = vst.msk [vmem:[%s3310] ss:$4 sm:$0x3] %vm2838, %v3222
        %s3312 = scalar_lea.vmem %s389, 25 [#allocation15]
        %3313 = vst.msk [vmem:[%s3312] ss:$4 sm:$0x3] %vm2838, %v3237
        %s3314 = scalar_lea.vmem %s389, 33 [#allocation15]
        %3315 = vst.msk [vmem:[%s3314] ss:$4 sm:$0x3] %vm2838, %v3252
        %s3316 = scalar_lea.vmem %s389, 41 [#allocation15]
        %3317 = vst.msk [vmem:[%s3316] ss:$4 sm:$0x3] %vm2838, %v3267
        %s3318 = scalar_lea.vmem %s389, 49 [#allocation15]
        %3319 = vst.msk [vmem:[%s3318] ss:$4 sm:$0x3] %vm2838, %v3282
        %s3320 = scalar_lea.vmem %s389, 57 [#allocation15]
        %3321 = vst.msk [vmem:[%s3320] ss:$4 sm:$0x3] %vm2838, %v3297
        %v3330 = vcombine.low %v1261, %v1262
        %v3331 = vcombine.low %v1263, %v1264
        %v3332 = vcombine.low %v1265, %v1266
        %v3333 = vcombine.low %v1267, %v1268
        %v3335 = vunpack.c.l.s4 1966171168
        %v3336 = vunpack.c.0.s8 %v3335
        %v3337 = vlaneseq
        %v3338 = vshrl.u32 %v3337, 7
        %v3339 = vsub.s32 %v3336, %v3338
        %v3340 = vrot.slane %v3330, %v3339
        %v3342 = vunpack.c.l.s4 1966171168
        %v3343 = vunpack.c.0.s8 %v3342
        %v3344 = vlaneseq
        %v3345 = vshrl.u32 %v3344, 7
        %v3346 = vsub.s32 %v3343, %v3345
        %v3347 = vrot.slane %v3331, %v3346
        %v3349 = vunpack.c.l.s4 1966171168
        %v3350 = vunpack.c.0.s8 %v3349
        %v3351 = vlaneseq
        %v3352 = vshrl.u32 %v3351, 7
        %v3353 = vsub.s32 %v3350, %v3352
        %v3354 = vrot.slane %v3332, %v3353
        %v3356 = vunpack.c.l.s4 1966171168
        %v3357 = vunpack.c.0.s8 %v3356
        %v3358 = vlaneseq
        %v3359 = vshrl.u32 %v3358, 7
        %v3360 = vsub.s32 %v3357, %v3359
        %v3361 = vrot.slane %v3333, %v3360
        %v3362 = vcombine.low %v3340, %v3347
        %v3363 = vcombine.high %v3340, %v3347
        %v3364 = vcombine.low %v3354, %v3361
        %v3365 = vcombine.high %v3354, %v3361
        %v3367 = vunpack.c.l.s4 1966171168
        %v3368 = vunpack.c.0.s8 %v3367
        %v3369 = vlaneseq
        %v3370 = vshrl.u32 %v3369, 7
        %v3371 = vsub.s32 %v3368, %v3370
        %v3372 = vrot.slane %v3362, %v3371
        %v3374 = vunpack.c.l.s4 1966171168
        %v3375 = vunpack.c.0.s8 %v3374
        %v3376 = vlaneseq
        %v3377 = vshrl.u32 %v3376, 7
        %v3378 = vsub.s32 %v3375, %v3377
        %v3379 = vrot.slane %v3363, %v3378
        %v3381 = vunpack.c.l.s4 1966171168
        %v3382 = vunpack.c.0.s8 %v3381
        %v3383 = vlaneseq
        %v3384 = vshrl.u32 %v3383, 7
        %v3385 = vsub.s32 %v3382, %v3384
        %v3386 = vrot.slane %v3364, %v3385
        %v3388 = vunpack.c.l.s4 1966171168
        %v3389 = vunpack.c.0.s8 %v3388
        %v3390 = vlaneseq
        %v3391 = vshrl.u32 %v3390, 7
        %v3392 = vsub.s32 %v3389, %v3391
        %v3393 = vrot.slane %v3365, %v3392
        %v3394 = vcombine.low %v3372, %v3386
        %v3395 = vcombine.low %v3379, %v3393
        %v3398 = vmul.f32 %v2224, %v3394
        %v3399 = vmul.f32 %v2226, %v3395
        %v3400 = vmul.f32 %v2228, %v3394
        %v3401 = vmul.f32 %v2230, %v3395
        %v3402 = vmul.f32 %v2232, %v3394
        %v3403 = vmul.f32 %v2234, %v3395
        %v3404 = vmul.f32 %v2236, %v3394
        %v3405 = vmul.f32 %v2238, %v3395
        %v3406 = vmul.f32 %v2240, %v3394
        %v3407 = vmul.f32 %v2242, %v3395
        %v3408 = vmul.f32 %v2244, %v3394
        %v3409 = vmul.f32 %v2246, %v3395
        %v3410 = vmul.f32 %v2248, %v3394
        %v3411 = vmul.f32 %v2250, %v3395
        %v3412 = vmul.f32 %v2252, %v3394
        %v3413 = vmul.f32 %v2254, %v3395
        %v3414 = vrot.slane %v3398, 4
        %v3415 = vadd.f32 %v3398, %v3414
        %v3416 = vrot.slane %v3415, 2
        %v3417 = vadd.f32 %v3415, %v3416
        %v3418 = vrot.slane %v3417, 1
        %v3419 = vadd.f32 %v3417, %v3418
        %v3420 = vrot.slane %v3399, 4
        %v3421 = vadd.f32 %v3399, %v3420
        %v3422 = vrot.slane %v3421, 2
        %v3423 = vadd.f32 %v3421, %v3422
        %v3424 = vrot.slane %v3423, 1
        %v3425 = vadd.f32 %v3423, %v3424
        %v3426 = vrot.slane %v3400, 4
        %v3427 = vadd.f32 %v3400, %v3426
        %v3428 = vrot.slane %v3427, 2
        %v3429 = vadd.f32 %v3427, %v3428
        %v3430 = vrot.slane %v3429, 1
        %v3431 = vadd.f32 %v3429, %v3430
        %v3432 = vrot.slane %v3401, 4
        %v3433 = vadd.f32 %v3401, %v3432
        %v3434 = vrot.slane %v3433, 2
        %v3435 = vadd.f32 %v3433, %v3434
        %v3436 = vrot.slane %v3435, 1
        %v3437 = vadd.f32 %v3435, %v3436
        %v3438 = vrot.slane %v3402, 4
        %v3439 = vadd.f32 %v3402, %v3438
        %v3440 = vrot.slane %v3439, 2
        %v3441 = vadd.f32 %v3439, %v3440
        %v3442 = vrot.slane %v3441, 1
        %v3443 = vadd.f32 %v3441, %v3442
        %v3444 = vrot.slane %v3403, 4
        %v3445 = vadd.f32 %v3403, %v3444
        %v3446 = vrot.slane %v3445, 2
        %v3447 = vadd.f32 %v3445, %v3446
        %v3448 = vrot.slane %v3447, 1
        %v3449 = vadd.f32 %v3447, %v3448
        %v3450 = vrot.slane %v3404, 4
        %v3451 = vadd.f32 %v3404, %v3450
        %v3452 = vrot.slane %v3451, 2
        %v3453 = vadd.f32 %v3451, %v3452
        %v3454 = vrot.slane %v3453, 1
        %v3455 = vadd.f32 %v3453, %v3454
        %v3456 = vrot.slane %v3405, 4
        %v3457 = vadd.f32 %v3405, %v3456
        %v3458 = vrot.slane %v3457, 2
        %v3459 = vadd.f32 %v3457, %v3458
        %v3460 = vrot.slane %v3459, 1
        %v3461 = vadd.f32 %v3459, %v3460
        %v3462 = vrot.slane %v3406, 4
        %v3463 = vadd.f32 %v3406, %v3462
        %v3464 = vrot.slane %v3463, 2
        %v3465 = vadd.f32 %v3463, %v3464
        %v3466 = vrot.slane %v3465, 1
        %v3467 = vadd.f32 %v3465, %v3466
        %v3468 = vrot.slane %v3407, 4
        %v3469 = vadd.f32 %v3407, %v3468
        %v3470 = vrot.slane %v3469, 2
        %v3471 = vadd.f32 %v3469, %v3470
        %v3472 = vrot.slane %v3471, 1
        %v3473 = vadd.f32 %v3471, %v3472
        %v3474 = vrot.slane %v3408, 4
        %v3475 = vadd.f32 %v3408, %v3474
        %v3476 = vrot.slane %v3475, 2
        %v3477 = vadd.f32 %v3475, %v3476
        %v3478 = vrot.slane %v3477, 1
        %v3479 = vadd.f32 %v3477, %v3478
        %v3480 = vrot.slane %v3409, 4
        %v3481 = vadd.f32 %v3409, %v3480
        %v3482 = vrot.slane %v3481, 2
        %v3483 = vadd.f32 %v3481, %v3482
        %v3484 = vrot.slane %v3483, 1
        %v3485 = vadd.f32 %v3483, %v3484
        %v3486 = vrot.slane %v3410, 4
        %v3487 = vadd.f32 %v3410, %v3486
        %v3488 = vrot.slane %v3487, 2
        %v3489 = vadd.f32 %v3487, %v3488
        %v3490 = vrot.slane %v3489, 1
        %v3491 = vadd.f32 %v3489, %v3490
        %v3492 = vrot.slane %v3411, 4
        %v3493 = vadd.f32 %v3411, %v3492
        %v3494 = vrot.slane %v3493, 2
        %v3495 = vadd.f32 %v3493, %v3494
        %v3496 = vrot.slane %v3495, 1
        %v3497 = vadd.f32 %v3495, %v3496
        %v3498 = vrot.slane %v3412, 4
        %v3499 = vadd.f32 %v3412, %v3498
        %v3500 = vrot.slane %v3499, 2
        %v3501 = vadd.f32 %v3499, %v3500
        %v3502 = vrot.slane %v3501, 1
        %v3503 = vadd.f32 %v3501, %v3502
        %v3504 = vrot.slane %v3413, 4
        %v3505 = vadd.f32 %v3413, %v3504
        %v3506 = vrot.slane %v3505, 2
        %v3507 = vadd.f32 %v3505, %v3506
        %v3508 = vrot.slane %v3507, 1
        %v3509 = vadd.f32 %v3507, %v3508
        %v3510 = vmul.f32 %v3419, %v2352
        %v3511 = vmul.f32 %v3425, %v2354
        %v3512 = vmul.f32 %v3431, %v2356
        %v3513 = vmul.f32 %v3437, %v2358
        %v3514 = vmul.f32 %v3443, %v2360
        %v3515 = vmul.f32 %v3449, %v2362
        %v3516 = vmul.f32 %v3455, %v2364
        %v3517 = vmul.f32 %v3461, %v2366
        %v3518 = vmul.f32 %v3467, %v2368
        %v3519 = vmul.f32 %v3473, %v2370
        %v3520 = vmul.f32 %v3479, %v2372
        %v3521 = vmul.f32 %v3485, %v2374
        %v3522 = vmul.f32 %v3491, %v2376
        %v3523 = vmul.f32 %v3497, %v2378
        %v3524 = vmul.f32 %v3503, %v2380
        %v3525 = vmul.f32 %v3509, %v2382
        %v3534 = vlaneseq
        %v3535 = vshrl.u32 %v3534, 7
        %v3536 = vsub.s32 0, %v3535
        %v3537 = vrot.slane %v424, %v3536
        %v3538 = vlaneseq
        %v3539 = vshrl.u32 %v3538, 7
        %v3540 = vsub.s32 1, %v3539
        %v3541 = vrot.slane %v424, %v3540
        %v3542 = vlaneseq
        %v3543 = vshrl.u32 %v3542, 7
        %v3544 = vsub.s32 0, %v3543
        %v3545 = vrot.slane %v426, %v3544
        %v3546 = vlaneseq
        %v3547 = vshrl.u32 %v3546, 7
        %v3548 = vsub.s32 1, %v3547
        %v3549 = vrot.slane %v426, %v3548
        %v3550 = vlaneseq
        %v3551 = vshrl.u32 %v3550, 7
        %v3552 = vsub.s32 0, %v3551
        %v3553 = vrot.slane %v428, %v3552
        %v3554 = vlaneseq
        %v3555 = vshrl.u32 %v3554, 7
        %v3556 = vsub.s32 1, %v3555
        %v3557 = vrot.slane %v428, %v3556
        %v3558 = vlaneseq
        %v3559 = vshrl.u32 %v3558, 7
        %v3560 = vsub.s32 0, %v3559
        %v3561 = vrot.slane %v430, %v3560
        %v3562 = vlaneseq
        %v3563 = vshrl.u32 %v3562, 7
        %v3564 = vsub.s32 1, %v3563
        %v3565 = vrot.slane %v430, %v3564
        %v3566 = vlaneseq
        %v3567 = vshrl.u32 %v3566, 7
        %v3568 = vsub.s32 0, %v3567
        %v3569 = vrot.slane %v432, %v3568
        %v3570 = vlaneseq
        %v3571 = vshrl.u32 %v3570, 7
        %v3572 = vsub.s32 1, %v3571
        %v3573 = vrot.slane %v432, %v3572
        %v3574 = vlaneseq
        %v3575 = vshrl.u32 %v3574, 7
        %v3576 = vsub.s32 0, %v3575
        %v3577 = vrot.slane %v434, %v3576
        %v3578 = vlaneseq
        %v3579 = vshrl.u32 %v3578, 7
        %v3580 = vsub.s32 1, %v3579
        %v3581 = vrot.slane %v434, %v3580
        %v3582 = vlaneseq
        %v3583 = vshrl.u32 %v3582, 7
        %v3584 = vsub.s32 0, %v3583
        %v3585 = vrot.slane %v436, %v3584
        %v3586 = vlaneseq
        %v3587 = vshrl.u32 %v3586, 7
        %v3588 = vsub.s32 1, %v3587
        %v3589 = vrot.slane %v436, %v3588
        %v3590 = vlaneseq
        %v3591 = vshrl.u32 %v3590, 7
        %v3592 = vsub.s32 0, %v3591
        %v3593 = vrot.slane %v438, %v3592
        %v3594 = vlaneseq
        %v3595 = vshrl.u32 %v3594, 7
        %v3596 = vsub.s32 1, %v3595
        %v3597 = vrot.slane %v438, %v3596
        %v3614 = vadd.f32 %v3510, %v3537
        %v3615 = vadd.f32 %v3511, %v3541
        %v3616 = vadd.f32 %v3512, %v3545
        %v3617 = vadd.f32 %v3513, %v3549
        %v3618 = vadd.f32 %v3514, %v3553
        %v3619 = vadd.f32 %v3515, %v3557
        %v3620 = vadd.f32 %v3516, %v3561
        %v3621 = vadd.f32 %v3517, %v3565
        %v3622 = vadd.f32 %v3518, %v3569
        %v3623 = vadd.f32 %v3519, %v3573
        %v3624 = vadd.f32 %v3520, %v3577
        %v3625 = vadd.f32 %v3521, %v3581
        %v3626 = vadd.f32 %v3522, %v3585
        %v3627 = vadd.f32 %v3523, %v3589
        %v3628 = vadd.f32 %v3524, %v3593
        %v3629 = vadd.f32 %v3525, %v3597
        %v3646 = vcombine.low %v3614, %v3615
        %v3648 = vunpack.c.l.s4 1966171168
        %v3649 = vunpack.c.0.s8 %v3648
        %v3650 = vlaneseq
        %v3651 = vshrl.u32 %v3650, 7
        %v3652 = vsub.s32 %v3649, %v3651
        %v3653 = vrot.slane %v3646, %v3652
        %v3655 = vunpack.c.l.s4 1966171168
        %v3656 = vunpack.c.0.s8 %v3655
        %v3657 = vlaneseq
        %v3658 = vshrl.u32 %v3657, 7
        %v3659 = vsub.s32 %v3656, %v3658
        %v3660 = vrot.slane %v3653, %v3659
        %v3661 = vcombine.low %v3616, %v3617
        %v3663 = vunpack.c.l.s4 1966171168
        %v3664 = vunpack.c.0.s8 %v3663
        %v3665 = vlaneseq
        %v3666 = vshrl.u32 %v3665, 7
        %v3667 = vsub.s32 %v3664, %v3666
        %v3668 = vrot.slane %v3661, %v3667
        %v3670 = vunpack.c.l.s4 1966171168
        %v3671 = vunpack.c.0.s8 %v3670
        %v3672 = vlaneseq
        %v3673 = vshrl.u32 %v3672, 7
        %v3674 = vsub.s32 %v3671, %v3673
        %v3675 = vrot.slane %v3668, %v3674
        %v3676 = vcombine.low %v3618, %v3619
        %v3678 = vunpack.c.l.s4 1966171168
        %v3679 = vunpack.c.0.s8 %v3678
        %v3680 = vlaneseq
        %v3681 = vshrl.u32 %v3680, 7
        %v3682 = vsub.s32 %v3679, %v3681
        %v3683 = vrot.slane %v3676, %v3682
        %v3685 = vunpack.c.l.s4 1966171168
        %v3686 = vunpack.c.0.s8 %v3685
        %v3687 = vlaneseq
        %v3688 = vshrl.u32 %v3687, 7
        %v3689 = vsub.s32 %v3686, %v3688
        %v3690 = vrot.slane %v3683, %v3689
        %v3691 = vcombine.low %v3620, %v3621
        %v3693 = vunpack.c.l.s4 1966171168
        %v3694 = vunpack.c.0.s8 %v3693
        %v3695 = vlaneseq
        %v3696 = vshrl.u32 %v3695, 7
        %v3697 = vsub.s32 %v3694, %v3696
        %v3698 = vrot.slane %v3691, %v3697
        %v3700 = vunpack.c.l.s4 1966171168
        %v3701 = vunpack.c.0.s8 %v3700
        %v3702 = vlaneseq
        %v3703 = vshrl.u32 %v3702, 7
        %v3704 = vsub.s32 %v3701, %v3703
        %v3705 = vrot.slane %v3698, %v3704
        %v3706 = vcombine.low %v3622, %v3623
        %v3708 = vunpack.c.l.s4 1966171168
        %v3709 = vunpack.c.0.s8 %v3708
        %v3710 = vlaneseq
        %v3711 = vshrl.u32 %v3710, 7
        %v3712 = vsub.s32 %v3709, %v3711
        %v3713 = vrot.slane %v3706, %v3712
        %v3715 = vunpack.c.l.s4 1966171168
        %v3716 = vunpack.c.0.s8 %v3715
        %v3717 = vlaneseq
        %v3718 = vshrl.u32 %v3717, 7
        %v3719 = vsub.s32 %v3716, %v3718
        %v3720 = vrot.slane %v3713, %v3719
        %v3721 = vcombine.low %v3624, %v3625
        %v3723 = vunpack.c.l.s4 1966171168
        %v3724 = vunpack.c.0.s8 %v3723
        %v3725 = vlaneseq
        %v3726 = vshrl.u32 %v3725, 7
        %v3727 = vsub.s32 %v3724, %v3726
        %v3728 = vrot.slane %v3721, %v3727
        %v3730 = vunpack.c.l.s4 1966171168
        %v3731 = vunpack.c.0.s8 %v3730
        %v3732 = vlaneseq
        %v3733 = vshrl.u32 %v3732, 7
        %v3734 = vsub.s32 %v3731, %v3733
        %v3735 = vrot.slane %v3728, %v3734
        %v3736 = vcombine.low %v3626, %v3627
        %v3738 = vunpack.c.l.s4 1966171168
        %v3739 = vunpack.c.0.s8 %v3738
        %v3740 = vlaneseq
        %v3741 = vshrl.u32 %v3740, 7
        %v3742 = vsub.s32 %v3739, %v3741
        %v3743 = vrot.slane %v3736, %v3742
        %v3745 = vunpack.c.l.s4 1966171168
        %v3746 = vunpack.c.0.s8 %v3745
        %v3747 = vlaneseq
        %v3748 = vshrl.u32 %v3747, 7
        %v3749 = vsub.s32 %v3746, %v3748
        %v3750 = vrot.slane %v3743, %v3749
        %v3751 = vcombine.low %v3628, %v3629
        %v3753 = vunpack.c.l.s4 1966171168
        %v3754 = vunpack.c.0.s8 %v3753
        %v3755 = vlaneseq
        %v3756 = vshrl.u32 %v3755, 7
        %v3757 = vsub.s32 %v3754, %v3756
        %v3758 = vrot.slane %v3751, %v3757
        %v3760 = vunpack.c.l.s4 1966171168
        %v3761 = vunpack.c.0.s8 %v3760
        %v3762 = vlaneseq
        %v3763 = vshrl.u32 %v3762, 7
        %v3764 = vsub.s32 %v3761, %v3763
        %v3765 = vrot.slane %v3758, %v3764
        %s3774 = scalar_lea.vmem %s389, 2 [#allocation15]
        %3775 = vst.msk [vmem:[%s3774] ss:$4 sm:$0x3] %vm2838, %v3660
        %s3776 = scalar_lea.vmem %s389, 10 [#allocation15]
        %3777 = vst.msk [vmem:[%s3776] ss:$4 sm:$0x3] %vm2838, %v3675
        %s3778 = scalar_lea.vmem %s389, 18 [#allocation15]
        %3779 = vst.msk [vmem:[%s3778] ss:$4 sm:$0x3] %vm2838, %v3690
        %s3780 = scalar_lea.vmem %s389, 26 [#allocation15]
        %3781 = vst.msk [vmem:[%s3780] ss:$4 sm:$0x3] %vm2838, %v3705
        %s3782 = scalar_lea.vmem %s389, 34 [#allocation15]
        %3783 = vst.msk [vmem:[%s3782] ss:$4 sm:$0x3] %vm2838, %v3720
        %s3784 = scalar_lea.vmem %s389, 42 [#allocation15]
        %3785 = vst.msk [vmem:[%s3784] ss:$4 sm:$0x3] %vm2838, %v3735
        %s3786 = scalar_lea.vmem %s389, 50 [#allocation15]
        %3787 = vst.msk [vmem:[%s3786] ss:$4 sm:$0x3] %vm2838, %v3750
        %s3788 = scalar_lea.vmem %s389, 58 [#allocation15]
        %3789 = vst.msk [vmem:[%s3788] ss:$4 sm:$0x3] %vm2838, %v3765
        %v3798 = vcombine.low %v1335, %v1336
        %v3799 = vcombine.low %v1337, %v1338
        %v3800 = vcombine.low %v1339, %v1340
        %v3801 = vcombine.low %v1341, %v1342
        %v3803 = vunpack.c.l.s4 1966171168
        %v3804 = vunpack.c.0.s8 %v3803
        %v3805 = vlaneseq
        %v3806 = vshrl.u32 %v3805, 7
        %v3807 = vsub.s32 %v3804, %v3806
        %v3808 = vrot.slane %v3798, %v3807
        %v3810 = vunpack.c.l.s4 1966171168
        %v3811 = vunpack.c.0.s8 %v3810
        %v3812 = vlaneseq
        %v3813 = vshrl.u32 %v3812, 7
        %v3814 = vsub.s32 %v3811, %v3813
        %v3815 = vrot.slane %v3799, %v3814
        %v3817 = vunpack.c.l.s4 1966171168
        %v3818 = vunpack.c.0.s8 %v3817
        %v3819 = vlaneseq
        %v3820 = vshrl.u32 %v3819, 7
        %v3821 = vsub.s32 %v3818, %v3820
        %v3822 = vrot.slane %v3800, %v3821
        %v3824 = vunpack.c.l.s4 1966171168
        %v3825 = vunpack.c.0.s8 %v3824
        %v3826 = vlaneseq
        %v3827 = vshrl.u32 %v3826, 7
        %v3828 = vsub.s32 %v3825, %v3827
        %v3829 = vrot.slane %v3801, %v3828
        %v3830 = vcombine.low %v3808, %v3815
        %v3831 = vcombine.high %v3808, %v3815
        %v3832 = vcombine.low %v3822, %v3829
        %v3833 = vcombine.high %v3822, %v3829
        %v3835 = vunpack.c.l.s4 1966171168
        %v3836 = vunpack.c.0.s8 %v3835
        %v3837 = vlaneseq
        %v3838 = vshrl.u32 %v3837, 7
        %v3839 = vsub.s32 %v3836, %v3838
        %v3840 = vrot.slane %v3830, %v3839
        %v3842 = vunpack.c.l.s4 1966171168
        %v3843 = vunpack.c.0.s8 %v3842
        %v3844 = vlaneseq
        %v3845 = vshrl.u32 %v3844, 7
        %v3846 = vsub.s32 %v3843, %v3845
        %v3847 = vrot.slane %v3831, %v3846
        %v3849 = vunpack.c.l.s4 1966171168
        %v3850 = vunpack.c.0.s8 %v3849
        %v3851 = vlaneseq
        %v3852 = vshrl.u32 %v3851, 7
        %v3853 = vsub.s32 %v3850, %v3852
        %v3854 = vrot.slane %v3832, %v3853
        %v3856 = vunpack.c.l.s4 1966171168
        %v3857 = vunpack.c.0.s8 %v3856
        %v3858 = vlaneseq
        %v3859 = vshrl.u32 %v3858, 7
        %v3860 = vsub.s32 %v3857, %v3859
        %v3861 = vrot.slane %v3833, %v3860
        %v3862 = vcombine.low %v3840, %v3854
        %v3863 = vcombine.low %v3847, %v3861
        %v3866 = vmul.f32 %v2224, %v3862
        %v3867 = vmul.f32 %v2226, %v3863
        %v3868 = vmul.f32 %v2228, %v3862
        %v3869 = vmul.f32 %v2230, %v3863
        %v3870 = vmul.f32 %v2232, %v3862
        %v3871 = vmul.f32 %v2234, %v3863
        %v3872 = vmul.f32 %v2236, %v3862
        %v3873 = vmul.f32 %v2238, %v3863
        %v3874 = vmul.f32 %v2240, %v3862
        %v3875 = vmul.f32 %v2242, %v3863
        %v3876 = vmul.f32 %v2244, %v3862
        %v3877 = vmul.f32 %v2246, %v3863
        %v3878 = vmul.f32 %v2248, %v3862
        %v3879 = vmul.f32 %v2250, %v3863
        %v3880 = vmul.f32 %v2252, %v3862
        %v3881 = vmul.f32 %v2254, %v3863
        %v3882 = vrot.slane %v3866, 4
        %v3883 = vadd.f32 %v3866, %v3882
        %v3884 = vrot.slane %v3883, 2
        %v3885 = vadd.f32 %v3883, %v3884
        %v3886 = vrot.slane %v3885, 1
        %v3887 = vadd.f32 %v3885, %v3886
        %v3888 = vrot.slane %v3867, 4
        %v3889 = vadd.f32 %v3867, %v3888
        %v3890 = vrot.slane %v3889, 2
        %v3891 = vadd.f32 %v3889, %v3890
        %v3892 = vrot.slane %v3891, 1
        %v3893 = vadd.f32 %v3891, %v3892
        %v3894 = vrot.slane %v3868, 4
        %v3895 = vadd.f32 %v3868, %v3894
        %v3896 = vrot.slane %v3895, 2
        %v3897 = vadd.f32 %v3895, %v3896
        %v3898 = vrot.slane %v3897, 1
        %v3899 = vadd.f32 %v3897, %v3898
        %v3900 = vrot.slane %v3869, 4
        %v3901 = vadd.f32 %v3869, %v3900
        %v3902 = vrot.slane %v3901, 2
        %v3903 = vadd.f32 %v3901, %v3902
        %v3904 = vrot.slane %v3903, 1
        %v3905 = vadd.f32 %v3903, %v3904
        %v3906 = vrot.slane %v3870, 4
        %v3907 = vadd.f32 %v3870, %v3906
        %v3908 = vrot.slane %v3907, 2
        %v3909 = vadd.f32 %v3907, %v3908
        %v3910 = vrot.slane %v3909, 1
        %v3911 = vadd.f32 %v3909, %v3910
        %v3912 = vrot.slane %v3871, 4
        %v3913 = vadd.f32 %v3871, %v3912
        %v3914 = vrot.slane %v3913, 2
        %v3915 = vadd.f32 %v3913, %v3914
        %v3916 = vrot.slane %v3915, 1
        %v3917 = vadd.f32 %v3915, %v3916
        %v3918 = vrot.slane %v3872, 4
        %v3919 = vadd.f32 %v3872, %v3918
        %v3920 = vrot.slane %v3919, 2
        %v3921 = vadd.f32 %v3919, %v3920
        %v3922 = vrot.slane %v3921, 1
        %v3923 = vadd.f32 %v3921, %v3922
        %v3924 = vrot.slane %v3873, 4
        %v3925 = vadd.f32 %v3873, %v3924
        %v3926 = vrot.slane %v3925, 2
        %v3927 = vadd.f32 %v3925, %v3926
        %v3928 = vrot.slane %v3927, 1
        %v3929 = vadd.f32 %v3927, %v3928
        %v3930 = vrot.slane %v3874, 4
        %v3931 = vadd.f32 %v3874, %v3930
        %v3932 = vrot.slane %v3931, 2
        %v3933 = vadd.f32 %v3931, %v3932
        %v3934 = vrot.slane %v3933, 1
        %v3935 = vadd.f32 %v3933, %v3934
        %v3936 = vrot.slane %v3875, 4
        %v3937 = vadd.f32 %v3875, %v3936
        %v3938 = vrot.slane %v3937, 2
        %v3939 = vadd.f32 %v3937, %v3938
        %v3940 = vrot.slane %v3939, 1
        %v3941 = vadd.f32 %v3939, %v3940
        %v3942 = vrot.slane %v3876, 4
        %v3943 = vadd.f32 %v3876, %v3942
        %v3944 = vrot.slane %v3943, 2
        %v3945 = vadd.f32 %v3943, %v3944
        %v3946 = vrot.slane %v3945, 1
        %v3947 = vadd.f32 %v3945, %v3946
        %v3948 = vrot.slane %v3877, 4
        %v3949 = vadd.f32 %v3877, %v3948
        %v3950 = vrot.slane %v3949, 2
        %v3951 = vadd.f32 %v3949, %v3950
        %v3952 = vrot.slane %v3951, 1
        %v3953 = vadd.f32 %v3951, %v3952
        %v3954 = vrot.slane %v3878, 4
        %v3955 = vadd.f32 %v3878, %v3954
        %v3956 = vrot.slane %v3955, 2
        %v3957 = vadd.f32 %v3955, %v3956
        %v3958 = vrot.slane %v3957, 1
        %v3959 = vadd.f32 %v3957, %v3958
        %v3960 = vrot.slane %v3879, 4
        %v3961 = vadd.f32 %v3879, %v3960
        %v3962 = vrot.slane %v3961, 2
        %v3963 = vadd.f32 %v3961, %v3962
        %v3964 = vrot.slane %v3963, 1
        %v3965 = vadd.f32 %v3963, %v3964
        %v3966 = vrot.slane %v3880, 4
        %v3967 = vadd.f32 %v3880, %v3966
        %v3968 = vrot.slane %v3967, 2
        %v3969 = vadd.f32 %v3967, %v3968
        %v3970 = vrot.slane %v3969, 1
        %v3971 = vadd.f32 %v3969, %v3970
        %v3972 = vrot.slane %v3881, 4
        %v3973 = vadd.f32 %v3881, %v3972
        %v3974 = vrot.slane %v3973, 2
        %v3975 = vadd.f32 %v3973, %v3974
        %v3976 = vrot.slane %v3975, 1
        %v3977 = vadd.f32 %v3975, %v3976
        %v3978 = vmul.f32 %v3887, %v2352
        %v3979 = vmul.f32 %v3893, %v2354
        %v3980 = vmul.f32 %v3899, %v2356
        %v3981 = vmul.f32 %v3905, %v2358
        %v3982 = vmul.f32 %v3911, %v2360
        %v3983 = vmul.f32 %v3917, %v2362
        %v3984 = vmul.f32 %v3923, %v2364
        %v3985 = vmul.f32 %v3929, %v2366
        %v3986 = vmul.f32 %v3935, %v2368
        %v3987 = vmul.f32 %v3941, %v2370
        %v3988 = vmul.f32 %v3947, %v2372
        %v3989 = vmul.f32 %v3953, %v2374
        %v3990 = vmul.f32 %v3959, %v2376
        %v3991 = vmul.f32 %v3965, %v2378
        %v3992 = vmul.f32 %v3971, %v2380
        %v3993 = vmul.f32 %v3977, %v2382
        %v4002 = vlaneseq
        %v4003 = vshrl.u32 %v4002, 7
        %v4004 = vsub.s32 0, %v4003
        %v4005 = vrot.slane %v440, %v4004
        %v4006 = vlaneseq
        %v4007 = vshrl.u32 %v4006, 7
        %v4008 = vsub.s32 1, %v4007
        %v4009 = vrot.slane %v440, %v4008
        %v4010 = vlaneseq
        %v4011 = vshrl.u32 %v4010, 7
        %v4012 = vsub.s32 0, %v4011
        %v4013 = vrot.slane %v442, %v4012
        %v4014 = vlaneseq
        %v4015 = vshrl.u32 %v4014, 7
        %v4016 = vsub.s32 1, %v4015
        %v4017 = vrot.slane %v442, %v4016
        %v4018 = vlaneseq
        %v4019 = vshrl.u32 %v4018, 7
        %v4020 = vsub.s32 0, %v4019
        %v4021 = vrot.slane %v444, %v4020
        %v4022 = vlaneseq
        %v4023 = vshrl.u32 %v4022, 7
        %v4024 = vsub.s32 1, %v4023
        %v4025 = vrot.slane %v444, %v4024
        %v4026 = vlaneseq
        %v4027 = vshrl.u32 %v4026, 7
        %v4028 = vsub.s32 0, %v4027
        %v4029 = vrot.slane %v446, %v4028
        %v4030 = vlaneseq
        %v4031 = vshrl.u32 %v4030, 7
        %v4032 = vsub.s32 1, %v4031
        %v4033 = vrot.slane %v446, %v4032
        %v4034 = vlaneseq
        %v4035 = vshrl.u32 %v4034, 7
        %v4036 = vsub.s32 0, %v4035
        %v4037 = vrot.slane %v448, %v4036
        %v4038 = vlaneseq
        %v4039 = vshrl.u32 %v4038, 7
        %v4040 = vsub.s32 1, %v4039
        %v4041 = vrot.slane %v448, %v4040
        %v4042 = vlaneseq
        %v4043 = vshrl.u32 %v4042, 7
        %v4044 = vsub.s32 0, %v4043
        %v4045 = vrot.slane %v450, %v4044
        %v4046 = vlaneseq
        %v4047 = vshrl.u32 %v4046, 7
        %v4048 = vsub.s32 1, %v4047
        %v4049 = vrot.slane %v450, %v4048
        %v4050 = vlaneseq
        %v4051 = vshrl.u32 %v4050, 7
        %v4052 = vsub.s32 0, %v4051
        %v4053 = vrot.slane %v452, %v4052
        %v4054 = vlaneseq
        %v4055 = vshrl.u32 %v4054, 7
        %v4056 = vsub.s32 1, %v4055
        %v4057 = vrot.slane %v452, %v4056
        %v4058 = vlaneseq
        %v4059 = vshrl.u32 %v4058, 7
        %v4060 = vsub.s32 0, %v4059
        %v4061 = vrot.slane %v454, %v4060
        %v4062 = vlaneseq
        %v4063 = vshrl.u32 %v4062, 7
        %v4064 = vsub.s32 1, %v4063
        %v4065 = vrot.slane %v454, %v4064
        %v4082 = vadd.f32 %v3978, %v4005
        %v4083 = vadd.f32 %v3979, %v4009
        %v4084 = vadd.f32 %v3980, %v4013
        %v4085 = vadd.f32 %v3981, %v4017
        %v4086 = vadd.f32 %v3982, %v4021
        %v4087 = vadd.f32 %v3983, %v4025
        %v4088 = vadd.f32 %v3984, %v4029
        %v4089 = vadd.f32 %v3985, %v4033
        %v4090 = vadd.f32 %v3986, %v4037
        %v4091 = vadd.f32 %v3987, %v4041
        %v4092 = vadd.f32 %v3988, %v4045
        %v4093 = vadd.f32 %v3989, %v4049
        %v4094 = vadd.f32 %v3990, %v4053
        %v4095 = vadd.f32 %v3991, %v4057
        %v4096 = vadd.f32 %v3992, %v4061
        %v4097 = vadd.f32 %v3993, %v4065
        %v4114 = vcombine.low %v4082, %v4083
        %v4116 = vunpack.c.l.s4 1966171168
        %v4117 = vunpack.c.0.s8 %v4116
        %v4118 = vlaneseq
        %v4119 = vshrl.u32 %v4118, 7
        %v4120 = vsub.s32 %v4117, %v4119
        %v4121 = vrot.slane %v4114, %v4120
        %v4123 = vunpack.c.l.s4 1966171168
        %v4124 = vunpack.c.0.s8 %v4123
        %v4125 = vlaneseq
        %v4126 = vshrl.u32 %v4125, 7
        %v4127 = vsub.s32 %v4124, %v4126
        %v4128 = vrot.slane %v4121, %v4127
        %v4129 = vcombine.low %v4084, %v4085
        %v4131 = vunpack.c.l.s4 1966171168
        %v4132 = vunpack.c.0.s8 %v4131
        %v4133 = vlaneseq
        %v4134 = vshrl.u32 %v4133, 7
        %v4135 = vsub.s32 %v4132, %v4134
        %v4136 = vrot.slane %v4129, %v4135
        %v4138 = vunpack.c.l.s4 1966171168
        %v4139 = vunpack.c.0.s8 %v4138
        %v4140 = vlaneseq
        %v4141 = vshrl.u32 %v4140, 7
        %v4142 = vsub.s32 %v4139, %v4141
        %v4143 = vrot.slane %v4136, %v4142
        %v4144 = vcombine.low %v4086, %v4087
        %v4146 = vunpack.c.l.s4 1966171168
        %v4147 = vunpack.c.0.s8 %v4146
        %v4148 = vlaneseq
        %v4149 = vshrl.u32 %v4148, 7
        %v4150 = vsub.s32 %v4147, %v4149
        %v4151 = vrot.slane %v4144, %v4150
        %v4153 = vunpack.c.l.s4 1966171168
        %v4154 = vunpack.c.0.s8 %v4153
        %v4155 = vlaneseq
        %v4156 = vshrl.u32 %v4155, 7
        %v4157 = vsub.s32 %v4154, %v4156
        %v4158 = vrot.slane %v4151, %v4157
        %v4159 = vcombine.low %v4088, %v4089
        %v4161 = vunpack.c.l.s4 1966171168
        %v4162 = vunpack.c.0.s8 %v4161
        %v4163 = vlaneseq
        %v4164 = vshrl.u32 %v4163, 7
        %v4165 = vsub.s32 %v4162, %v4164
        %v4166 = vrot.slane %v4159, %v4165
        %v4168 = vunpack.c.l.s4 1966171168
        %v4169 = vunpack.c.0.s8 %v4168
        %v4170 = vlaneseq
        %v4171 = vshrl.u32 %v4170, 7
        %v4172 = vsub.s32 %v4169, %v4171
        %v4173 = vrot.slane %v4166, %v4172
        %v4174 = vcombine.low %v4090, %v4091
        %v4176 = vunpack.c.l.s4 1966171168
        %v4177 = vunpack.c.0.s8 %v4176
        %v4178 = vlaneseq
        %v4179 = vshrl.u32 %v4178, 7
        %v4180 = vsub.s32 %v4177, %v4179
        %v4181 = vrot.slane %v4174, %v4180
        %v4183 = vunpack.c.l.s4 1966171168
        %v4184 = vunpack.c.0.s8 %v4183
        %v4185 = vlaneseq
        %v4186 = vshrl.u32 %v4185, 7
        %v4187 = vsub.s32 %v4184, %v4186
        %v4188 = vrot.slane %v4181, %v4187
        %v4189 = vcombine.low %v4092, %v4093
        %v4191 = vunpack.c.l.s4 1966171168
        %v4192 = vunpack.c.0.s8 %v4191
        %v4193 = vlaneseq
        %v4194 = vshrl.u32 %v4193, 7
        %v4195 = vsub.s32 %v4192, %v4194
        %v4196 = vrot.slane %v4189, %v4195
        %v4198 = vunpack.c.l.s4 1966171168
        %v4199 = vunpack.c.0.s8 %v4198
        %v4200 = vlaneseq
        %v4201 = vshrl.u32 %v4200, 7
        %v4202 = vsub.s32 %v4199, %v4201
        %v4203 = vrot.slane %v4196, %v4202
        %v4204 = vcombine.low %v4094, %v4095
        %v4206 = vunpack.c.l.s4 1966171168
        %v4207 = vunpack.c.0.s8 %v4206
        %v4208 = vlaneseq
        %v4209 = vshrl.u32 %v4208, 7
        %v4210 = vsub.s32 %v4207, %v4209
        %v4211 = vrot.slane %v4204, %v4210
        %v4213 = vunpack.c.l.s4 1966171168
        %v4214 = vunpack.c.0.s8 %v4213
        %v4215 = vlaneseq
        %v4216 = vshrl.u32 %v4215, 7
        %v4217 = vsub.s32 %v4214, %v4216
        %v4218 = vrot.slane %v4211, %v4217
        %v4219 = vcombine.low %v4096, %v4097
        %v4221 = vunpack.c.l.s4 1966171168
        %v4222 = vunpack.c.0.s8 %v4221
        %v4223 = vlaneseq
        %v4224 = vshrl.u32 %v4223, 7
        %v4225 = vsub.s32 %v4222, %v4224
        %v4226 = vrot.slane %v4219, %v4225
        %v4228 = vunpack.c.l.s4 1966171168
        %v4229 = vunpack.c.0.s8 %v4228
        %v4230 = vlaneseq
        %v4231 = vshrl.u32 %v4230, 7
        %v4232 = vsub.s32 %v4229, %v4231
        %v4233 = vrot.slane %v4226, %v4232
        %s4242 = scalar_lea.vmem %s389, 3 [#allocation15]
        %4243 = vst.msk [vmem:[%s4242] ss:$4 sm:$0x3] %vm2838, %v4128
        %s4244 = scalar_lea.vmem %s389, 11 [#allocation15]
        %4245 = vst.msk [vmem:[%s4244] ss:$4 sm:$0x3] %vm2838, %v4143
        %s4246 = scalar_lea.vmem %s389, 19 [#allocation15]
        %4247 = vst.msk [vmem:[%s4246] ss:$4 sm:$0x3] %vm2838, %v4158
        %s4248 = scalar_lea.vmem %s389, 27 [#allocation15]
        %4249 = vst.msk [vmem:[%s4248] ss:$4 sm:$0x3] %vm2838, %v4173
        %s4250 = scalar_lea.vmem %s389, 35 [#allocation15]
        %4251 = vst.msk [vmem:[%s4250] ss:$4 sm:$0x3] %vm2838, %v4188
        %s4252 = scalar_lea.vmem %s389, 43 [#allocation15]
        %4253 = vst.msk [vmem:[%s4252] ss:$4 sm:$0x3] %vm2838, %v4203
        %s4254 = scalar_lea.vmem %s389, 51 [#allocation15]
        %4255 = vst.msk [vmem:[%s4254] ss:$4 sm:$0x3] %vm2838, %v4218
        %s4256 = scalar_lea.vmem %s389, 59 [#allocation15]
        %4257 = vst.msk [vmem:[%s4256] ss:$4 sm:$0x3] %vm2838, %v4233
        %s4258 = sand.u32 %s204, 1
        %s4259 = scalar_lea.sflag [#allocation4], %s4258
        %s4260 = sand.u32 %s204, 1
        %s4261 = smul.addr %s4260, 64
        %s4262 = scalar_lea.vmem [#allocation15], %s4261
        // Predicated region
        $region77: #{tpu_custom_call.1} parent=47 // pred_check
          %p4263 = pneg %p214
        $region78: #{tpu_custom_call.1} parent=47 // pred_check_branch
          %4265 = sbr.rel (%p4263) target = $region80
        $region79: #{tpu_custom_call.1} parent=47 // pred_region
          %s4266 = smul.u32 2, %s33
          %s4268 = ssub.s32 1024, 1024
          %4269 = vsyncadd %s4259, %s4268
          %s4270 = smul.addr %s32, 16
          %s4271 = sadd.s32 %s4266, %s4270
          %s4272 = smul.addr %s4271, 64
          %s4273 = scalar_lea.hbm %s7, %s4272
          %s4274 = sshll.u32 %s4262, 4
          %s4275 = int_to_ptr.vmem [resolvable:$true] %s4274
          %4280 = dma.vmem_to_hbm [thread:$0]  %s4275, 1024, %s4273, %s4259, 128, 128, 8
        $region80: #{tpu_custom_call.1} parent=47 // pred_fallthru
          _
      $region48: #{tpu_custom_call.1} parent=5 // pred_fallthru
        _
      %p4281 = scmp.le.s32.totalorder 2, %s23
      // Predicated region
      $region81: #{tpu_custom_call.1} parent=5 // pred_check
        %p4282 = pneg %p4281
      $region82: #{tpu_custom_call.1} parent=5 // pred_check_branch
        %4284 = sbr.rel (%p4282) target = $region84
      $region83: #{tpu_custom_call.1} parent=5 // pred_region
        %s4285 = ssub.s32 %s23, 2
        // Predicated region
        $region85: #{tpu_custom_call.1} parent=83 // pred_check
          %p4286 = pneg %p220
        $region86: #{tpu_custom_call.1} parent=83 // pred_check_branch
          %4288 = sbr.rel (%p4286) target = $region88
        $region87: #{tpu_custom_call.1} parent=83 // pred_region
          %s4289 = sand.u32 %s205, 1
          %s4290 = scalar_lea.sflag [#allocation4], %s4289
          %s4291 = sand.u32 %s205, 1
          %s4292 = smul.addr %s4291, 64
          %s4293 = scalar_lea.vmem [#allocation15], %s4292
          %4294 = dma.done %s4290, 1024
        $region88: #{tpu_custom_call.1} parent=83 // pred_fallthru
          _
      $region84: #{tpu_custom_call.1} parent=5 // pred_fallthru
        _
    $region6: #{tpu_custom_call.1} parent=1 // loop_footer
      %s27 = sadd.s32 1, %s23
    $region7: #{tpu_custom_call.1} parent=1 // loop_footer_branch
      %22 = sbr.rel target = $region3
    $region8: #{tpu_custom_call.1} parent=1 // loop_exit
      _
    %4295 = vsyncpa [#allocation3], 1
    %s4296 = scalar_lea.sflag [#allocation3], 1
    %4297 = vsyncpa %s4296, 1
    %4298 = vsyncpa [#allocation4], 1
    %s4299 = scalar_lea.sflag [#allocation4], 1
    %4300 = vsyncpa %s4299, 1
    %4301 = vsyncpa [#allocation5], 1
    %s4302 = scalar_lea.sflag [#allocation5], 1
    %4303 = vsyncpa %s4302, 1
    %4304 = vsyncpa [#allocation6], 1
    %s4305 = scalar_lea.sflag [#allocation6], 1
    %4306 = vsyncpa %s4305, 1
    %4307 = vsyncpa [#allocation9], 1
    %4308 = vsyncpa [#allocation12], 1

</llo_original>
